<compile_context>
chip_gen: v7x
topology: tpu7x:2x2x1
jax: 0.10.0
libtpu: 0.0.40
codegen_flags: <defaults>
</compile_context>

<pallas_src>
import functools

import jax
import jax.numpy as jnp
from jax.experimental import pallas as pl
from jax.experimental.pallas import tpu as pltpu


# ----------------------------- pure-JAX reference (original formulation) ------

def _layernorm_ld(x, w, b, eps=1e-5):
    mu = jnp.mean(x, axis=(1, 2), keepdims=True)
    var = jnp.mean((x - mu) ** 2, axis=(1, 2), keepdims=True)
    return (x - mu) * jax.lax.rsqrt(var + eps) * w[None] + b[None]


def _fuzzy_attention_ref(q_in, val_in, wq, bq, wc, bc, centers, widths):
    q = jnp.einsum('bld,ed->ble', q_in, wq,
                   preferred_element_type=jnp.float32) + bq[None, None, :]
    dist = jnp.abs(q[:, :, None, :] - centers[None, None, :, :])
    prot = dist / widths[None, None, :, :]
    z = jnp.mean(-0.5 * prot * prot, axis=-1)
    z = z - jnp.max(z, axis=-1, keepdims=True)
    e = jnp.exp(z)
    fss = e / jnp.sum(e, axis=-1, keepdims=True)
    conq = jnp.einsum('bld,rl->brd', val_in, wc,
                      preferred_element_type=jnp.float32) + bc[None, :, None]
    return jnp.einsum('blr,brd->bld', fss, conq,
                      preferred_element_type=jnp.float32)


def _decoder_layer_math_ref(x, mem, p):
    sa = _fuzzy_attention_ref(x, x, p['sa_wq'], p['sa_bq'], p['sa_wc'], p['sa_bc'],
                              p['sa_centers'], p['sa_widths'])
    x = _layernorm_ld(x + sa, p['n1_w'], p['n1_b'])
    ca = _fuzzy_attention_ref(x, mem, p['ca_wq'], p['ca_bq'], p['ca_wc'], p['ca_bc'],
                              p['ca_centers'], p['ca_widths'])
    x = _layernorm_ld(x + ca, p['n2_w'], p['n2_b'])
    h = jnp.einsum('bld,fd->blf', x, p['ff_w1'],
                   preferred_element_type=jnp.float32) + p['ff_b1'][None, None, :]
    h = jnp.maximum(h, 0.0)
    ff = jnp.einsum('blf,df->bld', h, p['ff_w2'],
                    preferred_element_type=jnp.float32) + p['ff_b2'][None, None, :]
    x = _layernorm_ld(x + ff, p['n3_w'], p['n3_b'])
    return x


# ----------------------------- Pallas kernel (fused over layers) --------------

def _fused_decoder_kernel(x_ref, mem_ref,
                          wqt_ref, bq_ref, wc_ref, bc_ref,
                          zA_ref, zB_ref, zC_ref,
                          lnw_ref, lnb_ref,
                          ffw1t_ref, ffb1_ref, ffw2t_ref, ffb2_ref,
                          out_ref, *, n_layers, eps):
    Bb, L, D = x_ref.shape
    BL = Bb * L
    inv_ld = 1.0 / float(L * D)

    def layernorm(v_flat, w, b):
        # LayerNorm over the last two dims [L, D], per batch element.
        v = v_flat.reshape(Bb, L, D)
        mu = jnp.sum(jnp.sum(v, axis=2, keepdims=True), axis=1, keepdims=True) * inv_ld
        d = v - mu
        var = jnp.sum(jnp.sum(d * d, axis=2, keepdims=True),
                      axis=1, keepdims=True) * inv_ld
        out = d * jax.lax.rsqrt(var + eps) * w[None] + b[None]
        return out.reshape(BL, D)

    def fuzzy_attn(q_flat, val, li, ai):
        # q_flat: (Bb*L, D) query rows; val: (Bb, L, D) value tensor.
        q = jnp.dot(q_flat, wqt_ref[li, ai],
                    preferred_element_type=jnp.float32) + bq_ref[li, ai]          # (BL, D)
        # z = mean_d(-0.5*((q - c)/w)^2), quadratic expansion with every scalar
        # constant folded into zA / zB / zC in the wrapper.
        z = (jnp.dot(q * q, zA_ref[li, ai], preferred_element_type=jnp.float32)
             + jnp.dot(q, zB_ref[li, ai], preferred_element_type=jnp.float32)
             + zC_ref[li, ai])                                                    # (BL, R)
        # z <= 0 (negative quadratic, modulo tiny f32 cancellation), so exp is
        # safe without the row-max shift.
        e = jnp.exp(z)
        fss = e * pl.reciprocal(jnp.sum(e, axis=-1, keepdims=True), approx=True)  # (BL, R)
        # Fss @ (Wc @ V + bc) == (Fss @ Wc) @ V + Fss @ bc   (no transposes needed)
        mix = jnp.dot(fss, wc_ref[li, ai], preferred_element_type=jnp.float32)    # (BL, L)
        bias = jnp.dot(fss, bc_ref[li, ai], preferred_element_type=jnp.float32)   # (BL, 1)
        out = jnp.einsum('blm,bmd->bld', mix.reshape(Bb, L, L), val,
                         preferred_element_type=jnp.float32)                      # (Bb,L,D)
        return out.reshape(BL, D) + bias

    x = x_ref[...].reshape(BL, D)
    mem = mem_ref[...]                              # (Bb, L, D)
    # TODO(synk): dropout (p=self.dropout) is identity in eval mode / p=0.0 -> omitted.
    for li in range(n_layers):                      # static unroll (small n_layers)
        sa = fuzzy_attn(x, x.reshape(Bb, L, D), li, 0)
        x = layernorm(x + sa, lnw_ref[li, 0], lnb_ref[li, 0])
        ca = fuzzy_attn(x, mem, li, 1)
        x = layernorm(x + ca, lnw_ref[li, 1], lnb_ref[li, 1])
        h = jnp.dot(x, ffw1t_ref[li], preferred_element_type=jnp.float32) + ffb1_ref[li]
        h = jnp.maximum(h, 0.0)
        ff = jnp.dot(h, ffw2t_ref[li], preferred_element_type=jnp.float32) + ffb2_ref[li]
        x = layernorm(x + ff, lnw_ref[li, 2], lnb_ref[li, 2])
    out_ref[...] = x.reshape(Bb, L, D)


# ----------------------------- parameter packing (call ONCE, outside jit) -----

def pack_decoder_params(layer_params_list, D):
    """Stack per-layer params into a handful of slabs, precompute the quadratic
    fuzzy-distance tensors with all scalar constants folded in, and pre-transpose
    every matmul RHS so the kernel does zero transposes.  Call once at init."""
    scale = -0.5 / float(D)
    inv_d = 1.0 / float(D)

    def att_pack(p, prefix):
        wq = p[f'{prefix}_wq']; bq = p[f'{prefix}_bq']
        wc = p[f'{prefix}_wc']; bc = p[f'{prefix}_bc']
        c = p[f'{prefix}_centers']; w = p[f'{prefix}_widths']
        iw2 = 1.0 / (w * w)                                        # (R, D)
        zA = (scale * iw2).T                                       # (D, R)
        zB = (inv_d * c * iw2).T                                   # (D, R)
        zC = (scale * jnp.sum(c * c * iw2, axis=-1))[None, :]      # (1, R)
        return (wq.T,                # (D, D)
                bq[None, :],         # (1, D)
                wc,                  # (R, L)
                bc[:, None],         # (R, 1)
                zA, zB, zC)

    per_layer = []
    for p in layer_params_list:
        sa = att_pack(p, 'sa')
        ca = att_pack(p, 'ca')
        att = tuple(jnp.stack([a, b], axis=0) for a, b in zip(sa, ca))   # each (2, ...)
        ln_w = jnp.stack([p['n1_w'], p['n2_w'], p['n3_w']], axis=0)      # (3, L, D)
        ln_b = jnp.stack([p['n1_b'], p['n2_b'], p['n3_b']], axis=0)      # (3, L, D)
        ff = (p['ff_w1'].T, p['ff_b1'][None, :], p['ff_w2'].T, p['ff_b2'][None, :])
        per_layer.append(att + (ln_w, ln_b) + ff)

    return tuple(jnp.stack([lay[i] for lay in per_layer], axis=0)
                 for i in range(len(per_layer[0])))


# ----------------------------- wrapper -----------------------------------------

def fuzzy_attention_decoder(x, encoder_output, packed_params, *, eps=1e-5, block_b=None):
    B, L, D = x.shape
    n_layers = packed_params[0].shape[0]
    # One grid step per TensorCore's worth of batch. On single-TC chips (v5e/v6e)
    # block_b=B -> grid=(1,) amortizes all per-step overhead; on v7x pass
    # block_b=B//2 so each of the two TensorCores takes exactly one step.
    bb = B if block_b is None else block_b
    assert B % bb == 0

    act_spec = pl.BlockSpec((bb, L, D), lambda g: (g, 0, 0))

    def full_spec(a):
        # Whole slab resident in VMEM, same block for every grid step.
        # TODO(synk): at production sizes add pipeline_mode=pl.Buffered(1) (or move
        # the layer loop to a grid axis) to avoid double-buffering all weights.
        return pl.BlockSpec(a.shape, lambda g, _nd=a.ndim: (0,) * _nd)

    kernel = functools.partial(_fused_decoder_kernel, n_layers=n_layers, eps=eps)

    return pl.pallas_call(
        kernel,
        out_shape=jax.ShapeDtypeStruct((B, L, D), x.dtype),
        grid=(B // bb,),
        in_specs=[act_spec, act_spec] + [full_spec(a) for a in packed_params],
        out_specs=act_spec,
        compiler_params=pltpu.CompilerParams(
            dimension_semantics=("parallel",),
            vmem_limit_bytes=32 * 1024 * 1024,
        ),
    )(x, encoder_output, *packed_params)


# ----------------------------- deterministic parameter init --------------------

def _linear_params(key, in_f, out_f):
    kw, kb = jax.random.split(key)
    bound = 1.0 / float(in_f) ** 0.5
    w = jax.random.uniform(kw, (out_f, in_f), jnp.float32, -bound, bound)
    b = jax.random.uniform(kb, (out_f,), jnp.float32, -bound, bound)
    return w, b


def init_layer_params(key, L, D, n_rules, dim_ff):
    ks = jax.random.split(key, 16)
    p = {}
    p['sa_wq'], p['sa_bq'] = _linear_params(ks[0], D, D)
    p['sa_wc'], p['sa_bc'] = _linear_params(ks[1], L, n_rules)
    p['sa_centers'] = jax.random.uniform(ks[2], (n_rules, D), jnp.float32)
    p['sa_widths'] = jax.random.uniform(ks[3], (n_rules, D), jnp.float32,
                                        minval=0.1, maxval=1.0)
    p['ca_wq'], p['ca_bq'] = _linear_params(ks[4], D, D)
    p['ca_wc'], p['ca_bc'] = _linear_params(ks[5], L, n_rules)
    p['ca_centers'] = jax.random.uniform(ks[6], (n_rules, D), jnp.float32)
    p['ca_widths'] = jax.random.uniform(ks[7], (n_rules, D), jnp.float32,
                                        minval=0.1, maxval=1.0)
    p['n1_w'] = jnp.ones((L, D), jnp.float32)
    p['n1_b'] = jnp.zeros((L, D), jnp.float32)
    p['n2_w'] = jnp.ones((L, D), jnp.float32)
    p['n2_b'] = jnp.zeros((L, D), jnp.float32)
    p['n3_w'] = jnp.ones((L, D), jnp.float32)
    p['n3_b'] = jnp.zeros((L, D), jnp.float32)
    p['ff_w1'], p['ff_b1'] = _linear_params(ks[8], D, dim_ff)
    p['ff_w2'], p['ff_b2'] = _linear_params(ks[9], dim_ff, D)
    return p


# ----------------------------- main --------------------------------------------

if __name__ == "__main__":
    B, L, D = 2, 8, 32          # input_shape of the module
    n_rules = L                  # n_rules=None -> L
    n_layers = 2
    dim_ff = 64                  # small dim_feedforward for the test

    key = jax.random.PRNGKey(0)
    kx, kmem, kparams = jax.random.split(key, 3)
    x = jax.random.normal(kx, (B, L, D), jnp.float32)
    encoder_output = jax.random.normal(kmem, (B, L, D), jnp.float32)

    layer_keys = jax.random.split(kparams, n_layers)
    layer_params = [init_layer_params(k, L, D, n_rules, dim_ff) for k in layer_keys]

    # Pack / transpose / derive fuzzy tensors ONCE, outside the jitted forward.
    packed = pack_decoder_params(layer_params, D)
    packed = jax.tree_util.tree_map(jax.block_until_ready, packed)

    decoder = jax.jit(fuzzy_attention_decoder)
    out = jax.block_until_ready(decoder(x, encoder_output, packed))

    # pure-JAX reference using the original (un-expanded) formulation
    ref = x
    for p in layer_params:
        ref = _decoder_layer_math_ref(ref, encoder_output, p)
    ref = jax.block_until_ready(ref)

    assert out.shape == (B, L, D)
    assert bool(jnp.all(jnp.isfinite(out)))
    assert bool(jnp.allclose(out, ref, atol=1e-2, rtol=1e-2)), "mismatch vs reference"
    print("KERNEL_OK")
</pallas_src>

<mosaic_0001>
module attributes {stable_mosaic.version = 11 : i64} {
  func.func @_fused_decoder_kernel(%arg0: i32, %arg1: memref<2x8x32xf32, #tpu.memory_space<vmem>>, %arg2: memref<2x8x32xf32, #tpu.memory_space<vmem>>, %arg3: memref<2x2x32x32xf32, #tpu.memory_space<vmem>>, %arg4: memref<2x2x1x32xf32, #tpu.memory_space<vmem>>, %arg5: memref<2x2x8x8xf32, #tpu.memory_space<vmem>>, %arg6: memref<2x2x8x1xf32, #tpu.memory_space<vmem>>, %arg7: memref<2x2x32x8xf32, #tpu.memory_space<vmem>>, %arg8: memref<2x2x32x8xf32, #tpu.memory_space<vmem>>, %arg9: memref<2x2x1x8xf32, #tpu.memory_space<vmem>>, %arg10: memref<2x3x8x32xf32, #tpu.memory_space<vmem>>, %arg11: memref<2x3x8x32xf32, #tpu.memory_space<vmem>>, %arg12: memref<2x32x64xf32, #tpu.memory_space<vmem>>, %arg13: memref<2x1x64xf32, #tpu.memory_space<vmem>>, %arg14: memref<2x64x32xf32, #tpu.memory_space<vmem>>, %arg15: memref<2x1x32xf32, #tpu.memory_space<vmem>>, %arg16: memref<2x8x32xf32, #tpu.memory_space<vmem>>) attributes {dimension_semantics = [#tpu.dimension_semantics<parallel>], iteration_bounds = array<i64: 1>, scalar_prefetch = 0 : i64, scratch_operands = 0 : i64, tpu.core_type = #tpu.core_type<tc>, window_params = [{transform_indices = @transform_0, window_bounds = array<i64: 2, 8, 32>}, {transform_indices = @transform_1, window_bounds = array<i64: 2, 8, 32>}, {pipeline_mode = #tpu.pipeline_mode<synchronous>, transform_indices = @transform_2, window_bounds = array<i64: 2, 2, 32, 32>}, {pipeline_mode = #tpu.pipeline_mode<synchronous>, transform_indices = @transform_3, window_bounds = array<i64: 2, 2, 1, 32>}, {pipeline_mode = #tpu.pipeline_mode<synchronous>, transform_indices = @transform_4, window_bounds = array<i64: 2, 2, 8, 8>}, {pipeline_mode = #tpu.pipeline_mode<synchronous>, transform_indices = @transform_5, window_bounds = array<i64: 2, 2, 8, 1>}, {pipeline_mode = #tpu.pipeline_mode<synchronous>, transform_indices = @transform_6, window_bounds = array<i64: 2, 2, 32, 8>}, {pipeline_mode = #tpu.pipeline_mode<synchronous>, transform_indices = @transform_7, window_bounds = array<i64: 2, 2, 32, 8>}, {pipeline_mode = #tpu.pipeline_mode<synchronous>, transform_indices = @transform_8, window_bounds = array<i64: 2, 2, 1, 8>}, {pipeline_mode = #tpu.pipeline_mode<synchronous>, transform_indices = @transform_9, window_bounds = array<i64: 2, 3, 8, 32>}, {pipeline_mode = #tpu.pipeline_mode<synchronous>, transform_indices = @transform_10, window_bounds = array<i64: 2, 3, 8, 32>}, {pipeline_mode = #tpu.pipeline_mode<synchronous>, transform_indices = @transform_11, window_bounds = array<i64: 2, 32, 64>}, {pipeline_mode = #tpu.pipeline_mode<synchronous>, transform_indices = @transform_12, window_bounds = array<i64: 2, 1, 64>}, {pipeline_mode = #tpu.pipeline_mode<synchronous>, transform_indices = @transform_13, window_bounds = array<i64: 2, 64, 32>}, {pipeline_mode = #tpu.pipeline_mode<synchronous>, transform_indices = @transform_14, window_bounds = array<i64: 2, 1, 32>}, {transform_indices = @transform_15, window_bounds = array<i64: 2, 8, 32>}]} {
    %c0 = arith.constant 0 : index
    %c0_0 = arith.constant 0 : index
    %c0_1 = arith.constant 0 : index
    %0 = vector.load %arg1[%c0, %c0_0, %c0_1] : memref<2x8x32xf32, #tpu.memory_space<vmem>>, vector<2x8x32xf32>
    %1 = vector.shape_cast %0 : vector<2x8x32xf32> to vector<16x32xf32>
    %c0_2 = arith.constant 0 : index
    %c0_3 = arith.constant 0 : index
    %c0_4 = arith.constant 0 : index
    %2 = vector.load %arg2[%c0_2, %c0_3, %c0_4] : memref<2x8x32xf32, #tpu.memory_space<vmem>>, vector<2x8x32xf32>
    %3 = vector.shape_cast %1 : vector<16x32xf32> to vector<2x8x32xf32>
    %c0_5 = arith.constant 0 : index
    %c0_6 = arith.constant 0 : index
    %c0_7 = arith.constant 0 : index
    %c0_8 = arith.constant 0 : index
    %4 = vector.load %arg3[%c0_5, %c0_6, %c0_7, %c0_8] : memref<2x2x32x32xf32, #tpu.memory_space<vmem>>, vector<1x1x32x32xf32>
    %5 = vector.shape_cast %4 : vector<1x1x32x32xf32> to vector<32x32xf32>
    %cst = arith.constant dense<0.000000e+00> : vector<16x32xf32>
    %6 = tpu.matmul %1, %5, %cst {dimension_numbers = #tpu.dot_dimension_numbers<[1], [0], [0], [1], [0, 0, 1, 1], [], []>} : vector<16x32xf32>, vector<32x32xf32>, vector<16x32xf32> -> vector<16x32xf32>
    %c0_9 = arith.constant 0 : index
    %c0_10 = arith.constant 0 : index
    %c0_11 = arith.constant 0 : index
    %c0_12 = arith.constant 0 : index
    %7 = vector.load %arg4[%c0_9, %c0_10, %c0_11, %c0_12] : memref<2x2x1x32xf32, #tpu.memory_space<vmem>>, vector<1x1x1x32xf32>
    %8 = vector.shape_cast %7 : vector<1x1x1x32xf32> to vector<1x32xf32>
    %9 = vector.broadcast %8 : vector<1x32xf32> to vector<16x32xf32>
    %10 = arith.addf %6, %9 : vector<16x32xf32>
    %11 = arith.mulf %10, %10 : vector<16x32xf32>
    %c0_13 = arith.constant 0 : index
    %c0_14 = arith.constant 0 : index
    %c0_15 = arith.constant 0 : index
    %c0_16 = arith.constant 0 : index
    %12 = vector.load %arg7[%c0_13, %c0_14, %c0_15, %c0_16] : memref<2x2x32x8xf32, #tpu.memory_space<vmem>>, vector<1x1x32x8xf32>
    %13 = vector.shape_cast %12 : vector<1x1x32x8xf32> to vector<32x8xf32>
    %cst_17 = arith.constant dense<0.000000e+00> : vector<16x8xf32>
    %14 = tpu.matmul %11, %13, %cst_17 {dimension_numbers = #tpu.dot_dimension_numbers<[1], [0], [0], [1], [0, 0, 1, 1], [], []>} : vector<16x32xf32>, vector<32x8xf32>, vector<16x8xf32> -> vector<16x8xf32>
    %c0_18 = arith.constant 0 : index
    %c0_19 = arith.constant 0 : index
    %c0_20 = arith.constant 0 : index
    %c0_21 = arith.constant 0 : index
    %15 = vector.load %arg8[%c0_18, %c0_19, %c0_20, %c0_21] : memref<2x2x32x8xf32, #tpu.memory_space<vmem>>, vector<1x1x32x8xf32>
    %16 = vector.shape_cast %15 : vector<1x1x32x8xf32> to vector<32x8xf32>
    %cst_22 = arith.constant dense<0.000000e+00> : vector<16x8xf32>
    %17 = tpu.matmul %10, %16, %cst_22 {dimension_numbers = #tpu.dot_dimension_numbers<[1], [0], [0], [1], [0, 0, 1, 1], [], []>} : vector<16x32xf32>, vector<32x8xf32>, vector<16x8xf32> -> vector<16x8xf32>
    %18 = arith.addf %14, %17 : vector<16x8xf32>
    %c0_23 = arith.constant 0 : index
    %c0_24 = arith.constant 0 : index
    %c0_25 = arith.constant 0 : index
    %c0_26 = arith.constant 0 : index
    %19 = vector.load %arg9[%c0_23, %c0_24, %c0_25, %c0_26] : memref<2x2x1x8xf32, #tpu.memory_space<vmem>>, vector<1x1x1x8xf32>
    %20 = vector.shape_cast %19 : vector<1x1x1x8xf32> to vector<1x8xf32>
    %21 = vector.broadcast %20 : vector<1x8xf32> to vector<16x8xf32>
    %22 = arith.addf %18, %21 : vector<16x8xf32>
    %23 = math.exp %22 : vector<16x8xf32>
    %cst_27 = arith.constant dense<0.000000e+00> : vector<16xf32>
    %24 = vector.multi_reduction <add>, %23, %cst_27 [1] : vector<16x8xf32> to vector<16xf32>
    %25 = vector.shape_cast %24 : vector<16xf32> to vector<16x1xf32>
    %26 = tpu.reciprocal %25 {approx = true} : vector<16x1xf32> -> vector<16x1xf32>
    %27 = vector.broadcast %26 : vector<16x1xf32> to vector<16x8xf32>
    %28 = arith.mulf %23, %27 : vector<16x8xf32>
    %c0_28 = arith.constant 0 : index
    %c0_29 = arith.constant 0 : index
    %c0_30 = arith.constant 0 : index
    %c0_31 = arith.constant 0 : index
    %29 = vector.load %arg5[%c0_28, %c0_29, %c0_30, %c0_31] : memref<2x2x8x8xf32, #tpu.memory_space<vmem>>, vector<1x1x8x8xf32>
    %30 = vector.shape_cast %29 : vector<1x1x8x8xf32> to vector<8x8xf32>
    %cst_32 = arith.constant dense<0.000000e+00> : vector<16x8xf32>
    %31 = tpu.matmul %28, %30, %cst_32 {dimension_numbers = #tpu.dot_dimension_numbers<[1], [0], [0], [1], [0, 0, 1, 1], [], []>} : vector<16x8xf32>, vector<8x8xf32>, vector<16x8xf32> -> vector<16x8xf32>
    %c0_33 = arith.constant 0 : index
    %c0_34 = arith.constant 0 : index
    %c0_35 = arith.constant 0 : index
    %c0_36 = arith.constant 0 : index
    %32 = vector.load %arg6[%c0_33, %c0_34, %c0_35, %c0_36] : memref<2x2x8x1xf32, #tpu.memory_space<vmem>>, vector<1x1x8x1xf32>
    %33 = vector.shape_cast %32 : vector<1x1x8x1xf32> to vector<8x1xf32>
    %cst_37 = arith.constant dense<0.000000e+00> : vector<16x1xf32>
    %34 = tpu.matmul %28, %33, %cst_37 {dimension_numbers = #tpu.dot_dimension_numbers<[1], [0], [0], [1], [0, 0, 1, 1], [], []>} : vector<16x8xf32>, vector<8x1xf32>, vector<16x1xf32> -> vector<16x1xf32>
    %35 = vector.shape_cast %31 : vector<16x8xf32> to vector<2x8x8xf32>
    "tpu.trace_start"() <{level = 10 : i32, message = "blm,bmd->bld"}> : () -> ()
    %cst_38 = arith.constant dense<0.000000e+00> : vector<2x8x32xf32>
    %36 = tpu.matmul %35, %3, %cst_38 {dimension_numbers = #tpu.dot_dimension_numbers<[2], [1], [1], [2], [0, 0, 0, 1, 1, 2], [0], [0]>} : vector<2x8x8xf32>, vector<2x8x32xf32>, vector<2x8x32xf32> -> vector<2x8x32xf32>
    "tpu.trace_stop"() : () -> ()
    %37 = vector.shape_cast %36 : vector<2x8x32xf32> to vector<16x32xf32>
    %38 = vector.broadcast %34 : vector<16x1xf32> to vector<16x32xf32>
    %39 = arith.addf %37, %38 : vector<16x32xf32>
    %40 = arith.addf %1, %39 : vector<16x32xf32>
    %c0_39 = arith.constant 0 : index
    %c0_40 = arith.constant 0 : index
    %c0_41 = arith.constant 0 : index
    %c0_42 = arith.constant 0 : index
    %41 = vector.load %arg10[%c0_39, %c0_40, %c0_41, %c0_42] : memref<2x3x8x32xf32, #tpu.memory_space<vmem>>, vector<1x1x8x32xf32>
    %42 = vector.shape_cast %41 : vector<1x1x8x32xf32> to vector<8x32xf32>
    %c0_43 = arith.constant 0 : index
    %c0_44 = arith.constant 0 : index
    %c0_45 = arith.constant 0 : index
    %c0_46 = arith.constant 0 : index
    %43 = vector.load %arg11[%c0_43, %c0_44, %c0_45, %c0_46] : memref<2x3x8x32xf32, #tpu.memory_space<vmem>>, vector<1x1x8x32xf32>
    %44 = vector.shape_cast %43 : vector<1x1x8x32xf32> to vector<8x32xf32>
    %45 = vector.shape_cast %40 : vector<16x32xf32> to vector<2x8x32xf32>
    %cst_47 = arith.constant dense<0.000000e+00> : vector<2x8xf32>
    %46 = vector.multi_reduction <add>, %45, %cst_47 [2] : vector<2x8x32xf32> to vector<2x8xf32>
    %47 = vector.shape_cast %46 : vector<2x8xf32> to vector<2x8x1xf32>
    %cst_48 = arith.constant dense<0.000000e+00> : vector<2x1xf32>
    %48 = vector.multi_reduction <add>, %47, %cst_48 [1] : vector<2x8x1xf32> to vector<2x1xf32>
    %49 = vector.shape_cast %48 : vector<2x1xf32> to vector<2x1x1xf32>
    %cst_49 = arith.constant 3.906250e-03 : f32
    %50 = vector.broadcast %cst_49 : f32 to vector<2x1x1xf32>
    %51 = arith.mulf %49, %50 : vector<2x1x1xf32>
    %52 = vector.broadcast %51 : vector<2x1x1xf32> to vector<2x8x32xf32>
    %53 = arith.subf %45, %52 : vector<2x8x32xf32>
    %54 = arith.mulf %53, %53 : vector<2x8x32xf32>
    %cst_50 = arith.constant dense<0.000000e+00> : vector<2x8xf32>
    %55 = vector.multi_reduction <add>, %54, %cst_50 [2] : vector<2x8x32xf32> to vector<2x8xf32>
    %56 = vector.shape_cast %55 : vector<2x8xf32> to vector<2x8x1xf32>
    %cst_51 = arith.constant dense<0.000000e+00> : vector<2x1xf32>
    %57 = vector.multi_reduction <add>, %56, %cst_51 [1] : vector<2x8x1xf32> to vector<2x1xf32>
    %58 = vector.shape_cast %57 : vector<2x1xf32> to vector<2x1x1xf32>
    %cst_52 = arith.constant 3.906250e-03 : f32
    %59 = vector.broadcast %cst_52 : f32 to vector<2x1x1xf32>
    %60 = arith.mulf %58, %59 : vector<2x1x1xf32>
    %cst_53 = arith.constant 9.99999974E-6 : f32
    %61 = vector.broadcast %cst_53 : f32 to vector<2x1x1xf32>
    %62 = arith.addf %60, %61 : vector<2x1x1xf32>
    %63 = math.rsqrt %62 : vector<2x1x1xf32>
    %64 = vector.broadcast %63 : vector<2x1x1xf32> to vector<2x8x32xf32>
    %65 = arith.mulf %53, %64 : vector<2x8x32xf32>
    %66 = vector.shape_cast %42 : vector<8x32xf32> to vector<1x8x32xf32>
    %67 = vector.broadcast %66 : vector<1x8x32xf32> to vector<2x8x32xf32>
    %68 = arith.mulf %65, %67 : vector<2x8x32xf32>
    %69 = vector.shape_cast %44 : vector<8x32xf32> to vector<1x8x32xf32>
    %70 = vector.broadcast %69 : vector<1x8x32xf32> to vector<2x8x32xf32>
    %71 = arith.addf %68, %70 : vector<2x8x32xf32>
    %72 = vector.shape_cast %71 : vector<2x8x32xf32> to vector<16x32xf32>
    %c0_54 = arith.constant 0 : index
    %c1 = arith.constant 1 : index
    %c0_55 = arith.constant 0 : index
    %c0_56 = arith.constant 0 : index
    %73 = vector.load %arg3[%c0_54, %c1, %c0_55, %c0_56] : memref<2x2x32x32xf32, #tpu.memory_space<vmem>>, vector<1x1x32x32xf32>
    %74 = vector.shape_cast %73 : vector<1x1x32x32xf32> to vector<32x32xf32>
    %cst_57 = arith.constant dense<0.000000e+00> : vector<16x32xf32>
    %75 = tpu.matmul %72, %74, %cst_57 {dimension_numbers = #tpu.dot_dimension_numbers<[1], [0], [0], [1], [0, 0, 1, 1], [], []>} : vector<16x32xf32>, vector<32x32xf32>, vector<16x32xf32> -> vector<16x32xf32>
    %c0_58 = arith.constant 0 : index
    %c1_59 = arith.constant 1 : index
    %c0_60 = arith.constant 0 : index
    %c0_61 = arith.constant 0 : index
    %76 = vector.load %arg4[%c0_58, %c1_59, %c0_60, %c0_61] : memref<2x2x1x32xf32, #tpu.memory_space<vmem>>, vector<1x1x1x32xf32>
    %77 = vector.shape_cast %76 : vector<1x1x1x32xf32> to vector<1x32xf32>
    %78 = vector.broadcast %77 : vector<1x32xf32> to vector<16x32xf32>
    %79 = arith.addf %75, %78 : vector<16x32xf32>
    %80 = arith.mulf %79, %79 : vector<16x32xf32>
    %c0_62 = arith.constant 0 : index
    %c1_63 = arith.constant 1 : index
    %c0_64 = arith.constant 0 : index
    %c0_65 = arith.constant 0 : index
    %81 = vector.load %arg7[%c0_62, %c1_63, %c0_64, %c0_65] : memref<2x2x32x8xf32, #tpu.memory_space<vmem>>, vector<1x1x32x8xf32>
    %82 = vector.shape_cast %81 : vector<1x1x32x8xf32> to vector<32x8xf32>
    %cst_66 = arith.constant dense<0.000000e+00> : vector<16x8xf32>
    %83 = tpu.matmul %80, %82, %cst_66 {dimension_numbers = #tpu.dot_dimension_numbers<[1], [0], [0], [1], [0, 0, 1, 1], [], []>} : vector<16x32xf32>, vector<32x8xf32>, vector<16x8xf32> -> vector<16x8xf32>
    %c0_67 = arith.constant 0 : index
    %c1_68 = arith.constant 1 : index
    %c0_69 = arith.constant 0 : index
    %c0_70 = arith.constant 0 : index
    %84 = vector.load %arg8[%c0_67, %c1_68, %c0_69, %c0_70] : memref<2x2x32x8xf32, #tpu.memory_space<vmem>>, vector<1x1x32x8xf32>
    %85 = vector.shape_cast %84 : vector<1x1x32x8xf32> to vector<32x8xf32>
    %cst_71 = arith.constant dense<0.000000e+00> : vector<16x8xf32>
    %86 = tpu.matmul %79, %85, %cst_71 {dimension_numbers = #tpu.dot_dimension_numbers<[1], [0], [0], [1], [0, 0, 1, 1], [], []>} : vector<16x32xf32>, vector<32x8xf32>, vector<16x8xf32> -> vector<16x8xf32>
    %87 = arith.addf %83, %86 : vector<16x8xf32>
    %c0_72 = arith.constant 0 : index
    %c1_73 = arith.constant 1 : index
    %c0_74 = arith.constant 0 : index
    %c0_75 = arith.constant 0 : index
    %88 = vector.load %arg9[%c0_72, %c1_73, %c0_74, %c0_75] : memref<2x2x1x8xf32, #tpu.memory_space<vmem>>, vector<1x1x1x8xf32>
    %89 = vector.shape_cast %88 : vector<1x1x1x8xf32> to vector<1x8xf32>
    %90 = vector.broadcast %89 : vector<1x8xf32> to vector<16x8xf32>
    %91 = arith.addf %87, %90 : vector<16x8xf32>
    %92 = math.exp %91 : vector<16x8xf32>
    %cst_76 = arith.constant dense<0.000000e+00> : vector<16xf32>
    %93 = vector.multi_reduction <add>, %92, %cst_76 [1] : vector<16x8xf32> to vector<16xf32>
    %94 = vector.shape_cast %93 : vector<16xf32> to vector<16x1xf32>
    %95 = tpu.reciprocal %94 {approx = true} : vector<16x1xf32> -> vector<16x1xf32>
    %96 = vector.broadcast %95 : vector<16x1xf32> to vector<16x8xf32>
    %97 = arith.mulf %92, %96 : vector<16x8xf32>
    %c0_77 = arith.constant 0 : index
    %c1_78 = arith.constant 1 : index
    %c0_79 = arith.constant 0 : index
    %c0_80 = arith.constant 0 : index
    %98 = vector.load %arg5[%c0_77, %c1_78, %c0_79, %c0_80] : memref<2x2x8x8xf32, #tpu.memory_space<vmem>>, vector<1x1x8x8xf32>
    %99 = vector.shape_cast %98 : vector<1x1x8x8xf32> to vector<8x8xf32>
    %cst_81 = arith.constant dense<0.000000e+00> : vector<16x8xf32>
    %100 = tpu.matmul %97, %99, %cst_81 {dimension_numbers = #tpu.dot_dimension_numbers<[1], [0], [0], [1], [0, 0, 1, 1], [], []>} : vector<16x8xf32>, vector<8x8xf32>, vector<16x8xf32> -> vector<16x8xf32>
    %c0_82 = arith.constant 0 : index
    %c1_83 = arith.constant 1 : index
    %c0_84 = arith.constant 0 : index
    %c0_85 = arith.constant 0 : index
    %101 = vector.load %arg6[%c0_82, %c1_83, %c0_84, %c0_85] : memref<2x2x8x1xf32, #tpu.memory_space<vmem>>, vector<1x1x8x1xf32>
    %102 = vector.shape_cast %101 : vector<1x1x8x1xf32> to vector<8x1xf32>
    %cst_86 = arith.constant dense<0.000000e+00> : vector<16x1xf32>
    %103 = tpu.matmul %97, %102, %cst_86 {dimension_numbers = #tpu.dot_dimension_numbers<[1], [0], [0], [1], [0, 0, 1, 1], [], []>} : vector<16x8xf32>, vector<8x1xf32>, vector<16x1xf32> -> vector<16x1xf32>
    %104 = vector.shape_cast %100 : vector<16x8xf32> to vector<2x8x8xf32>
    "tpu.trace_start"() <{level = 10 : i32, message = "blm,bmd->bld"}> : () -> ()
    %cst_87 = arith.constant dense<0.000000e+00> : vector<2x8x32xf32>
    %105 = tpu.matmul %104, %2, %cst_87 {dimension_numbers = #tpu.dot_dimension_numbers<[2], [1], [1], [2], [0, 0, 0, 1, 1, 2], [0], [0]>} : vector<2x8x8xf32>, vector<2x8x32xf32>, vector<2x8x32xf32> -> vector<2x8x32xf32>
    "tpu.trace_stop"() : () -> ()
    %106 = vector.shape_cast %105 : vector<2x8x32xf32> to vector<16x32xf32>
    %107 = vector.broadcast %103 : vector<16x1xf32> to vector<16x32xf32>
    %108 = arith.addf %106, %107 : vector<16x32xf32>
    %109 = arith.addf %72, %108 : vector<16x32xf32>
    %c0_88 = arith.constant 0 : index
    %c1_89 = arith.constant 1 : index
    %c0_90 = arith.constant 0 : index
    %c0_91 = arith.constant 0 : index
    %110 = vector.load %arg10[%c0_88, %c1_89, %c0_90, %c0_91] : memref<2x3x8x32xf32, #tpu.memory_space<vmem>>, vector<1x1x8x32xf32>
    %111 = vector.shape_cast %110 : vector<1x1x8x32xf32> to vector<8x32xf32>
    %c0_92 = arith.constant 0 : index
    %c1_93 = arith.constant 1 : index
    %c0_94 = arith.constant 0 : index
    %c0_95 = arith.constant 0 : index
    %112 = vector.load %arg11[%c0_92, %c1_93, %c0_94, %c0_95] : memref<2x3x8x32xf32, #tpu.memory_space<vmem>>, vector<1x1x8x32xf32>
    %113 = vector.shape_cast %112 : vector<1x1x8x32xf32> to vector<8x32xf32>
    %114 = vector.shape_cast %109 : vector<16x32xf32> to vector<2x8x32xf32>
    %cst_96 = arith.constant dense<0.000000e+00> : vector<2x8xf32>
    %115 = vector.multi_reduction <add>, %114, %cst_96 [2] : vector<2x8x32xf32> to vector<2x8xf32>
    %116 = vector.shape_cast %115 : vector<2x8xf32> to vector<2x8x1xf32>
    %cst_97 = arith.constant dense<0.000000e+00> : vector<2x1xf32>
    %117 = vector.multi_reduction <add>, %116, %cst_97 [1] : vector<2x8x1xf32> to vector<2x1xf32>
    %118 = vector.shape_cast %117 : vector<2x1xf32> to vector<2x1x1xf32>
    %cst_98 = arith.constant 3.906250e-03 : f32
    %119 = vector.broadcast %cst_98 : f32 to vector<2x1x1xf32>
    %120 = arith.mulf %118, %119 : vector<2x1x1xf32>
    %121 = vector.broadcast %120 : vector<2x1x1xf32> to vector<2x8x32xf32>
    %122 = arith.subf %114, %121 : vector<2x8x32xf32>
    %123 = arith.mulf %122, %122 : vector<2x8x32xf32>
    %cst_99 = arith.constant dense<0.000000e+00> : vector<2x8xf32>
    %124 = vector.multi_reduction <add>, %123, %cst_99 [2] : vector<2x8x32xf32> to vector<2x8xf32>
    %125 = vector.shape_cast %124 : vector<2x8xf32> to vector<2x8x1xf32>
    %cst_100 = arith.constant dense<0.000000e+00> : vector<2x1xf32>
    %126 = vector.multi_reduction <add>, %125, %cst_100 [1] : vector<2x8x1xf32> to vector<2x1xf32>
    %127 = vector.shape_cast %126 : vector<2x1xf32> to vector<2x1x1xf32>
    %cst_101 = arith.constant 3.906250e-03 : f32
    %128 = vector.broadcast %cst_101 : f32 to vector<2x1x1xf32>
    %129 = arith.mulf %127, %128 : vector<2x1x1xf32>
    %cst_102 = arith.constant 9.99999974E-6 : f32
    %130 = vector.broadcast %cst_102 : f32 to vector<2x1x1xf32>
    %131 = arith.addf %129, %130 : vector<2x1x1xf32>
    %132 = math.rsqrt %131 : vector<2x1x1xf32>
    %133 = vector.broadcast %132 : vector<2x1x1xf32> to vector<2x8x32xf32>
    %134 = arith.mulf %122, %133 : vector<2x8x32xf32>
    %135 = vector.shape_cast %111 : vector<8x32xf32> to vector<1x8x32xf32>
    %136 = vector.broadcast %135 : vector<1x8x32xf32> to vector<2x8x32xf32>
    %137 = arith.mulf %134, %136 : vector<2x8x32xf32>
    %138 = vector.shape_cast %113 : vector<8x32xf32> to vector<1x8x32xf32>
    %139 = vector.broadcast %138 : vector<1x8x32xf32> to vector<2x8x32xf32>
    %140 = arith.addf %137, %139 : vector<2x8x32xf32>
    %141 = vector.shape_cast %140 : vector<2x8x32xf32> to vector<16x32xf32>
    %c0_103 = arith.constant 0 : index
    %c0_104 = arith.constant 0 : index
    %c0_105 = arith.constant 0 : index
    %142 = vector.load %arg12[%c0_103, %c0_104, %c0_105] : memref<2x32x64xf32, #tpu.memory_space<vmem>>, vector<1x32x64xf32>
    %143 = vector.shape_cast %142 : vector<1x32x64xf32> to vector<32x64xf32>
    %cst_106 = arith.constant dense<0.000000e+00> : vector<16x64xf32>
    %144 = tpu.matmul %141, %143, %cst_106 {dimension_numbers = #tpu.dot_dimension_numbers<[1], [0], [0], [1], [0, 0, 1, 1], [], []>} : vector<16x32xf32>, vector<32x64xf32>, vector<16x64xf32> -> vector<16x64xf32>
    %c0_107 = arith.constant 0 : index
    %c0_108 = arith.constant 0 : index
    %c0_109 = arith.constant 0 : index
    %145 = vector.load %arg13[%c0_107, %c0_108, %c0_109] : memref<2x1x64xf32, #tpu.memory_space<vmem>>, vector<1x1x64xf32>
    %146 = vector.shape_cast %145 : vector<1x1x64xf32> to vector<1x64xf32>
    %147 = vector.broadcast %146 : vector<1x64xf32> to vector<16x64xf32>
    %148 = arith.addf %144, %147 : vector<16x64xf32>
    %cst_110 = arith.constant 0.000000e+00 : f32
    %149 = vector.broadcast %cst_110 : f32 to vector<16x64xf32>
    %150 = arith.maximumf %148, %149 : vector<16x64xf32>
    %c0_111 = arith.constant 0 : index
    %c0_112 = arith.constant 0 : index
    %c0_113 = arith.constant 0 : index
    %151 = vector.load %arg14[%c0_111, %c0_112, %c0_113] : memref<2x64x32xf32, #tpu.memory_space<vmem>>, vector<1x64x32xf32>
    %152 = vector.shape_cast %151 : vector<1x64x32xf32> to vector<64x32xf32>
    %cst_114 = arith.constant dense<0.000000e+00> : vector<16x32xf32>
    %153 = tpu.matmul %150, %152, %cst_114 {dimension_numbers = #tpu.dot_dimension_numbers<[1], [0], [0], [1], [0, 0, 1, 1], [], []>} : vector<16x64xf32>, vector<64x32xf32>, vector<16x32xf32> -> vector<16x32xf32>
    %c0_115 = arith.constant 0 : index
    %c0_116 = arith.constant 0 : index
    %c0_117 = arith.constant 0 : index
    %154 = vector.load %arg15[%c0_115, %c0_116, %c0_117] : memref<2x1x32xf32, #tpu.memory_space<vmem>>, vector<1x1x32xf32>
    %155 = vector.shape_cast %154 : vector<1x1x32xf32> to vector<1x32xf32>
    %156 = vector.broadcast %155 : vector<1x32xf32> to vector<16x32xf32>
    %157 = arith.addf %153, %156 : vector<16x32xf32>
    %158 = arith.addf %141, %157 : vector<16x32xf32>
    %c0_118 = arith.constant 0 : index
    %c2 = arith.constant 2 : index
    %c0_119 = arith.constant 0 : index
    %c0_120 = arith.constant 0 : index
    %159 = vector.load %arg10[%c0_118, %c2, %c0_119, %c0_120] : memref<2x3x8x32xf32, #tpu.memory_space<vmem>>, vector<1x1x8x32xf32>
    %160 = vector.shape_cast %159 : vector<1x1x8x32xf32> to vector<8x32xf32>
    %c0_121 = arith.constant 0 : index
    %c2_122 = arith.constant 2 : index
    %c0_123 = arith.constant 0 : index
    %c0_124 = arith.constant 0 : index
    %161 = vector.load %arg11[%c0_121, %c2_122, %c0_123, %c0_124] : memref<2x3x8x32xf32, #tpu.memory_space<vmem>>, vector<1x1x8x32xf32>
    %162 = vector.shape_cast %161 : vector<1x1x8x32xf32> to vector<8x32xf32>
    %163 = vector.shape_cast %158 : vector<16x32xf32> to vector<2x8x32xf32>
    %cst_125 = arith.constant dense<0.000000e+00> : vector<2x8xf32>
    %164 = vector.multi_reduction <add>, %163, %cst_125 [2] : vector<2x8x32xf32> to vector<2x8xf32>
    %165 = vector.shape_cast %164 : vector<2x8xf32> to vector<2x8x1xf32>
    %cst_126 = arith.constant dense<0.000000e+00> : vector<2x1xf32>
    %166 = vector.multi_reduction <add>, %165, %cst_126 [1] : vector<2x8x1xf32> to vector<2x1xf32>
    %167 = vector.shape_cast %166 : vector<2x1xf32> to vector<2x1x1xf32>
    %cst_127 = arith.constant 3.906250e-03 : f32
    %168 = vector.broadcast %cst_127 : f32 to vector<2x1x1xf32>
    %169 = arith.mulf %167, %168 : vector<2x1x1xf32>
    %170 = vector.broadcast %169 : vector<2x1x1xf32> to vector<2x8x32xf32>
    %171 = arith.subf %163, %170 : vector<2x8x32xf32>
    %172 = arith.mulf %171, %171 : vector<2x8x32xf32>
    %cst_128 = arith.constant dense<0.000000e+00> : vector<2x8xf32>
    %173 = vector.multi_reduction <add>, %172, %cst_128 [2] : vector<2x8x32xf32> to vector<2x8xf32>
    %174 = vector.shape_cast %173 : vector<2x8xf32> to vector<2x8x1xf32>
    %cst_129 = arith.constant dense<0.000000e+00> : vector<2x1xf32>
    %175 = vector.multi_reduction <add>, %174, %cst_129 [1] : vector<2x8x1xf32> to vector<2x1xf32>
    %176 = vector.shape_cast %175 : vector<2x1xf32> to vector<2x1x1xf32>
    %cst_130 = arith.constant 3.906250e-03 : f32
    %177 = vector.broadcast %cst_130 : f32 to vector<2x1x1xf32>
    %178 = arith.mulf %176, %177 : vector<2x1x1xf32>
    %cst_131 = arith.constant 9.99999974E-6 : f32
    %179 = vector.broadcast %cst_131 : f32 to vector<2x1x1xf32>
    %180 = arith.addf %178, %179 : vector<2x1x1xf32>
    %181 = math.rsqrt %180 : vector<2x1x1xf32>
    %182 = vector.broadcast %181 : vector<2x1x1xf32> to vector<2x8x32xf32>
    %183 = arith.mulf %171, %182 : vector<2x8x32xf32>
    %184 = vector.shape_cast %160 : vector<8x32xf32> to vector<1x8x32xf32>
    %185 = vector.broadcast %184 : vector<1x8x32xf32> to vector<2x8x32xf32>
    %186 = arith.mulf %183, %185 : vector<2x8x32xf32>
    %187 = vector.shape_cast %162 : vector<8x32xf32> to vector<1x8x32xf32>
    %188 = vector.broadcast %187 : vector<1x8x32xf32> to vector<2x8x32xf32>
    %189 = arith.addf %186, %188 : vector<2x8x32xf32>
    %190 = vector.shape_cast %189 : vector<2x8x32xf32> to vector<16x32xf32>
    %191 = vector.shape_cast %190 : vector<16x32xf32> to vector<2x8x32xf32>
    %c1_132 = arith.constant 1 : index
    %c0_133 = arith.constant 0 : index
    %c0_134 = arith.constant 0 : index
    %c0_135 = arith.constant 0 : index
    %192 = vector.load %arg3[%c1_132, %c0_133, %c0_134, %c0_135] : memref<2x2x32x32xf32, #tpu.memory_space<vmem>>, vector<1x1x32x32xf32>
    %193 = vector.shape_cast %192 : vector<1x1x32x32xf32> to vector<32x32xf32>
    %cst_136 = arith.constant dense<0.000000e+00> : vector<16x32xf32>
    %194 = tpu.matmul %190, %193, %cst_136 {dimension_numbers = #tpu.dot_dimension_numbers<[1], [0], [0], [1], [0, 0, 1, 1], [], []>} : vector<16x32xf32>, vector<32x32xf32>, vector<16x32xf32> -> vector<16x32xf32>
    %c1_137 = arith.constant 1 : index
    %c0_138 = arith.constant 0 : index
    %c0_139 = arith.constant 0 : index
    %c0_140 = arith.constant 0 : index
    %195 = vector.load %arg4[%c1_137, %c0_138, %c0_139, %c0_140] : memref<2x2x1x32xf32, #tpu.memory_space<vmem>>, vector<1x1x1x32xf32>
    %196 = vector.shape_cast %195 : vector<1x1x1x32xf32> to vector<1x32xf32>
    %197 = vector.broadcast %196 : vector<1x32xf32> to vector<16x32xf32>
    %198 = arith.addf %194, %197 : vector<16x32xf32>
    %199 = arith.mulf %198, %198 : vector<16x32xf32>
    %c1_141 = arith.constant 1 : index
    %c0_142 = arith.constant 0 : index
    %c0_143 = arith.constant 0 : index
    %c0_144 = arith.constant 0 : index
    %200 = vector.load %arg7[%c1_141, %c0_142, %c0_143, %c0_144] : memref<2x2x32x8xf32, #tpu.memory_space<vmem>>, vector<1x1x32x8xf32>
    %201 = vector.shape_cast %200 : vector<1x1x32x8xf32> to vector<32x8xf32>
    %cst_145 = arith.constant dense<0.000000e+00> : vector<16x8xf32>
    %202 = tpu.matmul %199, %201, %cst_145 {dimension_numbers = #tpu.dot_dimension_numbers<[1], [0], [0], [1], [0, 0, 1, 1], [], []>} : vector<16x32xf32>, vector<32x8xf32>, vector<16x8xf32> -> vector<16x8xf32>
    %c1_146 = arith.constant 1 : index
    %c0_147 = arith.constant 0 : index
    %c0_148 = arith.constant 0 : index
    %c0_149 = arith.constant 0 : index
    %203 = vector.load %arg8[%c1_146, %c0_147, %c0_148, %c0_149] : memref<2x2x32x8xf32, #tpu.memory_space<vmem>>, vector<1x1x32x8xf32>
    %204 = vector.shape_cast %203 : vector<1x1x32x8xf32> to vector<32x8xf32>
    %cst_150 = arith.constant dense<0.000000e+00> : vector<16x8xf32>
    %205 = tpu.matmul %198, %204, %cst_150 {dimension_numbers = #tpu.dot_dimension_numbers<[1], [0], [0], [1], [0, 0, 1, 1], [], []>} : vector<16x32xf32>, vector<32x8xf32>, vector<16x8xf32> -> vector<16x8xf32>
    %206 = arith.addf %202, %205 : vector<16x8xf32>
    %c1_151 = arith.constant 1 : index
    %c0_152 = arith.constant 0 : index
    %c0_153 = arith.constant 0 : index
    %c0_154 = arith.constant 0 : index
    %207 = vector.load %arg9[%c1_151, %c0_152, %c0_153, %c0_154] : memref<2x2x1x8xf32, #tpu.memory_space<vmem>>, vector<1x1x1x8xf32>
    %208 = vector.shape_cast %207 : vector<1x1x1x8xf32> to vector<1x8xf32>
    %209 = vector.broadcast %208 : vector<1x8xf32> to vector<16x8xf32>
    %210 = arith.addf %206, %209 : vector<16x8xf32>
    %211 = math.exp %210 : vector<16x8xf32>
    %cst_155 = arith.constant dense<0.000000e+00> : vector<16xf32>
    %212 = vector.multi_reduction <add>, %211, %cst_155 [1] : vector<16x8xf32> to vector<16xf32>
    %213 = vector.shape_cast %212 : vector<16xf32> to vector<16x1xf32>
    %214 = tpu.reciprocal %213 {approx = true} : vector<16x1xf32> -> vector<16x1xf32>
    %215 = vector.broadcast %214 : vector<16x1xf32> to vector<16x8xf32>
    %216 = arith.mulf %211, %215 : vector<16x8xf32>
    %c1_156 = arith.constant 1 : index
    %c0_157 = arith.constant 0 : index
    %c0_158 = arith.constant 0 : index
    %c0_159 = arith.constant 0 : index
    %217 = vector.load %arg5[%c1_156, %c0_157, %c0_158, %c0_159] : memref<2x2x8x8xf32, #tpu.memory_space<vmem>>, vector<1x1x8x8xf32>
    %218 = vector.shape_cast %217 : vector<1x1x8x8xf32> to vector<8x8xf32>
    %cst_160 = arith.constant dense<0.000000e+00> : vector<16x8xf32>
    %219 = tpu.matmul %216, %218, %cst_160 {dimension_numbers = #tpu.dot_dimension_numbers<[1], [0], [0], [1], [0, 0, 1, 1], [], []>} : vector<16x8xf32>, vector<8x8xf32>, vector<16x8xf32> -> vector<16x8xf32>
    %c1_161 = arith.constant 1 : index
    %c0_162 = arith.constant 0 : index
    %c0_163 = arith.constant 0 : index
    %c0_164 = arith.constant 0 : index
    %220 = vector.load %arg6[%c1_161, %c0_162, %c0_163, %c0_164] : memref<2x2x8x1xf32, #tpu.memory_space<vmem>>, vector<1x1x8x1xf32>
    %221 = vector.shape_cast %220 : vector<1x1x8x1xf32> to vector<8x1xf32>
    %cst_165 = arith.constant dense<0.000000e+00> : vector<16x1xf32>
    %222 = tpu.matmul %216, %221, %cst_165 {dimension_numbers = #tpu.dot_dimension_numbers<[1], [0], [0], [1], [0, 0, 1, 1], [], []>} : vector<16x8xf32>, vector<8x1xf32>, vector<16x1xf32> -> vector<16x1xf32>
    %223 = vector.shape_cast %219 : vector<16x8xf32> to vector<2x8x8xf32>
    "tpu.trace_start"() <{level = 10 : i32, message = "blm,bmd->bld"}> : () -> ()
    %cst_166 = arith.constant dense<0.000000e+00> : vector<2x8x32xf32>
    %224 = tpu.matmul %223, %191, %cst_166 {dimension_numbers = #tpu.dot_dimension_numbers<[2], [1], [1], [2], [0, 0, 0, 1, 1, 2], [0], [0]>} : vector<2x8x8xf32>, vector<2x8x32xf32>, vector<2x8x32xf32> -> vector<2x8x32xf32>
    "tpu.trace_stop"() : () -> ()
    %225 = vector.shape_cast %224 : vector<2x8x32xf32> to vector<16x32xf32>
    %226 = vector.broadcast %222 : vector<16x1xf32> to vector<16x32xf32>
    %227 = arith.addf %225, %226 : vector<16x32xf32>
    %228 = arith.addf %190, %227 : vector<16x32xf32>
    %c1_167 = arith.constant 1 : index
    %c0_168 = arith.constant 0 : index
    %c0_169 = arith.constant 0 : index
    %c0_170 = arith.constant 0 : index
    %229 = vector.load %arg10[%c1_167, %c0_168, %c0_169, %c0_170] : memref<2x3x8x32xf32, #tpu.memory_space<vmem>>, vector<1x1x8x32xf32>
    %230 = vector.shape_cast %229 : vector<1x1x8x32xf32> to vector<8x32xf32>
    %c1_171 = arith.constant 1 : index
    %c0_172 = arith.constant 0 : index
    %c0_173 = arith.constant 0 : index
    %c0_174 = arith.constant 0 : index
    %231 = vector.load %arg11[%c1_171, %c0_172, %c0_173, %c0_174] : memref<2x3x8x32xf32, #tpu.memory_space<vmem>>, vector<1x1x8x32xf32>
    %232 = vector.shape_cast %231 : vector<1x1x8x32xf32> to vector<8x32xf32>
    %233 = vector.shape_cast %228 : vector<16x32xf32> to vector<2x8x32xf32>
    %cst_175 = arith.constant dense<0.000000e+00> : vector<2x8xf32>
    %234 = vector.multi_reduction <add>, %233, %cst_175 [2] : vector<2x8x32xf32> to vector<2x8xf32>
    %235 = vector.shape_cast %234 : vector<2x8xf32> to vector<2x8x1xf32>
    %cst_176 = arith.constant dense<0.000000e+00> : vector<2x1xf32>
    %236 = vector.multi_reduction <add>, %235, %cst_176 [1] : vector<2x8x1xf32> to vector<2x1xf32>
    %237 = vector.shape_cast %236 : vector<2x1xf32> to vector<2x1x1xf32>
    %cst_177 = arith.constant 3.906250e-03 : f32
    %238 = vector.broadcast %cst_177 : f32 to vector<2x1x1xf32>
    %239 = arith.mulf %237, %238 : vector<2x1x1xf32>
    %240 = vector.broadcast %239 : vector<2x1x1xf32> to vector<2x8x32xf32>
    %241 = arith.subf %233, %240 : vector<2x8x32xf32>
    %242 = arith.mulf %241, %241 : vector<2x8x32xf32>
    %cst_178 = arith.constant dense<0.000000e+00> : vector<2x8xf32>
    %243 = vector.multi_reduction <add>, %242, %cst_178 [2] : vector<2x8x32xf32> to vector<2x8xf32>
    %244 = vector.shape_cast %243 : vector<2x8xf32> to vector<2x8x1xf32>
    %cst_179 = arith.constant dense<0.000000e+00> : vector<2x1xf32>
    %245 = vector.multi_reduction <add>, %244, %cst_179 [1] : vector<2x8x1xf32> to vector<2x1xf32>
    %246 = vector.shape_cast %245 : vector<2x1xf32> to vector<2x1x1xf32>
    %cst_180 = arith.constant 3.906250e-03 : f32
    %247 = vector.broadcast %cst_180 : f32 to vector<2x1x1xf32>
    %248 = arith.mulf %246, %247 : vector<2x1x1xf32>
    %cst_181 = arith.constant 9.99999974E-6 : f32
    %249 = vector.broadcast %cst_181 : f32 to vector<2x1x1xf32>
    %250 = arith.addf %248, %249 : vector<2x1x1xf32>
    %251 = math.rsqrt %250 : vector<2x1x1xf32>
    %252 = vector.broadcast %251 : vector<2x1x1xf32> to vector<2x8x32xf32>
    %253 = arith.mulf %241, %252 : vector<2x8x32xf32>
    %254 = vector.shape_cast %230 : vector<8x32xf32> to vector<1x8x32xf32>
    %255 = vector.broadcast %254 : vector<1x8x32xf32> to vector<2x8x32xf32>
    %256 = arith.mulf %253, %255 : vector<2x8x32xf32>
    %257 = vector.shape_cast %232 : vector<8x32xf32> to vector<1x8x32xf32>
    %258 = vector.broadcast %257 : vector<1x8x32xf32> to vector<2x8x32xf32>
    %259 = arith.addf %256, %258 : vector<2x8x32xf32>
    %260 = vector.shape_cast %259 : vector<2x8x32xf32> to vector<16x32xf32>
    %c1_182 = arith.constant 1 : index
    %c1_183 = arith.constant 1 : index
    %c0_184 = arith.constant 0 : index
    %c0_185 = arith.constant 0 : index
    %261 = vector.load %arg3[%c1_182, %c1_183, %c0_184, %c0_185] : memref<2x2x32x32xf32, #tpu.memory_space<vmem>>, vector<1x1x32x32xf32>
    %262 = vector.shape_cast %261 : vector<1x1x32x32xf32> to vector<32x32xf32>
    %cst_186 = arith.constant dense<0.000000e+00> : vector<16x32xf32>
    %263 = tpu.matmul %260, %262, %cst_186 {dimension_numbers = #tpu.dot_dimension_numbers<[1], [0], [0], [1], [0, 0, 1, 1], [], []>} : vector<16x32xf32>, vector<32x32xf32>, vector<16x32xf32> -> vector<16x32xf32>
    %c1_187 = arith.constant 1 : index
    %c1_188 = arith.constant 1 : index
    %c0_189 = arith.constant 0 : index
    %c0_190 = arith.constant 0 : index
    %264 = vector.load %arg4[%c1_187, %c1_188, %c0_189, %c0_190] : memref<2x2x1x32xf32, #tpu.memory_space<vmem>>, vector<1x1x1x32xf32>
    %265 = vector.shape_cast %264 : vector<1x1x1x32xf32> to vector<1x32xf32>
    %266 = vector.broadcast %265 : vector<1x32xf32> to vector<16x32xf32>
    %267 = arith.addf %263, %266 : vector<16x32xf32>
    %268 = arith.mulf %267, %267 : vector<16x32xf32>
    %c1_191 = arith.constant 1 : index
    %c1_192 = arith.constant 1 : index
    %c0_193 = arith.constant 0 : index
    %c0_194 = arith.constant 0 : index
    %269 = vector.load %arg7[%c1_191, %c1_192, %c0_193, %c0_194] : memref<2x2x32x8xf32, #tpu.memory_space<vmem>>, vector<1x1x32x8xf32>
    %270 = vector.shape_cast %269 : vector<1x1x32x8xf32> to vector<32x8xf32>
    %cst_195 = arith.constant dense<0.000000e+00> : vector<16x8xf32>
    %271 = tpu.matmul %268, %270, %cst_195 {dimension_numbers = #tpu.dot_dimension_numbers<[1], [0], [0], [1], [0, 0, 1, 1], [], []>} : vector<16x32xf32>, vector<32x8xf32>, vector<16x8xf32> -> vector<16x8xf32>
    %c1_196 = arith.constant 1 : index
    %c1_197 = arith.constant 1 : index
    %c0_198 = arith.constant 0 : index
    %c0_199 = arith.constant 0 : index
    %272 = vector.load %arg8[%c1_196, %c1_197, %c0_198, %c0_199] : memref<2x2x32x8xf32, #tpu.memory_space<vmem>>, vector<1x1x32x8xf32>
    %273 = vector.shape_cast %272 : vector<1x1x32x8xf32> to vector<32x8xf32>
    %cst_200 = arith.constant dense<0.000000e+00> : vector<16x8xf32>
    %274 = tpu.matmul %267, %273, %cst_200 {dimension_numbers = #tpu.dot_dimension_numbers<[1], [0], [0], [1], [0, 0, 1, 1], [], []>} : vector<16x32xf32>, vector<32x8xf32>, vector<16x8xf32> -> vector<16x8xf32>
    %275 = arith.addf %271, %274 : vector<16x8xf32>
    %c1_201 = arith.constant 1 : index
    %c1_202 = arith.constant 1 : index
    %c0_203 = arith.constant 0 : index
    %c0_204 = arith.constant 0 : index
    %276 = vector.load %arg9[%c1_201, %c1_202, %c0_203, %c0_204] : memref<2x2x1x8xf32, #tpu.memory_space<vmem>>, vector<1x1x1x8xf32>
    %277 = vector.shape_cast %276 : vector<1x1x1x8xf32> to vector<1x8xf32>
    %278 = vector.broadcast %277 : vector<1x8xf32> to vector<16x8xf32>
    %279 = arith.addf %275, %278 : vector<16x8xf32>
    %280 = math.exp %279 : vector<16x8xf32>
    %cst_205 = arith.constant dense<0.000000e+00> : vector<16xf32>
    %281 = vector.multi_reduction <add>, %280, %cst_205 [1] : vector<16x8xf32> to vector<16xf32>
    %282 = vector.shape_cast %281 : vector<16xf32> to vector<16x1xf32>
    %283 = tpu.reciprocal %282 {approx = true} : vector<16x1xf32> -> vector<16x1xf32>
    %284 = vector.broadcast %283 : vector<16x1xf32> to vector<16x8xf32>
    %285 = arith.mulf %280, %284 : vector<16x8xf32>
    %c1_206 = arith.constant 1 : index
    %c1_207 = arith.constant 1 : index
    %c0_208 = arith.constant 0 : index
    %c0_209 = arith.constant 0 : index
    %286 = vector.load %arg5[%c1_206, %c1_207, %c0_208, %c0_209] : memref<2x2x8x8xf32, #tpu.memory_space<vmem>>, vector<1x1x8x8xf32>
    %287 = vector.shape_cast %286 : vector<1x1x8x8xf32> to vector<8x8xf32>
    %cst_210 = arith.constant dense<0.000000e+00> : vector<16x8xf32>
    %288 = tpu.matmul %285, %287, %cst_210 {dimension_numbers = #tpu.dot_dimension_numbers<[1], [0], [0], [1], [0, 0, 1, 1], [], []>} : vector<16x8xf32>, vector<8x8xf32>, vector<16x8xf32> -> vector<16x8xf32>
    %c1_211 = arith.constant 1 : index
    %c1_212 = arith.constant 1 : index
    %c0_213 = arith.constant 0 : index
    %c0_214 = arith.constant 0 : index
    %289 = vector.load %arg6[%c1_211, %c1_212, %c0_213, %c0_214] : memref<2x2x8x1xf32, #tpu.memory_space<vmem>>, vector<1x1x8x1xf32>
    %290 = vector.shape_cast %289 : vector<1x1x8x1xf32> to vector<8x1xf32>
    %cst_215 = arith.constant dense<0.000000e+00> : vector<16x1xf32>
    %291 = tpu.matmul %285, %290, %cst_215 {dimension_numbers = #tpu.dot_dimension_numbers<[1], [0], [0], [1], [0, 0, 1, 1], [], []>} : vector<16x8xf32>, vector<8x1xf32>, vector<16x1xf32> -> vector<16x1xf32>
    %292 = vector.shape_cast %288 : vector<16x8xf32> to vector<2x8x8xf32>
    "tpu.trace_start"() <{level = 10 : i32, message = "blm,bmd->bld"}> : () -> ()
    %cst_216 = arith.constant dense<0.000000e+00> : vector<2x8x32xf32>
    %293 = tpu.matmul %292, %2, %cst_216 {dimension_numbers = #tpu.dot_dimension_numbers<[2], [1], [1], [2], [0, 0, 0, 1, 1, 2], [0], [0]>} : vector<2x8x8xf32>, vector<2x8x32xf32>, vector<2x8x32xf32> -> vector<2x8x32xf32>
    "tpu.trace_stop"() : () -> ()
    %294 = vector.shape_cast %293 : vector<2x8x32xf32> to vector<16x32xf32>
    %295 = vector.broadcast %291 : vector<16x1xf32> to vector<16x32xf32>
    %296 = arith.addf %294, %295 : vector<16x32xf32>
    %297 = arith.addf %260, %296 : vector<16x32xf32>
    %c1_217 = arith.constant 1 : index
    %c1_218 = arith.constant 1 : index
    %c0_219 = arith.constant 0 : index
    %c0_220 = arith.constant 0 : index
    %298 = vector.load %arg10[%c1_217, %c1_218, %c0_219, %c0_220] : memref<2x3x8x32xf32, #tpu.memory_space<vmem>>, vector<1x1x8x32xf32>
    %299 = vector.shape_cast %298 : vector<1x1x8x32xf32> to vector<8x32xf32>
    %c1_221 = arith.constant 1 : index
    %c1_222 = arith.constant 1 : index
    %c0_223 = arith.constant 0 : index
    %c0_224 = arith.constant 0 : index
    %300 = vector.load %arg11[%c1_221, %c1_222, %c0_223, %c0_224] : memref<2x3x8x32xf32, #tpu.memory_space<vmem>>, vector<1x1x8x32xf32>
    %301 = vector.shape_cast %300 : vector<1x1x8x32xf32> to vector<8x32xf32>
    %302 = vector.shape_cast %297 : vector<16x32xf32> to vector<2x8x32xf32>
    %cst_225 = arith.constant dense<0.000000e+00> : vector<2x8xf32>
    %303 = vector.multi_reduction <add>, %302, %cst_225 [2] : vector<2x8x32xf32> to vector<2x8xf32>
    %304 = vector.shape_cast %303 : vector<2x8xf32> to vector<2x8x1xf32>
    %cst_226 = arith.constant dense<0.000000e+00> : vector<2x1xf32>
    %305 = vector.multi_reduction <add>, %304, %cst_226 [1] : vector<2x8x1xf32> to vector<2x1xf32>
    %306 = vector.shape_cast %305 : vector<2x1xf32> to vector<2x1x1xf32>
    %cst_227 = arith.constant 3.906250e-03 : f32
    %307 = vector.broadcast %cst_227 : f32 to vector<2x1x1xf32>
    %308 = arith.mulf %306, %307 : vector<2x1x1xf32>
    %309 = vector.broadcast %308 : vector<2x1x1xf32> to vector<2x8x32xf32>
    %310 = arith.subf %302, %309 : vector<2x8x32xf32>
    %311 = arith.mulf %310, %310 : vector<2x8x32xf32>
    %cst_228 = arith.constant dense<0.000000e+00> : vector<2x8xf32>
    %312 = vector.multi_reduction <add>, %311, %cst_228 [2] : vector<2x8x32xf32> to vector<2x8xf32>
    %313 = vector.shape_cast %312 : vector<2x8xf32> to vector<2x8x1xf32>
    %cst_229 = arith.constant dense<0.000000e+00> : vector<2x1xf32>
    %314 = vector.multi_reduction <add>, %313, %cst_229 [1] : vector<2x8x1xf32> to vector<2x1xf32>
    %315 = vector.shape_cast %314 : vector<2x1xf32> to vector<2x1x1xf32>
    %cst_230 = arith.constant 3.906250e-03 : f32
    %316 = vector.broadcast %cst_230 : f32 to vector<2x1x1xf32>
    %317 = arith.mulf %315, %316 : vector<2x1x1xf32>
    %cst_231 = arith.constant 9.99999974E-6 : f32
    %318 = vector.broadcast %cst_231 : f32 to vector<2x1x1xf32>
    %319 = arith.addf %317, %318 : vector<2x1x1xf32>
    %320 = math.rsqrt %319 : vector<2x1x1xf32>
    %321 = vector.broadcast %320 : vector<2x1x1xf32> to vector<2x8x32xf32>
    %322 = arith.mulf %310, %321 : vector<2x8x32xf32>
    %323 = vector.shape_cast %299 : vector<8x32xf32> to vector<1x8x32xf32>
    %324 = vector.broadcast %323 : vector<1x8x32xf32> to vector<2x8x32xf32>
    %325 = arith.mulf %322, %324 : vector<2x8x32xf32>
    %326 = vector.shape_cast %301 : vector<8x32xf32> to vector<1x8x32xf32>
    %327 = vector.broadcast %326 : vector<1x8x32xf32> to vector<2x8x32xf32>
    %328 = arith.addf %325, %327 : vector<2x8x32xf32>
    %329 = vector.shape_cast %328 : vector<2x8x32xf32> to vector<16x32xf32>
    %c1_232 = arith.constant 1 : index
    %c0_233 = arith.constant 0 : index
    %c0_234 = arith.constant 0 : index
    %330 = vector.load %arg12[%c1_232, %c0_233, %c0_234] : memref<2x32x64xf32, #tpu.memory_space<vmem>>, vector<1x32x64xf32>
    %331 = vector.shape_cast %330 : vector<1x32x64xf32> to vector<32x64xf32>
    %cst_235 = arith.constant dense<0.000000e+00> : vector<16x64xf32>
    %332 = tpu.matmul %329, %331, %cst_235 {dimension_numbers = #tpu.dot_dimension_numbers<[1], [0], [0], [1], [0, 0, 1, 1], [], []>} : vector<16x32xf32>, vector<32x64xf32>, vector<16x64xf32> -> vector<16x64xf32>
    %c1_236 = arith.constant 1 : index
    %c0_237 = arith.constant 0 : index
    %c0_238 = arith.constant 0 : index
    %333 = vector.load %arg13[%c1_236, %c0_237, %c0_238] : memref<2x1x64xf32, #tpu.memory_space<vmem>>, vector<1x1x64xf32>
    %334 = vector.shape_cast %333 : vector<1x1x64xf32> to vector<1x64xf32>
    %335 = vector.broadcast %334 : vector<1x64xf32> to vector<16x64xf32>
    %336 = arith.addf %332, %335 : vector<16x64xf32>
    %cst_239 = arith.constant 0.000000e+00 : f32
    %337 = vector.broadcast %cst_239 : f32 to vector<16x64xf32>
    %338 = arith.maximumf %336, %337 : vector<16x64xf32>
    %c1_240 = arith.constant 1 : index
    %c0_241 = arith.constant 0 : index
    %c0_242 = arith.constant 0 : index
    %339 = vector.load %arg14[%c1_240, %c0_241, %c0_242] : memref<2x64x32xf32, #tpu.memory_space<vmem>>, vector<1x64x32xf32>
    %340 = vector.shape_cast %339 : vector<1x64x32xf32> to vector<64x32xf32>
    %cst_243 = arith.constant dense<0.000000e+00> : vector<16x32xf32>
    %341 = tpu.matmul %338, %340, %cst_243 {dimension_numbers = #tpu.dot_dimension_numbers<[1], [0], [0], [1], [0, 0, 1, 1], [], []>} : vector<16x64xf32>, vector<64x32xf32>, vector<16x32xf32> -> vector<16x32xf32>
    %c1_244 = arith.constant 1 : index
    %c0_245 = arith.constant 0 : index
    %c0_246 = arith.constant 0 : index
    %342 = vector.load %arg15[%c1_244, %c0_245, %c0_246] : memref<2x1x32xf32, #tpu.memory_space<vmem>>, vector<1x1x32xf32>
    %343 = vector.shape_cast %342 : vector<1x1x32xf32> to vector<1x32xf32>
    %344 = vector.broadcast %343 : vector<1x32xf32> to vector<16x32xf32>
    %345 = arith.addf %341, %344 : vector<16x32xf32>
    %346 = arith.addf %329, %345 : vector<16x32xf32>
    %c1_247 = arith.constant 1 : index
    %c2_248 = arith.constant 2 : index
    %c0_249 = arith.constant 0 : index
    %c0_250 = arith.constant 0 : index
    %347 = vector.load %arg10[%c1_247, %c2_248, %c0_249, %c0_250] : memref<2x3x8x32xf32, #tpu.memory_space<vmem>>, vector<1x1x8x32xf32>
    %348 = vector.shape_cast %347 : vector<1x1x8x32xf32> to vector<8x32xf32>
    %c1_251 = arith.constant 1 : index
    %c2_252 = arith.constant 2 : index
    %c0_253 = arith.constant 0 : index
    %c0_254 = arith.constant 0 : index
    %349 = vector.load %arg11[%c1_251, %c2_252, %c0_253, %c0_254] : memref<2x3x8x32xf32, #tpu.memory_space<vmem>>, vector<1x1x8x32xf32>
    %350 = vector.shape_cast %349 : vector<1x1x8x32xf32> to vector<8x32xf32>
    %351 = vector.shape_cast %346 : vector<16x32xf32> to vector<2x8x32xf32>
    %cst_255 = arith.constant dense<0.000000e+00> : vector<2x8xf32>
    %352 = vector.multi_reduction <add>, %351, %cst_255 [2] : vector<2x8x32xf32> to vector<2x8xf32>
    %353 = vector.shape_cast %352 : vector<2x8xf32> to vector<2x8x1xf32>
    %cst_256 = arith.constant dense<0.000000e+00> : vector<2x1xf32>
    %354 = vector.multi_reduction <add>, %353, %cst_256 [1] : vector<2x8x1xf32> to vector<2x1xf32>
    %355 = vector.shape_cast %354 : vector<2x1xf32> to vector<2x1x1xf32>
    %cst_257 = arith.constant 3.906250e-03 : f32
    %356 = vector.broadcast %cst_257 : f32 to vector<2x1x1xf32>
    %357 = arith.mulf %355, %356 : vector<2x1x1xf32>
    %358 = vector.broadcast %357 : vector<2x1x1xf32> to vector<2x8x32xf32>
    %359 = arith.subf %351, %358 : vector<2x8x32xf32>
    %360 = arith.mulf %359, %359 : vector<2x8x32xf32>
    %cst_258 = arith.constant dense<0.000000e+00> : vector<2x8xf32>
    %361 = vector.multi_reduction <add>, %360, %cst_258 [2] : vector<2x8x32xf32> to vector<2x8xf32>
    %362 = vector.shape_cast %361 : vector<2x8xf32> to vector<2x8x1xf32>
    %cst_259 = arith.constant dense<0.000000e+00> : vector<2x1xf32>
    %363 = vector.multi_reduction <add>, %362, %cst_259 [1] : vector<2x8x1xf32> to vector<2x1xf32>
    %364 = vector.shape_cast %363 : vector<2x1xf32> to vector<2x1x1xf32>
    %cst_260 = arith.constant 3.906250e-03 : f32
    %365 = vector.broadcast %cst_260 : f32 to vector<2x1x1xf32>
    %366 = arith.mulf %364, %365 : vector<2x1x1xf32>
    %cst_261 = arith.constant 9.99999974E-6 : f32
    %367 = vector.broadcast %cst_261 : f32 to vector<2x1x1xf32>
    %368 = arith.addf %366, %367 : vector<2x1x1xf32>
    %369 = math.rsqrt %368 : vector<2x1x1xf32>
    %370 = vector.broadcast %369 : vector<2x1x1xf32> to vector<2x8x32xf32>
    %371 = arith.mulf %359, %370 : vector<2x8x32xf32>
    %372 = vector.shape_cast %348 : vector<8x32xf32> to vector<1x8x32xf32>
    %373 = vector.broadcast %372 : vector<1x8x32xf32> to vector<2x8x32xf32>
    %374 = arith.mulf %371, %373 : vector<2x8x32xf32>
    %375 = vector.shape_cast %350 : vector<8x32xf32> to vector<1x8x32xf32>
    %376 = vector.broadcast %375 : vector<1x8x32xf32> to vector<2x8x32xf32>
    %377 = arith.addf %374, %376 : vector<2x8x32xf32>
    %378 = vector.shape_cast %377 : vector<2x8x32xf32> to vector<16x32xf32>
    %379 = vector.shape_cast %378 : vector<16x32xf32> to vector<2x8x32xf32>
    %c0_262 = arith.constant 0 : index
    %c0_263 = arith.constant 0 : index
    %c0_264 = arith.constant 0 : index
    %380 = vector.load %arg16[%c0_262, %c0_263, %c0_264] : memref<2x8x32xf32, #tpu.memory_space<vmem>>, vector<2x8x32xf32>
    tpu.vector_store %arg16[%c0_262, %c0_263, %c0_264], %379 {strides = array<i32>} : memref<2x8x32xf32, #tpu.memory_space<vmem>>, vector<2x8x32xf32>,
    return
  }
  func.func @transform_0(%arg0: i32) -> (i32, i32, i32) {
    %c0_i32 = arith.constant 0 : i32
    %c0_i32_0 = arith.constant 0 : i32
    %c0_i32_1 = arith.constant 0 : i32
    return %arg0, %c0_i32, %c0_i32_0 : i32, i32, i32
  }
  func.func @transform_1(%arg0: i32) -> (i32, i32, i32) {
    %c0_i32 = arith.constant 0 : i32
    %c0_i32_0 = arith.constant 0 : i32
    %c0_i32_1 = arith.constant 0 : i32
    return %arg0, %c0_i32, %c0_i32_0 : i32, i32, i32
  }
  func.func @transform_2(%arg0: i32) -> (i32, i32, i32, i32) {
    %c0_i32 = arith.constant 0 : i32
    %c0_i32_0 = arith.constant 0 : i32
    %c0_i32_1 = arith.constant 0 : i32
    %c0_i32_2 = arith.constant 0 : i32
    %c0_i32_3 = arith.constant 0 : i32
    return %c0_i32, %c0_i32_0, %c0_i32_1, %c0_i32_2 : i32, i32, i32, i32
  }
  func.func @transform_3(%arg0: i32) -> (i32, i32, i32, i32) {
    %c0_i32 = arith.constant 0 : i32
    %c0_i32_0 = arith.constant 0 : i32
    %c0_i32_1 = arith.constant 0 : i32
    %c0_i32_2 = arith.constant 0 : i32
    %c0_i32_3 = arith.constant 0 : i32
    return %c0_i32, %c0_i32_0, %c0_i32_1, %c0_i32_2 : i32, i32, i32, i32
  }
  func.func @transform_4(%arg0: i32) -> (i32, i32, i32, i32) {
    %c0_i32 = arith.constant 0 : i32
    %c0_i32_0 = arith.constant 0 : i32
    %c0_i32_1 = arith.constant 0 : i32
    %c0_i32_2 = arith.constant 0 : i32
    %c0_i32_3 = arith.constant 0 : i32
    return %c0_i32, %c0_i32_0, %c0_i32_1, %c0_i32_2 : i32, i32, i32, i32
  }
  func.func @transform_5(%arg0: i32) -> (i32, i32, i32, i32) {
    %c0_i32 = arith.constant 0 : i32
    %c0_i32_0 = arith.constant 0 : i32
    %c0_i32_1 = arith.constant 0 : i32
    %c0_i32_2 = arith.constant 0 : i32
    %c0_i32_3 = arith.constant 0 : i32
    return %c0_i32, %c0_i32_0, %c0_i32_1, %c0_i32_2 : i32, i32, i32, i32
  }
  func.func @transform_6(%arg0: i32) -> (i32, i32, i32, i32) {
    %c0_i32 = arith.constant 0 : i32
    %c0_i32_0 = arith.constant 0 : i32
    %c0_i32_1 = arith.constant 0 : i32
    %c0_i32_2 = arith.constant 0 : i32
    %c0_i32_3 = arith.constant 0 : i32
    return %c0_i32, %c0_i32_0, %c0_i32_1, %c0_i32_2 : i32, i32, i32, i32
  }
  func.func @transform_7(%arg0: i32) -> (i32, i32, i32, i32) {
    %c0_i32 = arith.constant 0 : i32
    %c0_i32_0 = arith.constant 0 : i32
    %c0_i32_1 = arith.constant 0 : i32
    %c0_i32_2 = arith.constant 0 : i32
    %c0_i32_3 = arith.constant 0 : i32
    return %c0_i32, %c0_i32_0, %c0_i32_1, %c0_i32_2 : i32, i32, i32, i32
  }
  func.func @transform_8(%arg0: i32) -> (i32, i32, i32, i32) {
    %c0_i32 = arith.constant 0 : i32
    %c0_i32_0 = arith.constant 0 : i32
    %c0_i32_1 = arith.constant 0 : i32
    %c0_i32_2 = arith.constant 0 : i32
    %c0_i32_3 = arith.constant 0 : i32
    return %c0_i32, %c0_i32_0, %c0_i32_1, %c0_i32_2 : i32, i32, i32, i32
  }
  func.func @transform_9(%arg0: i32) -> (i32, i32, i32, i32) {
    %c0_i32 = arith.constant 0 : i32
    %c0_i32_0 = arith.constant 0 : i32
    %c0_i32_1 = arith.constant 0 : i32
    %c0_i32_2 = arith.constant 0 : i32
    %c0_i32_3 = arith.constant 0 : i32
    return %c0_i32, %c0_i32_0, %c0_i32_1, %c0_i32_2 : i32, i32, i32, i32
  }
  func.func @transform_10(%arg0: i32) -> (i32, i32, i32, i32) {
    %c0_i32 = arith.constant 0 : i32
    %c0_i32_0 = arith.constant 0 : i32
    %c0_i32_1 = arith.constant 0 : i32
    %c0_i32_2 = arith.constant 0 : i32
    %c0_i32_3 = arith.constant 0 : i32
    return %c0_i32, %c0_i32_0, %c0_i32_1, %c0_i32_2 : i32, i32, i32, i32
  }
  func.func @transform_11(%arg0: i32) -> (i32, i32, i32) {
    %c0_i32 = arith.constant 0 : i32
    %c0_i32_0 = arith.constant 0 : i32
    %c0_i32_1 = arith.constant 0 : i32
    %c0_i32_2 = arith.constant 0 : i32
    return %c0_i32, %c0_i32_0, %c0_i32_1 : i32, i32, i32
  }
  func.func @transform_12(%arg0: i32) -> (i32, i32, i32) {
    %c0_i32 = arith.constant 0 : i32
    %c0_i32_0 = arith.constant 0 : i32
    %c0_i32_1 = arith.constant 0 : i32
    %c0_i32_2 = arith.constant 0 : i32
    return %c0_i32, %c0_i32_0, %c0_i32_1 : i32, i32, i32
  }
  func.func @transform_13(%arg0: i32) -> (i32, i32, i32) {
    %c0_i32 = arith.constant 0 : i32
    %c0_i32_0 = arith.constant 0 : i32
    %c0_i32_1 = arith.constant 0 : i32
    %c0_i32_2 = arith.constant 0 : i32
    return %c0_i32, %c0_i32_0, %c0_i32_1 : i32, i32, i32
  }
  func.func @transform_14(%arg0: i32) -> (i32, i32, i32) {
    %c0_i32 = arith.constant 0 : i32
    %c0_i32_0 = arith.constant 0 : i32
    %c0_i32_1 = arith.constant 0 : i32
    %c0_i32_2 = arith.constant 0 : i32
    return %c0_i32, %c0_i32_0, %c0_i32_1 : i32, i32, i32
  }
  func.func @transform_15(%arg0: i32) -> (i32, i32, i32) {
    %c0_i32 = arith.constant 0 : i32
    %c0_i32_0 = arith.constant 0 : i32
    %c0_i32_1 = arith.constant 0 : i32
    return %arg0, %c0_i32, %c0_i32_0 : i32, i32, i32
  }
}

</mosaic_0001>

<llo_original>
// kernel: fuzzy_attention_decoder.1
$region0: #{fuzzy_attention_decoder.1}
  #allocation0 [shape = 'u32[]', space=smem, size = 0x4, offset = 0x4, fixed_abs, tag = 'smem constant byte address 0x4 - core index']
  #allocation1 [shape = 'u32[144,128]{1,0:T(1,128)}', space=vmem, size = 0x12000, scoped, tag = 'internal scratch']
  %s0 = inlined_call_operand.vmem [shape: f32[2,8,32], index: 0, kind: input, shape index: {}]
  %s1 = inlined_call_operand.vmem [shape: f32[2,8,32], index: 1, kind: input, shape index: {}]
  %s2 = inlined_call_operand.vmem [shape: f32[2,2,32,32], index: 2, kind: input, shape index: {}]
  %s3 = inlined_call_operand.vmem [shape: f32[2,2,1,32], index: 3, kind: input, shape index: {}]
  %s4 = inlined_call_operand.vmem [shape: f32[2,2,8,8], index: 4, kind: input, shape index: {}]
  %s5 = inlined_call_operand.vmem [shape: f32[2,2,8,1], index: 5, kind: input, shape index: {}]
  %s6 = inlined_call_operand.vmem [shape: f32[2,2,32,8], index: 6, kind: input, shape index: {}]
  %s7 = inlined_call_operand.vmem [shape: f32[2,2,32,8], index: 7, kind: input, shape index: {}]
  %s8 = inlined_call_operand.vmem [shape: f32[2,2,1,8], index: 8, kind: input, shape index: {}]
  %s9 = inlined_call_operand.vmem [shape: f32[2,3,8,32], index: 9, kind: input, shape index: {}]
  %s10 = inlined_call_operand.vmem [shape: f32[2,3,8,32], index: 10, kind: input, shape index: {}]
  %s11 = inlined_call_operand.vmem [shape: f32[2,32,64], index: 11, kind: input, shape index: {}]
  %s12 = inlined_call_operand.vmem [shape: f32[2,1,64], index: 12, kind: input, shape index: {}]
  %s13 = inlined_call_operand.vmem [shape: f32[2,64,32], index: 13, kind: input, shape index: {}]
  %s14 = inlined_call_operand.vmem [shape: f32[2,1,32], index: 14, kind: input, shape index: {}]
  %s15 = inlined_call_operand.hbm [shape: f32[2,8,32], index: 15, kind: output, shape index: {}]
  %s16 = sld [smem:[#allocation0]]
  $region70: #{fuzzy_attention_decoder.1} parent=0
    _
  %s18 = ssub.s32 1, %s16
  %s19 = scalar_select 0, %s18, %s16
  $region1: #{fuzzy_attention_decoder.1} parent=0
    #allocation2 [shape = 'u8[8192]{0}', space=vmem, size = 0x2000, scoped, tag = 'output window, operand 0, single buffered']
    #allocation3 [shape = 's32[1]{0}', space=sflag, size = 0x4, scoped, tag = 'scoped memory for fuzzy_attention_decoder.1']
    %20 = vsyncpa [#allocation3], 0
    // Predicated region
    $region2: #{fuzzy_attention_decoder.1} parent=1 // pred_check
      _
    $region3: #{fuzzy_attention_decoder.1} parent=1 // pred_check_branch
      %22 = sbr.rel (0) target = $region5
    $region4: #{fuzzy_attention_decoder.1} parent=1 // pred_region
      _
    $region5: #{fuzzy_attention_decoder.1} parent=1 // pred_fallthru
      _
    // Predicated region
    $region6: #{fuzzy_attention_decoder.1} parent=1 // pred_check
      _
    $region7: #{fuzzy_attention_decoder.1} parent=1 // pred_check_branch
      %24 = sbr.rel (0) target = $region9
    $region8: #{fuzzy_attention_decoder.1} parent=1 // pred_region
      _
    $region9: #{fuzzy_attention_decoder.1} parent=1 // pred_fallthru
      _
    // Predicated region
    $region10: #{fuzzy_attention_decoder.1} parent=1 // pred_check
      _
    $region11: #{fuzzy_attention_decoder.1} parent=1 // pred_check_branch
      %26 = sbr.rel (0) target = $region13
    $region12: #{fuzzy_attention_decoder.1} parent=1 // pred_region
      _
    $region13: #{fuzzy_attention_decoder.1} parent=1 // pred_fallthru
      _
    // Predicated region
    $region14: #{fuzzy_attention_decoder.1} parent=1 // pred_check
      _
    $region15: #{fuzzy_attention_decoder.1} parent=1 // pred_check_branch
      %28 = sbr.rel (0) target = $region17
    $region16: #{fuzzy_attention_decoder.1} parent=1 // pred_region
      _
    $region17: #{fuzzy_attention_decoder.1} parent=1 // pred_fallthru
      _
    // Predicated region
    $region18: #{fuzzy_attention_decoder.1} parent=1 // pred_check
      _
    $region19: #{fuzzy_attention_decoder.1} parent=1 // pred_check_branch
      %30 = sbr.rel (0) target = $region21
    $region20: #{fuzzy_attention_decoder.1} parent=1 // pred_region
      _
    $region21: #{fuzzy_attention_decoder.1} parent=1 // pred_fallthru
      _
    // Predicated region
    $region22: #{fuzzy_attention_decoder.1} parent=1 // pred_check
      _
    $region23: #{fuzzy_attention_decoder.1} parent=1 // pred_check_branch
      %32 = sbr.rel (0) target = $region25
    $region24: #{fuzzy_attention_decoder.1} parent=1 // pred_region
      _
    $region25: #{fuzzy_attention_decoder.1} parent=1 // pred_fallthru
      _
    // Predicated region
    $region26: #{fuzzy_attention_decoder.1} parent=1 // pred_check
      _
    $region27: #{fuzzy_attention_decoder.1} parent=1 // pred_check_branch
      %34 = sbr.rel (0) target = $region29
    $region28: #{fuzzy_attention_decoder.1} parent=1 // pred_region
      _
    $region29: #{fuzzy_attention_decoder.1} parent=1 // pred_fallthru
      _
    // Predicated region
    $region30: #{fuzzy_attention_decoder.1} parent=1 // pred_check
      _
    $region31: #{fuzzy_attention_decoder.1} parent=1 // pred_check_branch
      %36 = sbr.rel (0) target = $region33
    $region32: #{fuzzy_attention_decoder.1} parent=1 // pred_region
      _
    $region33: #{fuzzy_attention_decoder.1} parent=1 // pred_fallthru
      _
    // Predicated region
    $region34: #{fuzzy_attention_decoder.1} parent=1 // pred_check
      _
    $region35: #{fuzzy_attention_decoder.1} parent=1 // pred_check_branch
      %38 = sbr.rel (0) target = $region37
    $region36: #{fuzzy_attention_decoder.1} parent=1 // pred_region
      _
    $region37: #{fuzzy_attention_decoder.1} parent=1 // pred_fallthru
      _
    // Predicated region
    $region38: #{fuzzy_attention_decoder.1} parent=1 // pred_check
      _
    $region39: #{fuzzy_attention_decoder.1} parent=1 // pred_check_branch
      %40 = sbr.rel (0) target = $region41
    $region40: #{fuzzy_attention_decoder.1} parent=1 // pred_region
      _
    $region41: #{fuzzy_attention_decoder.1} parent=1 // pred_fallthru
      _
    // Predicated region
    $region42: #{fuzzy_attention_decoder.1} parent=1 // pred_check
      _
    $region43: #{fuzzy_attention_decoder.1} parent=1 // pred_check_branch
      %42 = sbr.rel (0) target = $region45
    $region44: #{fuzzy_attention_decoder.1} parent=1 // pred_region
      _
    $region45: #{fuzzy_attention_decoder.1} parent=1 // pred_fallthru
      _
    // Predicated region
    $region46: #{fuzzy_attention_decoder.1} parent=1 // pred_check
      _
    $region47: #{fuzzy_attention_decoder.1} parent=1 // pred_check_branch
      %44 = sbr.rel (0) target = $region49
    $region48: #{fuzzy_attention_decoder.1} parent=1 // pred_region
      _
    $region49: #{fuzzy_attention_decoder.1} parent=1 // pred_fallthru
      _
    // Predicated region
    $region50: #{fuzzy_attention_decoder.1} parent=1 // pred_check
      _
    $region51: #{fuzzy_attention_decoder.1} parent=1 // pred_check_branch
      %46 = sbr.rel (0) target = $region53
    $region52: #{fuzzy_attention_decoder.1} parent=1 // pred_region
      _
    $region53: #{fuzzy_attention_decoder.1} parent=1 // pred_fallthru
      _
    // Predicated region
    $region54: #{fuzzy_attention_decoder.1} parent=1 // pred_check
      _
    $region55: #{fuzzy_attention_decoder.1} parent=1 // pred_check_branch
      %48 = sbr.rel (0) target = $region57
    $region56: #{fuzzy_attention_decoder.1} parent=1 // pred_region
      _
    $region57: #{fuzzy_attention_decoder.1} parent=1 // pred_fallthru
      _
    // Predicated region
    $region58: #{fuzzy_attention_decoder.1} parent=1 // pred_check
      _
    $region59: #{fuzzy_attention_decoder.1} parent=1 // pred_check_branch
      %50 = sbr.rel (0) target = $region61
    $region60: #{fuzzy_attention_decoder.1} parent=1 // pred_region
      _
    $region61: #{fuzzy_attention_decoder.1} parent=1 // pred_fallthru
      _
    %v51 = vld [vmem:[%s0] sm:$0xff]
    %v52 = vld [vmem:[%s0 + $0x8] sm:$0xff]
    %v53 = vld [vmem:[%s1] sm:$0xff]
    %v54 = vld [vmem:[%s1 + $0x8] sm:$0xff]
    %v55 = vld [vmem:[%s2] sm:$0xff]
    %v56 = vld [vmem:[%s2 + $0x8] sm:$0xff]
    %v57 = vld [vmem:[%s2 + $0x10] sm:$0xff]
    %v58 = vld [vmem:[%s2 + $0x18] sm:$0xff]
    %v59 = vld [vmem:[%s3] sm:$0x1]
    %v61 = vlaneseq
    %v62 = vshrl.u32 %v61, 7
    %v63 = vsub.s32 0, %v62
    %v64 = vrot.slane %v59, %v63
    %vm66 = vcmask 261120
    %v68 = vsel %vm66, %v51, 0
    %v71 = vsel %vm66, %v52, 0
    %73 = vmatprep.subr.mxu0 0.0
    %74 = vmatpush1.msra.mxu0 %v55
    %75 = vmatprep.subr.mxu0 0.0
    %76 = vmatpush1.msra.mxu0 %v56
    %77 = vmatprep.subr.mxu0 0.0
    %78 = vmatpush1.msra.mxu0 %v57
    %79 = vmatprep.subr.mxu0 0.0
    %80 = vmatpush1.msra.mxu0 %v58
    %81 = vmatprep.subr.mxu0 0.0
    %82 = vmatpush1.msra.mxu0 0.0
    %83 = vmatprep.subr.mxu0 0.0
    %84 = vmatpush1.msra.mxu0 0.0
    %85 = vmatprep.subr.mxu0 0.0
    %86 = vmatpush1.msra.mxu0 0.0
    %87 = vmatprep.subr.mxu0 0.0
    %88 = vmatpush1.msra.mxu0 0.0
    %89 = vmatprep.subr.mxu0 0.0
    %90 = vmatpush1.msra.mxu0 0.0
    %91 = vmatprep.subr.mxu0 0.0
    %92 = vmatpush1.msra.mxu0 0.0
    %93 = vmatprep.subr.mxu0 0.0
    %94 = vmatpush1.msra.mxu0 0.0
    %95 = vmatprep.subr.mxu0 0.0
    %96 = vmatpush1.msra.mxu0 0.0
    %97 = vmatprep.subr.mxu0 0.0
    %98 = vmatpush1.msra.mxu0 0.0
    %99 = vmatprep.subr.mxu0 0.0
    %100 = vmatpush1.msra.mxu0 0.0
    %101 = vmatprep.subr.mxu0 0.0
    %102 = vmatpush1.msra.mxu0 0.0
    %103 = vmatprep.subr.mxu0 0.0
    %104 = vmatpush1.msra.mxu0 0.0
    %105 = vmatprep.subr.mxu0 0.0
    %106 = vmatpush1.msra.mxu0 0.0
    %107 = vmatprep.subr.mxu0 0.0
    %108 = vmatpush1.msra.mxu0 0.0
    %109 = vmatprep.subr.mxu0 0.0
    %110 = vmatpush1.msra.mxu0 0.0
    %111 = vmatprep.subr.mxu0 0.0
    %112 = vmatpush1.msra.mxu0 0.0
    %113 = vmatprep.subr.mxu0 0.0
    %114 = vmatpush1.msra.mxu0 0.0
    %115 = vmatprep.subr.mxu0 0.0
    %116 = vmatpush1.msra.mxu0 0.0
    %117 = vmatprep.subr.mxu0 0.0
    %118 = vmatpush1.msra.mxu0 0.0
    %119 = vmatprep.subr.mxu0 0.0
    %120 = vmatpush1.msra.mxu0 0.0
    %121 = vmatprep.subr.mxu0 0.0
    %122 = vmatpush1.msra.mxu0 0.0
    %123 = vmatprep.subr.mxu0 0.0
    %124 = vmatpush1.msra.mxu0 0.0
    %125 = vmatprep.subr.mxu0 0.0
    %126 = vmatpush1.msra.mxu0 0.0
    %127 = vmatprep.subr.mxu0 0.0
    %128 = vmatpush1.msra.mxu0 0.0
    %129 = vmatprep.subr.mxu0 0.0
    %130 = vmatpush1.msra.mxu0 0.0
    %131 = vmatprep.subr.mxu0 0.0
    %132 = vmatpush1.msra.mxu0 0.0
    %133 = vmatprep.subr.mxu0 0.0
    %134 = vmatpush1.msra.mxu0 0.0
    %135 = vmatprep.subr.mxu0 0.0
    %136 = vmatpush1.msra.mxu0 0.0
    %137 = vmatprep.mubr.f32.mxu0 0.0
    %138 = vmatmul.mubr.f32.gmra.mrb[0].mxu0 %v68
    %v139 = vpop.f32.mrb[0].mxu0
    %v140 = vadd.f32 %v64, %v139
    %v141 = vpop.f32.mrb[0].mxu0
    %142 = vmatprep.mubr.f32.mxu0 0.0
    %143 = vmatmul.mubr.f32.gmra.mrb[0].mxu0 %v71
    %v144 = vpop.f32.mrb[0].mxu0
    %v145 = vadd.f32 %v64, %v144
    %v146 = vpop.f32.mrb[0].mxu0
    %147 = vdwg.mxu0
    %v148 = vmul.f32 %v140, %v140
    %v149 = vmul.f32 %v145, %v145
    %v150 = vld [vmem:[%s6] sm:$0xff]
    %v151 = vld [vmem:[%s6 + $0x8] sm:$0xff]
    %v152 = vld [vmem:[%s6 + $0x10] sm:$0xff]
    %v153 = vld [vmem:[%s6 + $0x18] sm:$0xff]
    %v154 = vld [vmem:[%s7] sm:$0xff]
    %v155 = vld [vmem:[%s7 + $0x8] sm:$0xff]
    %v156 = vld [vmem:[%s7 + $0x10] sm:$0xff]
    %v157 = vld [vmem:[%s7 + $0x18] sm:$0xff]
    %v159 = vsel %vm66, %v140, 0
    %v162 = vsel %vm66, %v145, 0
    %164 = vmatprep.subr.mxu0 0.0
    %165 = vmatpush1.msra.mxu0 %v154
    %166 = vmatprep.subr.mxu0 0.0
    %167 = vmatpush1.msra.mxu0 %v155
    %168 = vmatprep.subr.mxu0 0.0
    %169 = vmatpush1.msra.mxu0 %v156
    %170 = vmatprep.subr.mxu0 0.0
    %171 = vmatpush1.msra.mxu0 %v157
    %172 = vmatprep.subr.mxu0 0.0
    %173 = vmatpush1.msra.mxu0 0.0
    %174 = vmatprep.subr.mxu0 0.0
    %175 = vmatpush1.msra.mxu0 0.0
    %176 = vmatprep.subr.mxu0 0.0
    %177 = vmatpush1.msra.mxu0 0.0
    %178 = vmatprep.subr.mxu0 0.0
    %179 = vmatpush1.msra.mxu0 0.0
    %180 = vmatprep.subr.mxu0 0.0
    %181 = vmatpush1.msra.mxu0 0.0
    %182 = vmatprep.subr.mxu0 0.0
    %183 = vmatpush1.msra.mxu0 0.0
    %184 = vmatprep.subr.mxu0 0.0
    %185 = vmatpush1.msra.mxu0 0.0
    %186 = vmatprep.subr.mxu0 0.0
    %187 = vmatpush1.msra.mxu0 0.0
    %188 = vmatprep.subr.mxu0 0.0
    %189 = vmatpush1.msra.mxu0 0.0
    %190 = vmatprep.subr.mxu0 0.0
    %191 = vmatpush1.msra.mxu0 0.0
    %192 = vmatprep.subr.mxu0 0.0
    %193 = vmatpush1.msra.mxu0 0.0
    %194 = vmatprep.subr.mxu0 0.0
    %195 = vmatpush1.msra.mxu0 0.0
    %196 = vmatprep.subr.mxu0 0.0
    %197 = vmatpush1.msra.mxu0 0.0
    %198 = vmatprep.subr.mxu0 0.0
    %199 = vmatpush1.msra.mxu0 0.0
    %200 = vmatprep.subr.mxu0 0.0
    %201 = vmatpush1.msra.mxu0 0.0
    %202 = vmatprep.subr.mxu0 0.0
    %203 = vmatpush1.msra.mxu0 0.0
    %204 = vmatprep.subr.mxu0 0.0
    %205 = vmatpush1.msra.mxu0 0.0
    %206 = vmatprep.subr.mxu0 0.0
    %207 = vmatpush1.msra.mxu0 0.0
    %208 = vmatprep.subr.mxu0 0.0
    %209 = vmatpush1.msra.mxu0 0.0
    %210 = vmatprep.subr.mxu0 0.0
    %211 = vmatpush1.msra.mxu0 0.0
    %212 = vmatprep.subr.mxu0 0.0
    %213 = vmatpush1.msra.mxu0 0.0
    %214 = vmatprep.subr.mxu0 0.0
    %215 = vmatpush1.msra.mxu0 0.0
    %216 = vmatprep.subr.mxu0 0.0
    %217 = vmatpush1.msra.mxu0 0.0
    %218 = vmatprep.subr.mxu0 0.0
    %219 = vmatpush1.msra.mxu0 0.0
    %220 = vmatprep.subr.mxu0 0.0
    %221 = vmatpush1.msra.mxu0 0.0
    %222 = vmatprep.subr.mxu0 0.0
    %223 = vmatpush1.msra.mxu0 0.0
    %224 = vmatprep.subr.mxu0 0.0
    %225 = vmatpush1.msra.mxu0 0.0
    %226 = vmatprep.subr.mxu0 0.0
    %227 = vmatpush1.msra.mxu0 0.0
    %228 = vmatprep.mubr.f32.mxu0 0.0
    %229 = vmatmul.mubr.f32.gmra.mrb[0].mxu0 %v159
    %v230 = vpop.f32.mrb[0].mxu0
    %v231 = vadd.f32 0.0, %v230
    %v232 = vpop.f32.mrb[0].mxu0
    %233 = vmatprep.mubr.f32.mxu0 0.0
    %234 = vmatmul.mubr.f32.gmra.mrb[0].mxu0 %v162
    %v235 = vpop.f32.mrb[0].mxu0
    %v236 = vadd.f32 0.0, %v235
    %v237 = vpop.f32.mrb[0].mxu0
    %238 = vdwg.mxu0
    %v240 = vsel %vm66, %v148, 0
    %v243 = vsel %vm66, %v149, 0
    %245 = vmatprep.subr.mxu0 0.0
    %246 = vmatpush1.msra.mxu0 %v150
    %247 = vmatprep.subr.mxu0 0.0
    %248 = vmatpush1.msra.mxu0 %v151
    %249 = vmatprep.subr.mxu0 0.0
    %250 = vmatpush1.msra.mxu0 %v152
    %251 = vmatprep.subr.mxu0 0.0
    %252 = vmatpush1.msra.mxu0 %v153
    %253 = vmatprep.subr.mxu0 0.0
    %254 = vmatpush1.msra.mxu0 0.0
    %255 = vmatprep.subr.mxu0 0.0
    %256 = vmatpush1.msra.mxu0 0.0
    %257 = vmatprep.subr.mxu0 0.0
    %258 = vmatpush1.msra.mxu0 0.0
    %259 = vmatprep.subr.mxu0 0.0
    %260 = vmatpush1.msra.mxu0 0.0
    %261 = vmatprep.subr.mxu0 0.0
    %262 = vmatpush1.msra.mxu0 0.0
    %263 = vmatprep.subr.mxu0 0.0
    %264 = vmatpush1.msra.mxu0 0.0
    %265 = vmatprep.subr.mxu0 0.0
    %266 = vmatpush1.msra.mxu0 0.0
    %267 = vmatprep.subr.mxu0 0.0
    %268 = vmatpush1.msra.mxu0 0.0
    %269 = vmatprep.subr.mxu0 0.0
    %270 = vmatpush1.msra.mxu0 0.0
    %271 = vmatprep.subr.mxu0 0.0
    %272 = vmatpush1.msra.mxu0 0.0
    %273 = vmatprep.subr.mxu0 0.0
    %274 = vmatpush1.msra.mxu0 0.0
    %275 = vmatprep.subr.mxu0 0.0
    %276 = vmatpush1.msra.mxu0 0.0
    %277 = vmatprep.subr.mxu0 0.0
    %278 = vmatpush1.msra.mxu0 0.0
    %279 = vmatprep.subr.mxu0 0.0
    %280 = vmatpush1.msra.mxu0 0.0
    %281 = vmatprep.subr.mxu0 0.0
    %282 = vmatpush1.msra.mxu0 0.0
    %283 = vmatprep.subr.mxu0 0.0
    %284 = vmatpush1.msra.mxu0 0.0
    %285 = vmatprep.subr.mxu0 0.0
    %286 = vmatpush1.msra.mxu0 0.0
    %287 = vmatprep.subr.mxu0 0.0
    %288 = vmatpush1.msra.mxu0 0.0
    %289 = vmatprep.subr.mxu0 0.0
    %290 = vmatpush1.msra.mxu0 0.0
    %291 = vmatprep.subr.mxu0 0.0
    %292 = vmatpush1.msra.mxu0 0.0
    %293 = vmatprep.subr.mxu0 0.0
    %294 = vmatpush1.msra.mxu0 0.0
    %295 = vmatprep.subr.mxu0 0.0
    %296 = vmatpush1.msra.mxu0 0.0
    %297 = vmatprep.subr.mxu0 0.0
    %298 = vmatpush1.msra.mxu0 0.0
    %299 = vmatprep.subr.mxu0 0.0
    %300 = vmatpush1.msra.mxu0 0.0
    %301 = vmatprep.subr.mxu0 0.0
    %302 = vmatpush1.msra.mxu0 0.0
    %303 = vmatprep.subr.mxu0 0.0
    %304 = vmatpush1.msra.mxu0 0.0
    %305 = vmatprep.subr.mxu0 0.0
    %306 = vmatpush1.msra.mxu0 0.0
    %307 = vmatprep.subr.mxu0 0.0
    %308 = vmatpush1.msra.mxu0 0.0
    %309 = vmatprep.mubr.f32.mxu0 0.0
    %310 = vmatmul.mubr.f32.gmra.mrb[0].mxu0 %v240
    %v311 = vpop.f32.mrb[0].mxu0
    %v312 = vadd.f32 %v231, %v311
    %v313 = vpop.f32.mrb[0].mxu0
    %314 = vmatprep.mubr.f32.mxu0 0.0
    %315 = vmatmul.mubr.f32.gmra.mrb[0].mxu0 %v243
    %v316 = vpop.f32.mrb[0].mxu0
    %v317 = vadd.f32 %v236, %v316
    %v318 = vpop.f32.mrb[0].mxu0
    %319 = vdwg.mxu0
    %v320 = vld [vmem:[%s8] sm:$0x1]
    %v322 = vlaneseq
    %v323 = vshrl.u32 %v322, 7
    %v324 = vsub.s32 0, %v323
    %v325 = vrot.slane %v320, %v324
    %v327 = vadd.f32 %v312, %v325
    %v328 = vadd.f32 %v317, %v325
    %v329 = vmul.f32 %v327, 1.442695
    %v330 = vpow.pop %v329
    %v331 = vmul.f32 %v328, 1.442695
    %v332 = vpow.pop %v331
    %vm333 = vcmask 64512
    %v334 = vsel %vm333, %v330, 0.0
    %335 = vadd.xlane.f32.xlu0 %v334
    %v336 = vpop.xlane.xlu0 %335
    %v337 = vsel %vm333, %v332, 0.0
    %338 = vadd.xlane.f32.xlu0 %v337
    %v339 = vpop.xlane.xlu0 %338
    %v340 = vrcp.pop %v336
    %v341 = vrcp.pop %v339
    %v342 = vmul.f32 %v330, %v340
    %v343 = vmul.f32 %v332, %v341
    %v344 = vld [vmem:[%s4] sm:$0xff]
    %v346 = vsel %vm333, %v342, 0
    %v349 = vsel %vm333, %v343, 0
    %351 = vmatprep.subr.mxu0 0.0
    %352 = vmatpush1.msra.mxu0 %v344
    %353 = vmatprep.subr.mxu0 0.0
    %354 = vmatpush1.msra.mxu0 0.0
    %355 = vmatprep.subr.mxu0 0.0
    %356 = vmatpush1.msra.mxu0 0.0
    %357 = vmatprep.subr.mxu0 0.0
    %358 = vmatpush1.msra.mxu0 0.0
    %359 = vmatprep.subr.mxu0 0.0
    %360 = vmatpush1.msra.mxu0 0.0
    %361 = vmatprep.subr.mxu0 0.0
    %362 = vmatpush1.msra.mxu0 0.0
    %363 = vmatprep.subr.mxu0 0.0
    %364 = vmatpush1.msra.mxu0 0.0
    %365 = vmatprep.subr.mxu0 0.0
    %366 = vmatpush1.msra.mxu0 0.0
    %367 = vmatprep.subr.mxu0 0.0
    %368 = vmatpush1.msra.mxu0 0.0
    %369 = vmatprep.subr.mxu0 0.0
    %370 = vmatpush1.msra.mxu0 0.0
    %371 = vmatprep.subr.mxu0 0.0
    %372 = vmatpush1.msra.mxu0 0.0
    %373 = vmatprep.subr.mxu0 0.0
    %374 = vmatpush1.msra.mxu0 0.0
    %375 = vmatprep.subr.mxu0 0.0
    %376 = vmatpush1.msra.mxu0 0.0
    %377 = vmatprep.subr.mxu0 0.0
    %378 = vmatpush1.msra.mxu0 0.0
    %379 = vmatprep.subr.mxu0 0.0
    %380 = vmatpush1.msra.mxu0 0.0
    %381 = vmatprep.subr.mxu0 0.0
    %382 = vmatpush1.msra.mxu0 0.0
    %383 = vmatprep.subr.mxu0 0.0
    %384 = vmatpush1.msra.mxu0 0.0
    %385 = vmatprep.subr.mxu0 0.0
    %386 = vmatpush1.msra.mxu0 0.0
    %387 = vmatprep.subr.mxu0 0.0
    %388 = vmatpush1.msra.mxu0 0.0
    %389 = vmatprep.subr.mxu0 0.0
    %390 = vmatpush1.msra.mxu0 0.0
    %391 = vmatprep.subr.mxu0 0.0
    %392 = vmatpush1.msra.mxu0 0.0
    %393 = vmatprep.subr.mxu0 0.0
    %394 = vmatpush1.msra.mxu0 0.0
    %395 = vmatprep.subr.mxu0 0.0
    %396 = vmatpush1.msra.mxu0 0.0
    %397 = vmatprep.subr.mxu0 0.0
    %398 = vmatpush1.msra.mxu0 0.0
    %399 = vmatprep.subr.mxu0 0.0
    %400 = vmatpush1.msra.mxu0 0.0
    %401 = vmatprep.subr.mxu0 0.0
    %402 = vmatpush1.msra.mxu0 0.0
    %403 = vmatprep.subr.mxu0 0.0
    %404 = vmatpush1.msra.mxu0 0.0
    %405 = vmatprep.subr.mxu0 0.0
    %406 = vmatpush1.msra.mxu0 0.0
    %407 = vmatprep.subr.mxu0 0.0
    %408 = vmatpush1.msra.mxu0 0.0
    %409 = vmatprep.subr.mxu0 0.0
    %410 = vmatpush1.msra.mxu0 0.0
    %411 = vmatprep.subr.mxu0 0.0
    %412 = vmatpush1.msra.mxu0 0.0
    %413 = vmatprep.subr.mxu0 0.0
    %414 = vmatpush1.msra.mxu0 0.0
    %415 = vmatprep.mubr.f32.mxu0 0.0
    %416 = vmatmul.mubr.f32.gmra.mrb[0].mxu0 %v346
    %v417 = vpop.f32.mrb[0].mxu0
    %v418 = vadd.f32 0.0, %v417
    %v419 = vpop.f32.mrb[0].mxu0
    %420 = vmatprep.mubr.f32.mxu0 0.0
    %421 = vmatmul.mubr.f32.gmra.mrb[0].mxu0 %v349
    %v422 = vpop.f32.mrb[0].mxu0
    %v423 = vadd.f32 0.0, %v422
    %v424 = vpop.f32.mrb[0].mxu0
    %425 = vdwg.mxu0
    %v426 = vld [vmem:[%s5] sm:$0xff]
    %427 = vmatprep.subr.mxu0 0.0
    %428 = vmatpush1.msra.mxu0 %v426
    %429 = vmatprep.subr.mxu0 0.0
    %430 = vmatpush1.msra.mxu0 0.0
    %431 = vmatprep.subr.mxu0 0.0
    %432 = vmatpush1.msra.mxu0 0.0
    %433 = vmatprep.subr.mxu0 0.0
    %434 = vmatpush1.msra.mxu0 0.0
    %435 = vmatprep.subr.mxu0 0.0
    %436 = vmatpush1.msra.mxu0 0.0
    %437 = vmatprep.subr.mxu0 0.0
    %438 = vmatpush1.msra.mxu0 0.0
    %439 = vmatprep.subr.mxu0 0.0
    %440 = vmatpush1.msra.mxu0 0.0
    %441 = vmatprep.subr.mxu0 0.0
    %442 = vmatpush1.msra.mxu0 0.0
    %443 = vmatprep.subr.mxu0 0.0
    %444 = vmatpush1.msra.mxu0 0.0
    %445 = vmatprep.subr.mxu0 0.0
    %446 = vmatpush1.msra.mxu0 0.0
    %447 = vmatprep.subr.mxu0 0.0
    %448 = vmatpush1.msra.mxu0 0.0
    %449 = vmatprep.subr.mxu0 0.0
    %450 = vmatpush1.msra.mxu0 0.0
    %451 = vmatprep.subr.mxu0 0.0
    %452 = vmatpush1.msra.mxu0 0.0
    %453 = vmatprep.subr.mxu0 0.0
    %454 = vmatpush1.msra.mxu0 0.0
    %455 = vmatprep.subr.mxu0 0.0
    %456 = vmatpush1.msra.mxu0 0.0
    %457 = vmatprep.subr.mxu0 0.0
    %458 = vmatpush1.msra.mxu0 0.0
    %459 = vmatprep.subr.mxu0 0.0
    %460 = vmatpush1.msra.mxu0 0.0
    %461 = vmatprep.subr.mxu0 0.0
    %462 = vmatpush1.msra.mxu0 0.0
    %463 = vmatprep.subr.mxu0 0.0
    %464 = vmatpush1.msra.mxu0 0.0
    %465 = vmatprep.subr.mxu0 0.0
    %466 = vmatpush1.msra.mxu0 0.0
    %467 = vmatprep.subr.mxu0 0.0
    %468 = vmatpush1.msra.mxu0 0.0
    %469 = vmatprep.subr.mxu0 0.0
    %470 = vmatpush1.msra.mxu0 0.0
    %471 = vmatprep.subr.mxu0 0.0
    %472 = vmatpush1.msra.mxu0 0.0
    %473 = vmatprep.subr.mxu0 0.0
    %474 = vmatpush1.msra.mxu0 0.0
    %475 = vmatprep.subr.mxu0 0.0
    %476 = vmatpush1.msra.mxu0 0.0
    %477 = vmatprep.subr.mxu0 0.0
    %478 = vmatpush1.msra.mxu0 0.0
    %479 = vmatprep.subr.mxu0 0.0
    %480 = vmatpush1.msra.mxu0 0.0
    %481 = vmatprep.subr.mxu0 0.0
    %482 = vmatpush1.msra.mxu0 0.0
    %483 = vmatprep.subr.mxu0 0.0
    %484 = vmatpush1.msra.mxu0 0.0
    %485 = vmatprep.subr.mxu0 0.0
    %486 = vmatpush1.msra.mxu0 0.0
    %487 = vmatprep.subr.mxu0 0.0
    %488 = vmatpush1.msra.mxu0 0.0
    %489 = vmatprep.subr.mxu0 0.0
    %490 = vmatpush1.msra.mxu0 0.0
    %491 = vmatprep.mubr.f32.mxu0 0.0
    %492 = vmatmul.mubr.f32.gmra.mrb[0].mxu0 %v346
    %v493 = vpop.f32.mrb[0].mxu0
    %v494 = vadd.f32 0.0, %v493
    %v495 = vpop.f32.mrb[0].mxu0
    %496 = vmatprep.mubr.f32.mxu0 0.0
    %497 = vmatmul.mubr.f32.gmra.mrb[0].mxu0 %v349
    %v498 = vpop.f32.mrb[0].mxu0
    %v499 = vadd.f32 0.0, %v498
    %v500 = vpop.f32.mrb[0].mxu0
    %501 = vdwg.mxu0
    %v503 = vsel %vm333, %v418, 0
    %505 = vmatprep.subr.mxu0 0.0
    %506 = vmatpush1.msra.mxu0 %v51
    %507 = vmatprep.subr.mxu0 0.0
    %508 = vmatpush1.msra.mxu0 0.0
    %509 = vmatprep.subr.mxu0 0.0
    %510 = vmatpush1.msra.mxu0 0.0
    %511 = vmatprep.subr.mxu0 0.0
    %512 = vmatpush1.msra.mxu0 0.0
    %513 = vmatprep.subr.mxu0 0.0
    %514 = vmatpush1.msra.mxu0 0.0
    %515 = vmatprep.subr.mxu0 0.0
    %516 = vmatpush1.msra.mxu0 0.0
    %517 = vmatprep.subr.mxu0 0.0
    %518 = vmatpush1.msra.mxu0 0.0
    %519 = vmatprep.subr.mxu0 0.0
    %520 = vmatpush1.msra.mxu0 0.0
    %521 = vmatprep.subr.mxu0 0.0
    %522 = vmatpush1.msra.mxu0 0.0
    %523 = vmatprep.subr.mxu0 0.0
    %524 = vmatpush1.msra.mxu0 0.0
    %525 = vmatprep.subr.mxu0 0.0
    %526 = vmatpush1.msra.mxu0 0.0
    %527 = vmatprep.subr.mxu0 0.0
    %528 = vmatpush1.msra.mxu0 0.0
    %529 = vmatprep.subr.mxu0 0.0
    %530 = vmatpush1.msra.mxu0 0.0
    %531 = vmatprep.subr.mxu0 0.0
    %532 = vmatpush1.msra.mxu0 0.0
    %533 = vmatprep.subr.mxu0 0.0
    %534 = vmatpush1.msra.mxu0 0.0
    %535 = vmatprep.subr.mxu0 0.0
    %536 = vmatpush1.msra.mxu0 0.0
    %537 = vmatprep.subr.mxu0 0.0
    %538 = vmatpush1.msra.mxu0 0.0
    %539 = vmatprep.subr.mxu0 0.0
    %540 = vmatpush1.msra.mxu0 0.0
    %541 = vmatprep.subr.mxu0 0.0
    %542 = vmatpush1.msra.mxu0 0.0
    %543 = vmatprep.subr.mxu0 0.0
    %544 = vmatpush1.msra.mxu0 0.0
    %545 = vmatprep.subr.mxu0 0.0
    %546 = vmatpush1.msra.mxu0 0.0
    %547 = vmatprep.subr.mxu0 0.0
    %548 = vmatpush1.msra.mxu0 0.0
    %549 = vmatprep.subr.mxu0 0.0
    %550 = vmatpush1.msra.mxu0 0.0
    %551 = vmatprep.subr.mxu0 0.0
    %552 = vmatpush1.msra.mxu0 0.0
    %553 = vmatprep.subr.mxu0 0.0
    %554 = vmatpush1.msra.mxu0 0.0
    %555 = vmatprep.subr.mxu0 0.0
    %556 = vmatpush1.msra.mxu0 0.0
    %557 = vmatprep.subr.mxu0 0.0
    %558 = vmatpush1.msra.mxu0 0.0
    %559 = vmatprep.subr.mxu0 0.0
    %560 = vmatpush1.msra.mxu0 0.0
    %561 = vmatprep.subr.mxu0 0.0
    %562 = vmatpush1.msra.mxu0 0.0
    %563 = vmatprep.subr.mxu0 0.0
    %564 = vmatpush1.msra.mxu0 0.0
    %565 = vmatprep.subr.mxu0 0.0
    %566 = vmatpush1.msra.mxu0 0.0
    %567 = vmatprep.subr.mxu0 0.0
    %568 = vmatpush1.msra.mxu0 0.0
    %569 = vmatprep.mubr.f32.mxu0 0.0
    %570 = vmatmul.mubr.f32.gmra.mrb[0].mxu0 %v503
    %v571 = vpop.f32.mrb[0].mxu0
    %v572 = vadd.f32 0.0, %v571
    %v573 = vpop.f32.mrb[0].mxu0
    %574 = vdwg.mxu0
    %v576 = vsel %vm333, %v423, 0
    %578 = vmatprep.subr.mxu0 0.0
    %579 = vmatpush1.msra.mxu0 %v52
    %580 = vmatprep.subr.mxu0 0.0
    %581 = vmatpush1.msra.mxu0 0.0
    %582 = vmatprep.subr.mxu0 0.0
    %583 = vmatpush1.msra.mxu0 0.0
    %584 = vmatprep.subr.mxu0 0.0
    %585 = vmatpush1.msra.mxu0 0.0
    %586 = vmatprep.subr.mxu0 0.0
    %587 = vmatpush1.msra.mxu0 0.0
    %588 = vmatprep.subr.mxu0 0.0
    %589 = vmatpush1.msra.mxu0 0.0
    %590 = vmatprep.subr.mxu0 0.0
    %591 = vmatpush1.msra.mxu0 0.0
    %592 = vmatprep.subr.mxu0 0.0
    %593 = vmatpush1.msra.mxu0 0.0
    %594 = vmatprep.subr.mxu0 0.0
    %595 = vmatpush1.msra.mxu0 0.0
    %596 = vmatprep.subr.mxu0 0.0
    %597 = vmatpush1.msra.mxu0 0.0
    %598 = vmatprep.subr.mxu0 0.0
    %599 = vmatpush1.msra.mxu0 0.0
    %600 = vmatprep.subr.mxu0 0.0
    %601 = vmatpush1.msra.mxu0 0.0
    %602 = vmatprep.subr.mxu0 0.0
    %603 = vmatpush1.msra.mxu0 0.0
    %604 = vmatprep.subr.mxu0 0.0
    %605 = vmatpush1.msra.mxu0 0.0
    %606 = vmatprep.subr.mxu0 0.0
    %607 = vmatpush1.msra.mxu0 0.0
    %608 = vmatprep.subr.mxu0 0.0
    %609 = vmatpush1.msra.mxu0 0.0
    %610 = vmatprep.subr.mxu0 0.0
    %611 = vmatpush1.msra.mxu0 0.0
    %612 = vmatprep.subr.mxu0 0.0
    %613 = vmatpush1.msra.mxu0 0.0
    %614 = vmatprep.subr.mxu0 0.0
    %615 = vmatpush1.msra.mxu0 0.0
    %616 = vmatprep.subr.mxu0 0.0
    %617 = vmatpush1.msra.mxu0 0.0
    %618 = vmatprep.subr.mxu0 0.0
    %619 = vmatpush1.msra.mxu0 0.0
    %620 = vmatprep.subr.mxu0 0.0
    %621 = vmatpush1.msra.mxu0 0.0
    %622 = vmatprep.subr.mxu0 0.0
    %623 = vmatpush1.msra.mxu0 0.0
    %624 = vmatprep.subr.mxu0 0.0
    %625 = vmatpush1.msra.mxu0 0.0
    %626 = vmatprep.subr.mxu0 0.0
    %627 = vmatpush1.msra.mxu0 0.0
    %628 = vmatprep.subr.mxu0 0.0
    %629 = vmatpush1.msra.mxu0 0.0
    %630 = vmatprep.subr.mxu0 0.0
    %631 = vmatpush1.msra.mxu0 0.0
    %632 = vmatprep.subr.mxu0 0.0
    %633 = vmatpush1.msra.mxu0 0.0
    %634 = vmatprep.subr.mxu0 0.0
    %635 = vmatpush1.msra.mxu0 0.0
    %636 = vmatprep.subr.mxu0 0.0
    %637 = vmatpush1.msra.mxu0 0.0
    %638 = vmatprep.subr.mxu0 0.0
    %639 = vmatpush1.msra.mxu0 0.0
    %640 = vmatprep.subr.mxu0 0.0
    %641 = vmatpush1.msra.mxu0 0.0
    %642 = vmatprep.mubr.f32.mxu0 0.0
    %643 = vmatmul.mubr.f32.gmra.mrb[0].mxu0 %v576
    %v644 = vpop.f32.mrb[0].mxu0
    %v645 = vadd.f32 0.0, %v644
    %v646 = vpop.f32.mrb[0].mxu0
    %647 = vdwg.mxu0
    %649 = vset.pattern.permute.xlu0 0
    %650 = vperm.xlu0 %649, %v494
    %v651 = vpop.permute.xlu0 %650
    %654 = vset.pattern.permute.xlu0 0
    %655 = vperm.xlu0 %654, %v499
    %v656 = vpop.permute.xlu0 %655
    %v658 = vadd.f32 %v572, %v651
    %v659 = vadd.f32 %v645, %v656
    %v660 = vadd.f32 %v51, %v658
    %v661 = vadd.f32 %v52, %v659
    %v662 = vld [vmem:[%s9] sm:$0xff]
    %v663 = vld [vmem:[%s10] sm:$0xff]
    %v664 = vsel %vm66, %v660, 0.0
    %665 = vadd.xlane.f32.xlu0 %v664
    %v666 = vpop.xlane.xlu0 %665
    %v667 = vsel %vm66, %v661, 0.0
    %668 = vadd.xlane.f32.xlu0 %v667
    %v669 = vpop.xlane.xlu0 %668
    %v670 = vrot.slane %v666, 4
    %v671 = vadd.f32 %v666, %v670
    %v672 = vrot.slane %v671, 2
    %v673 = vadd.f32 %v671, %v672
    %v674 = vrot.slane %v673, 1
    %v675 = vadd.f32 %v673, %v674
    %v676 = vrot.slane %v669, 4
    %v677 = vadd.f32 %v669, %v676
    %v678 = vrot.slane %v677, 2
    %v679 = vadd.f32 %v677, %v678
    %v680 = vrot.slane %v679, 1
    %v681 = vadd.f32 %v679, %v680
    %v682 = vmul.f32 %v675, 0.00390625
    %v683 = vmul.f32 %v681, 0.00390625
    %v684 = vsub.f32 %v660, %v682
    %v685 = vsub.f32 %v661, %v683
    %v686 = vmul.f32 %v684, %v684
    %v687 = vmul.f32 %v685, %v685
    %v688 = vsel %vm66, %v686, 0.0
    %689 = vadd.xlane.f32.xlu0 %v688
    %v690 = vpop.xlane.xlu0 %689
    %v691 = vsel %vm66, %v687, 0.0
    %692 = vadd.xlane.f32.xlu0 %v691
    %v693 = vpop.xlane.xlu0 %692
    %v694 = vrot.slane %v690, 4
    %v695 = vadd.f32 %v690, %v694
    %v696 = vrot.slane %v695, 2
    %v697 = vadd.f32 %v695, %v696
    %v698 = vrot.slane %v697, 1
    %v699 = vadd.f32 %v697, %v698
    %v700 = vrot.slane %v693, 4
    %v701 = vadd.f32 %v693, %v700
    %v702 = vrot.slane %v701, 2
    %v703 = vadd.f32 %v701, %v702
    %v704 = vrot.slane %v703, 1
    %v705 = vadd.f32 %v703, %v704
    %v706 = vmul.f32 %v699, 0.00390625
    %v707 = vmul.f32 %v705, 0.00390625
    %v708 = vadd.f32 %v706, 1e-05
    %v709 = vadd.f32 %v707, 1e-05
    %v710 = vrsqrt.pop %v708
    %v711 = vrsqrt.pop %v709
    %v712 = vmul.f32 %v684, %v710
    %v713 = vmul.f32 %v685, %v711
    %v714 = vmul.f32 %v712, %v662
    %v715 = vmul.f32 %v713, %v662
    %v716 = vadd.f32 %v714, %v663
    %v717 = vadd.f32 %v715, %v663
    %s718 = scalar_lea.vmem %s2, 32
    %v719 = vld [vmem:[%s718] sm:$0xff]
    %v720 = vld [vmem:[%s718 + $0x8] sm:$0xff]
    %v721 = vld [vmem:[%s718 + $0x10] sm:$0xff]
    %v722 = vld [vmem:[%s718 + $0x18] sm:$0xff]
    %s723 = scalar_lea.vmem %s3, 1
    %v724 = vld [vmem:[%s723] sm:$0x1]
    %v726 = vlaneseq
    %v727 = vshrl.u32 %v726, 7
    %v728 = vsub.s32 0, %v727
    %v729 = vrot.slane %v724, %v728
    %v732 = vsel %vm66, %v716, 0
    %v735 = vsel %vm66, %v717, 0
    %737 = vmatprep.subr.mxu0 0.0
    %738 = vmatpush1.msra.mxu0 %v719
    %739 = vmatprep.subr.mxu0 0.0
    %740 = vmatpush1.msra.mxu0 %v720
    %741 = vmatprep.subr.mxu0 0.0
    %742 = vmatpush1.msra.mxu0 %v721
    %743 = vmatprep.subr.mxu0 0.0
    %744 = vmatpush1.msra.mxu0 %v722
    %745 = vmatprep.subr.mxu0 0.0
    %746 = vmatpush1.msra.mxu0 0.0
    %747 = vmatprep.subr.mxu0 0.0
    %748 = vmatpush1.msra.mxu0 0.0
    %749 = vmatprep.subr.mxu0 0.0
    %750 = vmatpush1.msra.mxu0 0.0
    %751 = vmatprep.subr.mxu0 0.0
    %752 = vmatpush1.msra.mxu0 0.0
    %753 = vmatprep.subr.mxu0 0.0
    %754 = vmatpush1.msra.mxu0 0.0
    %755 = vmatprep.subr.mxu0 0.0
    %756 = vmatpush1.msra.mxu0 0.0
    %757 = vmatprep.subr.mxu0 0.0
    %758 = vmatpush1.msra.mxu0 0.0
    %759 = vmatprep.subr.mxu0 0.0
    %760 = vmatpush1.msra.mxu0 0.0
    %761 = vmatprep.subr.mxu0 0.0
    %762 = vmatpush1.msra.mxu0 0.0
    %763 = vmatprep.subr.mxu0 0.0
    %764 = vmatpush1.msra.mxu0 0.0
    %765 = vmatprep.subr.mxu0 0.0
    %766 = vmatpush1.msra.mxu0 0.0
    %767 = vmatprep.subr.mxu0 0.0
    %768 = vmatpush1.msra.mxu0 0.0
    %769 = vmatprep.subr.mxu0 0.0
    %770 = vmatpush1.msra.mxu0 0.0
    %771 = vmatprep.subr.mxu0 0.0
    %772 = vmatpush1.msra.mxu0 0.0
    %773 = vmatprep.subr.mxu0 0.0
    %774 = vmatpush1.msra.mxu0 0.0
    %775 = vmatprep.subr.mxu0 0.0
    %776 = vmatpush1.msra.mxu0 0.0
    %777 = vmatprep.subr.mxu0 0.0
    %778 = vmatpush1.msra.mxu0 0.0
    %779 = vmatprep.subr.mxu0 0.0
    %780 = vmatpush1.msra.mxu0 0.0
    %781 = vmatprep.subr.mxu0 0.0
    %782 = vmatpush1.msra.mxu0 0.0
    %783 = vmatprep.subr.mxu0 0.0
    %784 = vmatpush1.msra.mxu0 0.0
    %785 = vmatprep.subr.mxu0 0.0
    %786 = vmatpush1.msra.mxu0 0.0
    %787 = vmatprep.subr.mxu0 0.0
    %788 = vmatpush1.msra.mxu0 0.0
    %789 = vmatprep.subr.mxu0 0.0
    %790 = vmatpush1.msra.mxu0 0.0
    %791 = vmatprep.subr.mxu0 0.0
    %792 = vmatpush1.msra.mxu0 0.0
    %793 = vmatprep.subr.mxu0 0.0
    %794 = vmatpush1.msra.mxu0 0.0
    %795 = vmatprep.subr.mxu0 0.0
    %796 = vmatpush1.msra.mxu0 0.0
    %797 = vmatprep.subr.mxu0 0.0
    %798 = vmatpush1.msra.mxu0 0.0
    %799 = vmatprep.subr.mxu0 0.0
    %800 = vmatpush1.msra.mxu0 0.0
    %801 = vmatprep.mubr.f32.mxu0 0.0
    %802 = vmatmul.mubr.f32.gmra.mrb[0].mxu0 %v732
    %v803 = vpop.f32.mrb[0].mxu0
    %v804 = vadd.f32 %v729, %v803
    %v805 = vpop.f32.mrb[0].mxu0
    %806 = vmatprep.mubr.f32.mxu0 0.0
    %807 = vmatmul.mubr.f32.gmra.mrb[0].mxu0 %v735
    %v808 = vpop.f32.mrb[0].mxu0
    %v809 = vadd.f32 %v729, %v808
    %v810 = vpop.f32.mrb[0].mxu0
    %811 = vdwg.mxu0
    %v812 = vmul.f32 %v804, %v804
    %v813 = vmul.f32 %v809, %v809
    %s814 = scalar_lea.vmem %s6, 32
    %v815 = vld [vmem:[%s814] sm:$0xff]
    %v816 = vld [vmem:[%s814 + $0x8] sm:$0xff]
    %v817 = vld [vmem:[%s814 + $0x10] sm:$0xff]
    %v818 = vld [vmem:[%s814 + $0x18] sm:$0xff]
    %s819 = scalar_lea.vmem %s7, 32
    %v820 = vld [vmem:[%s819] sm:$0xff]
    %v821 = vld [vmem:[%s819 + $0x8] sm:$0xff]
    %v822 = vld [vmem:[%s819 + $0x10] sm:$0xff]
    %v823 = vld [vmem:[%s819 + $0x18] sm:$0xff]
    %v825 = vsel %vm66, %v804, 0
    %v828 = vsel %vm66, %v809, 0
    %830 = vmatprep.subr.mxu0 0.0
    %831 = vmatpush1.msra.mxu0 %v820
    %832 = vmatprep.subr.mxu0 0.0
    %833 = vmatpush1.msra.mxu0 %v821
    %834 = vmatprep.subr.mxu0 0.0
    %835 = vmatpush1.msra.mxu0 %v822
    %836 = vmatprep.subr.mxu0 0.0
    %837 = vmatpush1.msra.mxu0 %v823
    %838 = vmatprep.subr.mxu0 0.0
    %839 = vmatpush1.msra.mxu0 0.0
    %840 = vmatprep.subr.mxu0 0.0
    %841 = vmatpush1.msra.mxu0 0.0
    %842 = vmatprep.subr.mxu0 0.0
    %843 = vmatpush1.msra.mxu0 0.0
    %844 = vmatprep.subr.mxu0 0.0
    %845 = vmatpush1.msra.mxu0 0.0
    %846 = vmatprep.subr.mxu0 0.0
    %847 = vmatpush1.msra.mxu0 0.0
    %848 = vmatprep.subr.mxu0 0.0
    %849 = vmatpush1.msra.mxu0 0.0
    %850 = vmatprep.subr.mxu0 0.0
    %851 = vmatpush1.msra.mxu0 0.0
    %852 = vmatprep.subr.mxu0 0.0
    %853 = vmatpush1.msra.mxu0 0.0
    %854 = vmatprep.subr.mxu0 0.0
    %855 = vmatpush1.msra.mxu0 0.0
    %856 = vmatprep.subr.mxu0 0.0
    %857 = vmatpush1.msra.mxu0 0.0
    %858 = vmatprep.subr.mxu0 0.0
    %859 = vmatpush1.msra.mxu0 0.0
    %860 = vmatprep.subr.mxu0 0.0
    %861 = vmatpush1.msra.mxu0 0.0
    %862 = vmatprep.subr.mxu0 0.0
    %863 = vmatpush1.msra.mxu0 0.0
    %864 = vmatprep.subr.mxu0 0.0
    %865 = vmatpush1.msra.mxu0 0.0
    %866 = vmatprep.subr.mxu0 0.0
    %867 = vmatpush1.msra.mxu0 0.0
    %868 = vmatprep.subr.mxu0 0.0
    %869 = vmatpush1.msra.mxu0 0.0
    %870 = vmatprep.subr.mxu0 0.0
    %871 = vmatpush1.msra.mxu0 0.0
    %872 = vmatprep.subr.mxu0 0.0
    %873 = vmatpush1.msra.mxu0 0.0
    %874 = vmatprep.subr.mxu0 0.0
    %875 = vmatpush1.msra.mxu0 0.0
    %876 = vmatprep.subr.mxu0 0.0
    %877 = vmatpush1.msra.mxu0 0.0
    %878 = vmatprep.subr.mxu0 0.0
    %879 = vmatpush1.msra.mxu0 0.0
    %880 = vmatprep.subr.mxu0 0.0
    %881 = vmatpush1.msra.mxu0 0.0
    %882 = vmatprep.subr.mxu0 0.0
    %883 = vmatpush1.msra.mxu0 0.0
    %884 = vmatprep.subr.mxu0 0.0
    %885 = vmatpush1.msra.mxu0 0.0
    %886 = vmatprep.subr.mxu0 0.0
    %887 = vmatpush1.msra.mxu0 0.0
    %888 = vmatprep.subr.mxu0 0.0
    %889 = vmatpush1.msra.mxu0 0.0
    %890 = vmatprep.subr.mxu0 0.0
    %891 = vmatpush1.msra.mxu0 0.0
    %892 = vmatprep.subr.mxu0 0.0
    %893 = vmatpush1.msra.mxu0 0.0
    %894 = vmatprep.mubr.f32.mxu0 0.0
    %895 = vmatmul.mubr.f32.gmra.mrb[0].mxu0 %v825
    %v896 = vpop.f32.mrb[0].mxu0
    %v897 = vadd.f32 0.0, %v896
    %v898 = vpop.f32.mrb[0].mxu0
    %899 = vmatprep.mubr.f32.mxu0 0.0
    %900 = vmatmul.mubr.f32.gmra.mrb[0].mxu0 %v828
    %v901 = vpop.f32.mrb[0].mxu0
    %v902 = vadd.f32 0.0, %v901
    %v903 = vpop.f32.mrb[0].mxu0
    %904 = vdwg.mxu0
    %v906 = vsel %vm66, %v812, 0
    %v909 = vsel %vm66, %v813, 0
    %911 = vmatprep.subr.mxu0 0.0
    %912 = vmatpush1.msra.mxu0 %v815
    %913 = vmatprep.subr.mxu0 0.0
    %914 = vmatpush1.msra.mxu0 %v816
    %915 = vmatprep.subr.mxu0 0.0
    %916 = vmatpush1.msra.mxu0 %v817
    %917 = vmatprep.subr.mxu0 0.0
    %918 = vmatpush1.msra.mxu0 %v818
    %919 = vmatprep.subr.mxu0 0.0
    %920 = vmatpush1.msra.mxu0 0.0
    %921 = vmatprep.subr.mxu0 0.0
    %922 = vmatpush1.msra.mxu0 0.0
    %923 = vmatprep.subr.mxu0 0.0
    %924 = vmatpush1.msra.mxu0 0.0
    %925 = vmatprep.subr.mxu0 0.0
    %926 = vmatpush1.msra.mxu0 0.0
    %927 = vmatprep.subr.mxu0 0.0
    %928 = vmatpush1.msra.mxu0 0.0
    %929 = vmatprep.subr.mxu0 0.0
    %930 = vmatpush1.msra.mxu0 0.0
    %931 = vmatprep.subr.mxu0 0.0
    %932 = vmatpush1.msra.mxu0 0.0
    %933 = vmatprep.subr.mxu0 0.0
    %934 = vmatpush1.msra.mxu0 0.0
    %935 = vmatprep.subr.mxu0 0.0
    %936 = vmatpush1.msra.mxu0 0.0
    %937 = vmatprep.subr.mxu0 0.0
    %938 = vmatpush1.msra.mxu0 0.0
    %939 = vmatprep.subr.mxu0 0.0
    %940 = vmatpush1.msra.mxu0 0.0
    %941 = vmatprep.subr.mxu0 0.0
    %942 = vmatpush1.msra.mxu0 0.0
    %943 = vmatprep.subr.mxu0 0.0
    %944 = vmatpush1.msra.mxu0 0.0
    %945 = vmatprep.subr.mxu0 0.0
    %946 = vmatpush1.msra.mxu0 0.0
    %947 = vmatprep.subr.mxu0 0.0
    %948 = vmatpush1.msra.mxu0 0.0
    %949 = vmatprep.subr.mxu0 0.0
    %950 = vmatpush1.msra.mxu0 0.0
    %951 = vmatprep.subr.mxu0 0.0
    %952 = vmatpush1.msra.mxu0 0.0
    %953 = vmatprep.subr.mxu0 0.0
    %954 = vmatpush1.msra.mxu0 0.0
    %955 = vmatprep.subr.mxu0 0.0
    %956 = vmatpush1.msra.mxu0 0.0
    %957 = vmatprep.subr.mxu0 0.0
    %958 = vmatpush1.msra.mxu0 0.0
    %959 = vmatprep.subr.mxu0 0.0
    %960 = vmatpush1.msra.mxu0 0.0
    %961 = vmatprep.subr.mxu0 0.0
    %962 = vmatpush1.msra.mxu0 0.0
    %963 = vmatprep.subr.mxu0 0.0
    %964 = vmatpush1.msra.mxu0 0.0
    %965 = vmatprep.subr.mxu0 0.0
    %966 = vmatpush1.msra.mxu0 0.0
    %967 = vmatprep.subr.mxu0 0.0
    %968 = vmatpush1.msra.mxu0 0.0
    %969 = vmatprep.subr.mxu0 0.0
    %970 = vmatpush1.msra.mxu0 0.0
    %971 = vmatprep.subr.mxu0 0.0
    %972 = vmatpush1.msra.mxu0 0.0
    %973 = vmatprep.subr.mxu0 0.0
    %974 = vmatpush1.msra.mxu0 0.0
    %975 = vmatprep.mubr.f32.mxu0 0.0
    %976 = vmatmul.mubr.f32.gmra.mrb[0].mxu0 %v906
    %v977 = vpop.f32.mrb[0].mxu0
    %v978 = vadd.f32 %v897, %v977
    %v979 = vpop.f32.mrb[0].mxu0
    %980 = vmatprep.mubr.f32.mxu0 0.0
    %981 = vmatmul.mubr.f32.gmra.mrb[0].mxu0 %v909
    %v982 = vpop.f32.mrb[0].mxu0
    %v983 = vadd.f32 %v902, %v982
    %v984 = vpop.f32.mrb[0].mxu0
    %985 = vdwg.mxu0
    %s986 = scalar_lea.vmem %s8, 1
    %v987 = vld [vmem:[%s986] sm:$0x1]
    %v989 = vlaneseq
    %v990 = vshrl.u32 %v989, 7
    %v991 = vsub.s32 0, %v990
    %v992 = vrot.slane %v987, %v991
    %v994 = vadd.f32 %v978, %v992
    %v995 = vadd.f32 %v983, %v992
    %v996 = vmul.f32 %v994, 1.442695
    %v997 = vpow.pop %v996
    %v998 = vmul.f32 %v995, 1.442695
    %v999 = vpow.pop %v998
    %v1000 = vsel %vm333, %v997, 0.0
    %1001 = vadd.xlane.f32.xlu0 %v1000
    %v1002 = vpop.xlane.xlu0 %1001
    %v1003 = vsel %vm333, %v999, 0.0
    %1004 = vadd.xlane.f32.xlu0 %v1003
    %v1005 = vpop.xlane.xlu0 %1004
    %v1006 = vrcp.pop %v1002
    %v1007 = vrcp.pop %v1005
    %v1008 = vmul.f32 %v997, %v1006
    %v1009 = vmul.f32 %v999, %v1007
    %s1010 = scalar_lea.vmem %s4, 8
    %v1011 = vld [vmem:[%s1010] sm:$0xff]
    %v1013 = vsel %vm333, %v1008, 0
    %v1016 = vsel %vm333, %v1009, 0
    %1018 = vmatprep.subr.mxu0 0.0
    %1019 = vmatpush1.msra.mxu0 %v1011
    %1020 = vmatprep.subr.mxu0 0.0
    %1021 = vmatpush1.msra.mxu0 0.0
    %1022 = vmatprep.subr.mxu0 0.0
    %1023 = vmatpush1.msra.mxu0 0.0
    %1024 = vmatprep.subr.mxu0 0.0
    %1025 = vmatpush1.msra.mxu0 0.0
    %1026 = vmatprep.subr.mxu0 0.0
    %1027 = vmatpush1.msra.mxu0 0.0
    %1028 = vmatprep.subr.mxu0 0.0
    %1029 = vmatpush1.msra.mxu0 0.0
    %1030 = vmatprep.subr.mxu0 0.0
    %1031 = vmatpush1.msra.mxu0 0.0
    %1032 = vmatprep.subr.mxu0 0.0
    %1033 = vmatpush1.msra.mxu0 0.0
    %1034 = vmatprep.subr.mxu0 0.0
    %1035 = vmatpush1.msra.mxu0 0.0
    %1036 = vmatprep.subr.mxu0 0.0
    %1037 = vmatpush1.msra.mxu0 0.0
    %1038 = vmatprep.subr.mxu0 0.0
    %1039 = vmatpush1.msra.mxu0 0.0
    %1040 = vmatprep.subr.mxu0 0.0
    %1041 = vmatpush1.msra.mxu0 0.0
    %1042 = vmatprep.subr.mxu0 0.0
    %1043 = vmatpush1.msra.mxu0 0.0
    %1044 = vmatprep.subr.mxu0 0.0
    %1045 = vmatpush1.msra.mxu0 0.0
    %1046 = vmatprep.subr.mxu0 0.0
    %1047 = vmatpush1.msra.mxu0 0.0
    %1048 = vmatprep.subr.mxu0 0.0
    %1049 = vmatpush1.msra.mxu0 0.0
    %1050 = vmatprep.subr.mxu0 0.0
    %1051 = vmatpush1.msra.mxu0 0.0
    %1052 = vmatprep.subr.mxu0 0.0
    %1053 = vmatpush1.msra.mxu0 0.0
    %1054 = vmatprep.subr.mxu0 0.0
    %1055 = vmatpush1.msra.mxu0 0.0
    %1056 = vmatprep.subr.mxu0 0.0
    %1057 = vmatpush1.msra.mxu0 0.0
    %1058 = vmatprep.subr.mxu0 0.0
    %1059 = vmatpush1.msra.mxu0 0.0
    %1060 = vmatprep.subr.mxu0 0.0
    %1061 = vmatpush1.msra.mxu0 0.0
    %1062 = vmatprep.subr.mxu0 0.0
    %1063 = vmatpush1.msra.mxu0 0.0
    %1064 = vmatprep.subr.mxu0 0.0
    %1065 = vmatpush1.msra.mxu0 0.0
    %1066 = vmatprep.subr.mxu0 0.0
    %1067 = vmatpush1.msra.mxu0 0.0
    %1068 = vmatprep.subr.mxu0 0.0
    %1069 = vmatpush1.msra.mxu0 0.0
    %1070 = vmatprep.subr.mxu0 0.0
    %1071 = vmatpush1.msra.mxu0 0.0
    %1072 = vmatprep.subr.mxu0 0.0
    %1073 = vmatpush1.msra.mxu0 0.0
    %1074 = vmatprep.subr.mxu0 0.0
    %1075 = vmatpush1.msra.mxu0 0.0
    %1076 = vmatprep.subr.mxu0 0.0
    %1077 = vmatpush1.msra.mxu0 0.0
    %1078 = vmatprep.subr.mxu0 0.0
    %1079 = vmatpush1.msra.mxu0 0.0
    %1080 = vmatprep.subr.mxu0 0.0
    %1081 = vmatpush1.msra.mxu0 0.0
    %1082 = vmatprep.mubr.f32.mxu0 0.0
    %1083 = vmatmul.mubr.f32.gmra.mrb[0].mxu0 %v1013
    %v1084 = vpop.f32.mrb[0].mxu0
    %v1085 = vadd.f32 0.0, %v1084
    %v1086 = vpop.f32.mrb[0].mxu0
    %1087 = vmatprep.mubr.f32.mxu0 0.0
    %1088 = vmatmul.mubr.f32.gmra.mrb[0].mxu0 %v1016
    %v1089 = vpop.f32.mrb[0].mxu0
    %v1090 = vadd.f32 0.0, %v1089
    %v1091 = vpop.f32.mrb[0].mxu0
    %1092 = vdwg.mxu0
    %s1093 = scalar_lea.vmem %s5, 8
    %v1094 = vld [vmem:[%s1093] sm:$0xff]
    %1095 = vmatprep.subr.mxu0 0.0
    %1096 = vmatpush1.msra.mxu0 %v1094
    %1097 = vmatprep.subr.mxu0 0.0
    %1098 = vmatpush1.msra.mxu0 0.0
    %1099 = vmatprep.subr.mxu0 0.0
    %1100 = vmatpush1.msra.mxu0 0.0
    %1101 = vmatprep.subr.mxu0 0.0
    %1102 = vmatpush1.msra.mxu0 0.0
    %1103 = vmatprep.subr.mxu0 0.0
    %1104 = vmatpush1.msra.mxu0 0.0
    %1105 = vmatprep.subr.mxu0 0.0
    %1106 = vmatpush1.msra.mxu0 0.0
    %1107 = vmatprep.subr.mxu0 0.0
    %1108 = vmatpush1.msra.mxu0 0.0
    %1109 = vmatprep.subr.mxu0 0.0
    %1110 = vmatpush1.msra.mxu0 0.0
    %1111 = vmatprep.subr.mxu0 0.0
    %1112 = vmatpush1.msra.mxu0 0.0
    %1113 = vmatprep.subr.mxu0 0.0
    %1114 = vmatpush1.msra.mxu0 0.0
    %1115 = vmatprep.subr.mxu0 0.0
    %1116 = vmatpush1.msra.mxu0 0.0
    %1117 = vmatprep.subr.mxu0 0.0
    %1118 = vmatpush1.msra.mxu0 0.0
    %1119 = vmatprep.subr.mxu0 0.0
    %1120 = vmatpush1.msra.mxu0 0.0
    %1121 = vmatprep.subr.mxu0 0.0
    %1122 = vmatpush1.msra.mxu0 0.0
    %1123 = vmatprep.subr.mxu0 0.0
    %1124 = vmatpush1.msra.mxu0 0.0
    %1125 = vmatprep.subr.mxu0 0.0
    %1126 = vmatpush1.msra.mxu0 0.0
    %1127 = vmatprep.subr.mxu0 0.0
    %1128 = vmatpush1.msra.mxu0 0.0
    %1129 = vmatprep.subr.mxu0 0.0
    %1130 = vmatpush1.msra.mxu0 0.0
    %1131 = vmatprep.subr.mxu0 0.0
    %1132 = vmatpush1.msra.mxu0 0.0
    %1133 = vmatprep.subr.mxu0 0.0
    %1134 = vmatpush1.msra.mxu0 0.0
    %1135 = vmatprep.subr.mxu0 0.0
    %1136 = vmatpush1.msra.mxu0 0.0
    %1137 = vmatprep.subr.mxu0 0.0
    %1138 = vmatpush1.msra.mxu0 0.0
    %1139 = vmatprep.subr.mxu0 0.0
    %1140 = vmatpush1.msra.mxu0 0.0
    %1141 = vmatprep.subr.mxu0 0.0
    %1142 = vmatpush1.msra.mxu0 0.0
    %1143 = vmatprep.subr.mxu0 0.0
    %1144 = vmatpush1.msra.mxu0 0.0
    %1145 = vmatprep.subr.mxu0 0.0
    %1146 = vmatpush1.msra.mxu0 0.0
    %1147 = vmatprep.subr.mxu0 0.0
    %1148 = vmatpush1.msra.mxu0 0.0
    %1149 = vmatprep.subr.mxu0 0.0
    %1150 = vmatpush1.msra.mxu0 0.0
    %1151 = vmatprep.subr.mxu0 0.0
    %1152 = vmatpush1.msra.mxu0 0.0
    %1153 = vmatprep.subr.mxu0 0.0
    %1154 = vmatpush1.msra.mxu0 0.0
    %1155 = vmatprep.subr.mxu0 0.0
    %1156 = vmatpush1.msra.mxu0 0.0
    %1157 = vmatprep.subr.mxu0 0.0
    %1158 = vmatpush1.msra.mxu0 0.0
    %1159 = vmatprep.mubr.f32.mxu0 0.0
    %1160 = vmatmul.mubr.f32.gmra.mrb[0].mxu0 %v1013
    %v1161 = vpop.f32.mrb[0].mxu0
    %v1162 = vadd.f32 0.0, %v1161
    %v1163 = vpop.f32.mrb[0].mxu0
    %1164 = vmatprep.mubr.f32.mxu0 0.0
    %1165 = vmatmul.mubr.f32.gmra.mrb[0].mxu0 %v1016
    %v1166 = vpop.f32.mrb[0].mxu0
    %v1167 = vadd.f32 0.0, %v1166
    %v1168 = vpop.f32.mrb[0].mxu0
    %1169 = vdwg.mxu0
    %v1171 = vsel %vm333, %v1085, 0
    %1173 = vmatprep.subr.mxu0 0.0
    %1174 = vmatpush1.msra.mxu0 %v53
    %1175 = vmatprep.subr.mxu0 0.0
    %1176 = vmatpush1.msra.mxu0 0.0
    %1177 = vmatprep.subr.mxu0 0.0
    %1178 = vmatpush1.msra.mxu0 0.0
    %1179 = vmatprep.subr.mxu0 0.0
    %1180 = vmatpush1.msra.mxu0 0.0
    %1181 = vmatprep.subr.mxu0 0.0
    %1182 = vmatpush1.msra.mxu0 0.0
    %1183 = vmatprep.subr.mxu0 0.0
    %1184 = vmatpush1.msra.mxu0 0.0
    %1185 = vmatprep.subr.mxu0 0.0
    %1186 = vmatpush1.msra.mxu0 0.0
    %1187 = vmatprep.subr.mxu0 0.0
    %1188 = vmatpush1.msra.mxu0 0.0
    %1189 = vmatprep.subr.mxu0 0.0
    %1190 = vmatpush1.msra.mxu0 0.0
    %1191 = vmatprep.subr.mxu0 0.0
    %1192 = vmatpush1.msra.mxu0 0.0
    %1193 = vmatprep.subr.mxu0 0.0
    %1194 = vmatpush1.msra.mxu0 0.0
    %1195 = vmatprep.subr.mxu0 0.0
    %1196 = vmatpush1.msra.mxu0 0.0
    %1197 = vmatprep.subr.mxu0 0.0
    %1198 = vmatpush1.msra.mxu0 0.0
    %1199 = vmatprep.subr.mxu0 0.0
    %1200 = vmatpush1.msra.mxu0 0.0
    %1201 = vmatprep.subr.mxu0 0.0
    %1202 = vmatpush1.msra.mxu0 0.0
    %1203 = vmatprep.subr.mxu0 0.0
    %1204 = vmatpush1.msra.mxu0 0.0
    %1205 = vmatprep.subr.mxu0 0.0
    %1206 = vmatpush1.msra.mxu0 0.0
    %1207 = vmatprep.subr.mxu0 0.0
    %1208 = vmatpush1.msra.mxu0 0.0
    %1209 = vmatprep.subr.mxu0 0.0
    %1210 = vmatpush1.msra.mxu0 0.0
    %1211 = vmatprep.subr.mxu0 0.0
    %1212 = vmatpush1.msra.mxu0 0.0
    %1213 = vmatprep.subr.mxu0 0.0
    %1214 = vmatpush1.msra.mxu0 0.0
    %1215 = vmatprep.subr.mxu0 0.0
    %1216 = vmatpush1.msra.mxu0 0.0
    %1217 = vmatprep.subr.mxu0 0.0
    %1218 = vmatpush1.msra.mxu0 0.0
    %1219 = vmatprep.subr.mxu0 0.0
    %1220 = vmatpush1.msra.mxu0 0.0
    %1221 = vmatprep.subr.mxu0 0.0
    %1222 = vmatpush1.msra.mxu0 0.0
    %1223 = vmatprep.subr.mxu0 0.0
    %1224 = vmatpush1.msra.mxu0 0.0
    %1225 = vmatprep.subr.mxu0 0.0
    %1226 = vmatpush1.msra.mxu0 0.0
    %1227 = vmatprep.subr.mxu0 0.0
    %1228 = vmatpush1.msra.mxu0 0.0
    %1229 = vmatprep.subr.mxu0 0.0
    %1230 = vmatpush1.msra.mxu0 0.0
    %1231 = vmatprep.subr.mxu0 0.0
    %1232 = vmatpush1.msra.mxu0 0.0
    %1233 = vmatprep.subr.mxu0 0.0
    %1234 = vmatpush1.msra.mxu0 0.0
    %1235 = vmatprep.subr.mxu0 0.0
    %1236 = vmatpush1.msra.mxu0 0.0
    %1237 = vmatprep.mubr.f32.mxu0 0.0
    %1238 = vmatmul.mubr.f32.gmra.mrb[0].mxu0 %v1171
    %v1239 = vpop.f32.mrb[0].mxu0
    %v1240 = vadd.f32 0.0, %v1239
    %v1241 = vpop.f32.mrb[0].mxu0
    %1242 = vdwg.mxu0
    %v1244 = vsel %vm333, %v1090, 0
    %1246 = vmatprep.subr.mxu0 0.0
    %1247 = vmatpush1.msra.mxu0 %v54
    %1248 = vmatprep.subr.mxu0 0.0
    %1249 = vmatpush1.msra.mxu0 0.0
    %1250 = vmatprep.subr.mxu0 0.0
    %1251 = vmatpush1.msra.mxu0 0.0
    %1252 = vmatprep.subr.mxu0 0.0
    %1253 = vmatpush1.msra.mxu0 0.0
    %1254 = vmatprep.subr.mxu0 0.0
    %1255 = vmatpush1.msra.mxu0 0.0
    %1256 = vmatprep.subr.mxu0 0.0
    %1257 = vmatpush1.msra.mxu0 0.0
    %1258 = vmatprep.subr.mxu0 0.0
    %1259 = vmatpush1.msra.mxu0 0.0
    %1260 = vmatprep.subr.mxu0 0.0
    %1261 = vmatpush1.msra.mxu0 0.0
    %1262 = vmatprep.subr.mxu0 0.0
    %1263 = vmatpush1.msra.mxu0 0.0
    %1264 = vmatprep.subr.mxu0 0.0
    %1265 = vmatpush1.msra.mxu0 0.0
    %1266 = vmatprep.subr.mxu0 0.0
    %1267 = vmatpush1.msra.mxu0 0.0
    %1268 = vmatprep.subr.mxu0 0.0
    %1269 = vmatpush1.msra.mxu0 0.0
    %1270 = vmatprep.subr.mxu0 0.0
    %1271 = vmatpush1.msra.mxu0 0.0
    %1272 = vmatprep.subr.mxu0 0.0
    %1273 = vmatpush1.msra.mxu0 0.0
    %1274 = vmatprep.subr.mxu0 0.0
    %1275 = vmatpush1.msra.mxu0 0.0
    %1276 = vmatprep.subr.mxu0 0.0
    %1277 = vmatpush1.msra.mxu0 0.0
    %1278 = vmatprep.subr.mxu0 0.0
    %1279 = vmatpush1.msra.mxu0 0.0
    %1280 = vmatprep.subr.mxu0 0.0
    %1281 = vmatpush1.msra.mxu0 0.0
    %1282 = vmatprep.subr.mxu0 0.0
    %1283 = vmatpush1.msra.mxu0 0.0
    %1284 = vmatprep.subr.mxu0 0.0
    %1285 = vmatpush1.msra.mxu0 0.0
    %1286 = vmatprep.subr.mxu0 0.0
    %1287 = vmatpush1.msra.mxu0 0.0
    %1288 = vmatprep.subr.mxu0 0.0
    %1289 = vmatpush1.msra.mxu0 0.0
    %1290 = vmatprep.subr.mxu0 0.0
    %1291 = vmatpush1.msra.mxu0 0.0
    %1292 = vmatprep.subr.mxu0 0.0
    %1293 = vmatpush1.msra.mxu0 0.0
    %1294 = vmatprep.subr.mxu0 0.0
    %1295 = vmatpush1.msra.mxu0 0.0
    %1296 = vmatprep.subr.mxu0 0.0
    %1297 = vmatpush1.msra.mxu0 0.0
    %1298 = vmatprep.subr.mxu0 0.0
    %1299 = vmatpush1.msra.mxu0 0.0
    %1300 = vmatprep.subr.mxu0 0.0
    %1301 = vmatpush1.msra.mxu0 0.0
    %1302 = vmatprep.subr.mxu0 0.0
    %1303 = vmatpush1.msra.mxu0 0.0
    %1304 = vmatprep.subr.mxu0 0.0
    %1305 = vmatpush1.msra.mxu0 0.0
    %1306 = vmatprep.subr.mxu0 0.0
    %1307 = vmatpush1.msra.mxu0 0.0
    %1308 = vmatprep.subr.mxu0 0.0
    %1309 = vmatpush1.msra.mxu0 0.0
    %1310 = vmatprep.mubr.f32.mxu0 0.0
    %1311 = vmatmul.mubr.f32.gmra.mrb[0].mxu0 %v1244
    %v1312 = vpop.f32.mrb[0].mxu0
    %v1313 = vadd.f32 0.0, %v1312
    %v1314 = vpop.f32.mrb[0].mxu0
    %1315 = vdwg.mxu0
    %1317 = vset.pattern.permute.xlu0 0
    %1318 = vperm.xlu0 %1317, %v1162
    %v1319 = vpop.permute.xlu0 %1318
    %1322 = vset.pattern.permute.xlu0 0
    %1323 = vperm.xlu0 %1322, %v1167
    %v1324 = vpop.permute.xlu0 %1323
    %v1326 = vadd.f32 %v1240, %v1319
    %v1327 = vadd.f32 %v1313, %v1324
    %v1328 = vadd.f32 %v716, %v1326
    %v1329 = vadd.f32 %v717, %v1327
    %s1330 = scalar_lea.vmem %s9, 8
    %v1331 = vld [vmem:[%s1330] sm:$0xff]
    %s1332 = scalar_lea.vmem %s10, 8
    %v1333 = vld [vmem:[%s1332] sm:$0xff]
    %v1334 = vsel %vm66, %v1328, 0.0
    %1335 = vadd.xlane.f32.xlu0 %v1334
    %v1336 = vpop.xlane.xlu0 %1335
    %v1337 = vsel %vm66, %v1329, 0.0
    %1338 = vadd.xlane.f32.xlu0 %v1337
    %v1339 = vpop.xlane.xlu0 %1338
    %v1340 = vrot.slane %v1336, 4
    %v1341 = vadd.f32 %v1336, %v1340
    %v1342 = vrot.slane %v1341, 2
    %v1343 = vadd.f32 %v1341, %v1342
    %v1344 = vrot.slane %v1343, 1
    %v1345 = vadd.f32 %v1343, %v1344
    %v1346 = vrot.slane %v1339, 4
    %v1347 = vadd.f32 %v1339, %v1346
    %v1348 = vrot.slane %v1347, 2
    %v1349 = vadd.f32 %v1347, %v1348
    %v1350 = vrot.slane %v1349, 1
    %v1351 = vadd.f32 %v1349, %v1350
    %v1352 = vmul.f32 %v1345, 0.00390625
    %v1353 = vmul.f32 %v1351, 0.00390625
    %v1354 = vsub.f32 %v1328, %v1352
    %v1355 = vsub.f32 %v1329, %v1353
    %v1356 = vmul.f32 %v1354, %v1354
    %v1357 = vmul.f32 %v1355, %v1355
    %v1358 = vsel %vm66, %v1356, 0.0
    %1359 = vadd.xlane.f32.xlu0 %v1358
    %v1360 = vpop.xlane.xlu0 %1359
    %v1361 = vsel %vm66, %v1357, 0.0
    %1362 = vadd.xlane.f32.xlu0 %v1361
    %v1363 = vpop.xlane.xlu0 %1362
    %v1364 = vrot.slane %v1360, 4
    %v1365 = vadd.f32 %v1360, %v1364
    %v1366 = vrot.slane %v1365, 2
    %v1367 = vadd.f32 %v1365, %v1366
    %v1368 = vrot.slane %v1367, 1
    %v1369 = vadd.f32 %v1367, %v1368
    %v1370 = vrot.slane %v1363, 4
    %v1371 = vadd.f32 %v1363, %v1370
    %v1372 = vrot.slane %v1371, 2
    %v1373 = vadd.f32 %v1371, %v1372
    %v1374 = vrot.slane %v1373, 1
    %v1375 = vadd.f32 %v1373, %v1374
    %v1376 = vmul.f32 %v1369, 0.00390625
    %v1377 = vmul.f32 %v1375, 0.00390625
    %v1378 = vadd.f32 %v1376, 1e-05
    %v1379 = vadd.f32 %v1377, 1e-05
    %v1380 = vrsqrt.pop %v1378
    %v1381 = vrsqrt.pop %v1379
    %v1382 = vmul.f32 %v1354, %v1380
    %v1383 = vmul.f32 %v1355, %v1381
    %v1384 = vmul.f32 %v1382, %v1331
    %v1385 = vmul.f32 %v1383, %v1331
    %v1386 = vadd.f32 %v1384, %v1333
    %v1387 = vadd.f32 %v1385, %v1333
    %v1388 = vld [vmem:[%s11] sm:$0xff]
    %v1389 = vld [vmem:[%s11 + $0x8] sm:$0xff]
    %v1390 = vld [vmem:[%s11 + $0x10] sm:$0xff]
    %v1391 = vld [vmem:[%s11 + $0x18] sm:$0xff]
    %v1392 = vld [vmem:[%s12] sm:$0x1]
    %v1394 = vlaneseq
    %v1395 = vshrl.u32 %v1394, 7
    %v1396 = vsub.s32 0, %v1395
    %v1397 = vrot.slane %v1392, %v1396
    %v1400 = vsel %vm66, %v1386, 0
    %v1403 = vsel %vm66, %v1387, 0
    %1405 = vmatprep.subr.mxu0 0.0
    %1406 = vmatpush1.msra.mxu0 %v1388
    %1407 = vmatprep.subr.mxu0 0.0
    %1408 = vmatpush1.msra.mxu0 %v1389
    %1409 = vmatprep.subr.mxu0 0.0
    %1410 = vmatpush1.msra.mxu0 %v1390
    %1411 = vmatprep.subr.mxu0 0.0
    %1412 = vmatpush1.msra.mxu0 %v1391
    %1413 = vmatprep.subr.mxu0 0.0
    %1414 = vmatpush1.msra.mxu0 0.0
    %1415 = vmatprep.subr.mxu0 0.0
    %1416 = vmatpush1.msra.mxu0 0.0
    %1417 = vmatprep.subr.mxu0 0.0
    %1418 = vmatpush1.msra.mxu0 0.0
    %1419 = vmatprep.subr.mxu0 0.0
    %1420 = vmatpush1.msra.mxu0 0.0
    %1421 = vmatprep.subr.mxu0 0.0
    %1422 = vmatpush1.msra.mxu0 0.0
    %1423 = vmatprep.subr.mxu0 0.0
    %1424 = vmatpush1.msra.mxu0 0.0
    %1425 = vmatprep.subr.mxu0 0.0
    %1426 = vmatpush1.msra.mxu0 0.0
    %1427 = vmatprep.subr.mxu0 0.0
    %1428 = vmatpush1.msra.mxu0 0.0
    %1429 = vmatprep.subr.mxu0 0.0
    %1430 = vmatpush1.msra.mxu0 0.0
    %1431 = vmatprep.subr.mxu0 0.0
    %1432 = vmatpush1.msra.mxu0 0.0
    %1433 = vmatprep.subr.mxu0 0.0
    %1434 = vmatpush1.msra.mxu0 0.0
    %1435 = vmatprep.subr.mxu0 0.0
    %1436 = vmatpush1.msra.mxu0 0.0
    %1437 = vmatprep.subr.mxu0 0.0
    %1438 = vmatpush1.msra.mxu0 0.0
    %1439 = vmatprep.subr.mxu0 0.0
    %1440 = vmatpush1.msra.mxu0 0.0
    %1441 = vmatprep.subr.mxu0 0.0
    %1442 = vmatpush1.msra.mxu0 0.0
    %1443 = vmatprep.subr.mxu0 0.0
    %1444 = vmatpush1.msra.mxu0 0.0
    %1445 = vmatprep.subr.mxu0 0.0
    %1446 = vmatpush1.msra.mxu0 0.0
    %1447 = vmatprep.subr.mxu0 0.0
    %1448 = vmatpush1.msra.mxu0 0.0
    %1449 = vmatprep.subr.mxu0 0.0
    %1450 = vmatpush1.msra.mxu0 0.0
    %1451 = vmatprep.subr.mxu0 0.0
    %1452 = vmatpush1.msra.mxu0 0.0
    %1453 = vmatprep.subr.mxu0 0.0
    %1454 = vmatpush1.msra.mxu0 0.0
    %1455 = vmatprep.subr.mxu0 0.0
    %1456 = vmatpush1.msra.mxu0 0.0
    %1457 = vmatprep.subr.mxu0 0.0
    %1458 = vmatpush1.msra.mxu0 0.0
    %1459 = vmatprep.subr.mxu0 0.0
    %1460 = vmatpush1.msra.mxu0 0.0
    %1461 = vmatprep.subr.mxu0 0.0
    %1462 = vmatpush1.msra.mxu0 0.0
    %1463 = vmatprep.subr.mxu0 0.0
    %1464 = vmatpush1.msra.mxu0 0.0
    %1465 = vmatprep.subr.mxu0 0.0
    %1466 = vmatpush1.msra.mxu0 0.0
    %1467 = vmatprep.subr.mxu0 0.0
    %1468 = vmatpush1.msra.mxu0 0.0
    %1469 = vmatprep.mubr.f32.mxu0 0.0
    %1470 = vmatmul.mubr.f32.gmra.mrb[0].mxu0 %v1400
    %v1471 = vpop.f32.mrb[0].mxu0
    %v1472 = vadd.f32 %v1397, %v1471
    %v1473 = vpop.f32.mrb[0].mxu0
    %1474 = vmatprep.mubr.f32.mxu0 0.0
    %1475 = vmatmul.mubr.f32.gmra.mrb[0].mxu0 %v1403
    %v1476 = vpop.f32.mrb[0].mxu0
    %v1477 = vadd.f32 %v1397, %v1476
    %v1478 = vpop.f32.mrb[0].mxu0
    %1479 = vdwg.mxu0
    %v1480 = vmax.f32 %v1472, 0.0
    %v1481 = vmax.f32 %v1477, 0.0
    %v1482 = vld [vmem:[%s13] sm:$0xff]
    %v1483 = vld [vmem:[%s13 + $0x8] sm:$0xff]
    %v1484 = vld [vmem:[%s13 + $0x10] sm:$0xff]
    %v1485 = vld [vmem:[%s13 + $0x18] sm:$0xff]
    %v1486 = vld [vmem:[%s13 + $0x20] sm:$0xff]
    %v1487 = vld [vmem:[%s13 + $0x28] sm:$0xff]
    %v1488 = vld [vmem:[%s13 + $0x30] sm:$0xff]
    %v1489 = vld [vmem:[%s13 + $0x38] sm:$0xff]
    %v1490 = vld [vmem:[%s14] sm:$0x1]
    %v1492 = vlaneseq
    %v1493 = vshrl.u32 %v1492, 7
    %v1494 = vsub.s32 0, %v1493
    %v1495 = vrot.slane %v1490, %v1494
    %vm1497 = vcmask 523264
    %v1499 = vsel %vm1497, %v1480, 0
    %v1502 = vsel %vm1497, %v1481, 0
    %1504 = vmatprep.subr.mxu0 0.0
    %1505 = vmatpush1.msra.mxu0 %v1482
    %1506 = vmatprep.subr.mxu0 0.0
    %1507 = vmatpush1.msra.mxu0 %v1483
    %1508 = vmatprep.subr.mxu0 0.0
    %1509 = vmatpush1.msra.mxu0 %v1484
    %1510 = vmatprep.subr.mxu0 0.0
    %1511 = vmatpush1.msra.mxu0 %v1485
    %1512 = vmatprep.subr.mxu0 0.0
    %1513 = vmatpush1.msra.mxu0 %v1486
    %1514 = vmatprep.subr.mxu0 0.0
    %1515 = vmatpush1.msra.mxu0 %v1487
    %1516 = vmatprep.subr.mxu0 0.0
    %1517 = vmatpush1.msra.mxu0 %v1488
    %1518 = vmatprep.subr.mxu0 0.0
    %1519 = vmatpush1.msra.mxu0 %v1489
    %1520 = vmatprep.subr.mxu0 0.0
    %1521 = vmatpush1.msra.mxu0 0.0
    %1522 = vmatprep.subr.mxu0 0.0
    %1523 = vmatpush1.msra.mxu0 0.0
    %1524 = vmatprep.subr.mxu0 0.0
    %1525 = vmatpush1.msra.mxu0 0.0
    %1526 = vmatprep.subr.mxu0 0.0
    %1527 = vmatpush1.msra.mxu0 0.0
    %1528 = vmatprep.subr.mxu0 0.0
    %1529 = vmatpush1.msra.mxu0 0.0
    %1530 = vmatprep.subr.mxu0 0.0
    %1531 = vmatpush1.msra.mxu0 0.0
    %1532 = vmatprep.subr.mxu0 0.0
    %1533 = vmatpush1.msra.mxu0 0.0
    %1534 = vmatprep.subr.mxu0 0.0
    %1535 = vmatpush1.msra.mxu0 0.0
    %1536 = vmatprep.subr.mxu0 0.0
    %1537 = vmatpush1.msra.mxu0 0.0
    %1538 = vmatprep.subr.mxu0 0.0
    %1539 = vmatpush1.msra.mxu0 0.0
    %1540 = vmatprep.subr.mxu0 0.0
    %1541 = vmatpush1.msra.mxu0 0.0
    %1542 = vmatprep.subr.mxu0 0.0
    %1543 = vmatpush1.msra.mxu0 0.0
    %1544 = vmatprep.subr.mxu0 0.0
    %1545 = vmatpush1.msra.mxu0 0.0
    %1546 = vmatprep.subr.mxu0 0.0
    %1547 = vmatpush1.msra.mxu0 0.0
    %1548 = vmatprep.subr.mxu0 0.0
    %1549 = vmatpush1.msra.mxu0 0.0
    %1550 = vmatprep.subr.mxu0 0.0
    %1551 = vmatpush1.msra.mxu0 0.0
    %1552 = vmatprep.subr.mxu0 0.0
    %1553 = vmatpush1.msra.mxu0 0.0
    %1554 = vmatprep.subr.mxu0 0.0
    %1555 = vmatpush1.msra.mxu0 0.0
    %1556 = vmatprep.subr.mxu0 0.0
    %1557 = vmatpush1.msra.mxu0 0.0
    %1558 = vmatprep.subr.mxu0 0.0
    %1559 = vmatpush1.msra.mxu0 0.0
    %1560 = vmatprep.subr.mxu0 0.0
    %1561 = vmatpush1.msra.mxu0 0.0
    %1562 = vmatprep.subr.mxu0 0.0
    %1563 = vmatpush1.msra.mxu0 0.0
    %1564 = vmatprep.subr.mxu0 0.0
    %1565 = vmatpush1.msra.mxu0 0.0
    %1566 = vmatprep.subr.mxu0 0.0
    %1567 = vmatpush1.msra.mxu0 0.0
    %1568 = vmatprep.mubr.f32.mxu0 0.0
    %1569 = vmatmul.mubr.f32.gmra.mrb[0].mxu0 %v1499
    %v1570 = vpop.f32.mrb[0].mxu0
    %v1571 = vadd.f32 %v1495, %v1570
    %v1572 = vpop.f32.mrb[0].mxu0
    %1573 = vmatprep.mubr.f32.mxu0 0.0
    %1574 = vmatmul.mubr.f32.gmra.mrb[0].mxu0 %v1502
    %v1575 = vpop.f32.mrb[0].mxu0
    %v1576 = vadd.f32 %v1495, %v1575
    %v1577 = vpop.f32.mrb[0].mxu0
    %1578 = vdwg.mxu0
    %v1579 = vadd.f32 %v1386, %v1571
    %v1580 = vadd.f32 %v1387, %v1576
    %s1581 = scalar_lea.vmem %s9, 16
    %v1582 = vld [vmem:[%s1581] sm:$0xff]
    %s1583 = scalar_lea.vmem %s10, 16
    %v1584 = vld [vmem:[%s1583] sm:$0xff]
    %v1585 = vsel %vm66, %v1579, 0.0
    %1586 = vadd.xlane.f32.xlu0 %v1585
    %v1587 = vpop.xlane.xlu0 %1586
    %v1588 = vsel %vm66, %v1580, 0.0
    %1589 = vadd.xlane.f32.xlu0 %v1588
    %v1590 = vpop.xlane.xlu0 %1589
    %v1591 = vrot.slane %v1587, 4
    %v1592 = vadd.f32 %v1587, %v1591
    %v1593 = vrot.slane %v1592, 2
    %v1594 = vadd.f32 %v1592, %v1593
    %v1595 = vrot.slane %v1594, 1
    %v1596 = vadd.f32 %v1594, %v1595
    %v1597 = vrot.slane %v1590, 4
    %v1598 = vadd.f32 %v1590, %v1597
    %v1599 = vrot.slane %v1598, 2
    %v1600 = vadd.f32 %v1598, %v1599
    %v1601 = vrot.slane %v1600, 1
    %v1602 = vadd.f32 %v1600, %v1601
    %v1603 = vmul.f32 %v1596, 0.00390625
    %v1604 = vmul.f32 %v1602, 0.00390625
    %v1605 = vsub.f32 %v1579, %v1603
    %v1606 = vsub.f32 %v1580, %v1604
    %v1607 = vmul.f32 %v1605, %v1605
    %v1608 = vmul.f32 %v1606, %v1606
    %v1609 = vsel %vm66, %v1607, 0.0
    %1610 = vadd.xlane.f32.xlu0 %v1609
    %v1611 = vpop.xlane.xlu0 %1610
    %v1612 = vsel %vm66, %v1608, 0.0
    %1613 = vadd.xlane.f32.xlu0 %v1612
    %v1614 = vpop.xlane.xlu0 %1613
    %v1615 = vrot.slane %v1611, 4
    %v1616 = vadd.f32 %v1611, %v1615
    %v1617 = vrot.slane %v1616, 2
    %v1618 = vadd.f32 %v1616, %v1617
    %v1619 = vrot.slane %v1618, 1
    %v1620 = vadd.f32 %v1618, %v1619
    %v1621 = vrot.slane %v1614, 4
    %v1622 = vadd.f32 %v1614, %v1621
    %v1623 = vrot.slane %v1622, 2
    %v1624 = vadd.f32 %v1622, %v1623
    %v1625 = vrot.slane %v1624, 1
    %v1626 = vadd.f32 %v1624, %v1625
    %v1627 = vmul.f32 %v1620, 0.00390625
    %v1628 = vmul.f32 %v1626, 0.00390625
    %v1629 = vadd.f32 %v1627, 1e-05
    %v1630 = vadd.f32 %v1628, 1e-05
    %v1631 = vrsqrt.pop %v1629
    %v1632 = vrsqrt.pop %v1630
    %v1633 = vmul.f32 %v1605, %v1631
    %v1634 = vmul.f32 %v1606, %v1632
    %v1635 = vmul.f32 %v1633, %v1582
    %v1636 = vmul.f32 %v1634, %v1582
    %v1637 = vadd.f32 %v1635, %v1584
    %v1638 = vadd.f32 %v1636, %v1584
    %s1639 = scalar_lea.vmem %s2, 64
    %v1640 = vld [vmem:[%s1639] sm:$0xff]
    %v1641 = vld [vmem:[%s1639 + $0x8] sm:$0xff]
    %v1642 = vld [vmem:[%s1639 + $0x10] sm:$0xff]
    %v1643 = vld [vmem:[%s1639 + $0x18] sm:$0xff]
    %s1644 = scalar_lea.vmem %s3, 2
    %v1645 = vld [vmem:[%s1644] sm:$0x1]
    %v1647 = vlaneseq
    %v1648 = vshrl.u32 %v1647, 7
    %v1649 = vsub.s32 0, %v1648
    %v1650 = vrot.slane %v1645, %v1649
    %v1653 = vsel %vm66, %v1637, 0
    %v1656 = vsel %vm66, %v1638, 0
    %1658 = vmatprep.subr.mxu0 0.0
    %1659 = vmatpush1.msra.mxu0 %v1640
    %1660 = vmatprep.subr.mxu0 0.0
    %1661 = vmatpush1.msra.mxu0 %v1641
    %1662 = vmatprep.subr.mxu0 0.0
    %1663 = vmatpush1.msra.mxu0 %v1642
    %1664 = vmatprep.subr.mxu0 0.0
    %1665 = vmatpush1.msra.mxu0 %v1643
    %1666 = vmatprep.subr.mxu0 0.0
    %1667 = vmatpush1.msra.mxu0 0.0
    %1668 = vmatprep.subr.mxu0 0.0
    %1669 = vmatpush1.msra.mxu0 0.0
    %1670 = vmatprep.subr.mxu0 0.0
    %1671 = vmatpush1.msra.mxu0 0.0
    %1672 = vmatprep.subr.mxu0 0.0
    %1673 = vmatpush1.msra.mxu0 0.0
    %1674 = vmatprep.subr.mxu0 0.0
    %1675 = vmatpush1.msra.mxu0 0.0
    %1676 = vmatprep.subr.mxu0 0.0
    %1677 = vmatpush1.msra.mxu0 0.0
    %1678 = vmatprep.subr.mxu0 0.0
    %1679 = vmatpush1.msra.mxu0 0.0
    %1680 = vmatprep.subr.mxu0 0.0
    %1681 = vmatpush1.msra.mxu0 0.0
    %1682 = vmatprep.subr.mxu0 0.0
    %1683 = vmatpush1.msra.mxu0 0.0
    %1684 = vmatprep.subr.mxu0 0.0
    %1685 = vmatpush1.msra.mxu0 0.0
    %1686 = vmatprep.subr.mxu0 0.0
    %1687 = vmatpush1.msra.mxu0 0.0
    %1688 = vmatprep.subr.mxu0 0.0
    %1689 = vmatpush1.msra.mxu0 0.0
    %1690 = vmatprep.subr.mxu0 0.0
    %1691 = vmatpush1.msra.mxu0 0.0
    %1692 = vmatprep.subr.mxu0 0.0
    %1693 = vmatpush1.msra.mxu0 0.0
    %1694 = vmatprep.subr.mxu0 0.0
    %1695 = vmatpush1.msra.mxu0 0.0
    %1696 = vmatprep.subr.mxu0 0.0
    %1697 = vmatpush1.msra.mxu0 0.0
    %1698 = vmatprep.subr.mxu0 0.0
    %1699 = vmatpush1.msra.mxu0 0.0
    %1700 = vmatprep.subr.mxu0 0.0
    %1701 = vmatpush1.msra.mxu0 0.0
    %1702 = vmatprep.subr.mxu0 0.0
    %1703 = vmatpush1.msra.mxu0 0.0
    %1704 = vmatprep.subr.mxu0 0.0
    %1705 = vmatpush1.msra.mxu0 0.0
    %1706 = vmatprep.subr.mxu0 0.0
    %1707 = vmatpush1.msra.mxu0 0.0
    %1708 = vmatprep.subr.mxu0 0.0
    %1709 = vmatpush1.msra.mxu0 0.0
    %1710 = vmatprep.subr.mxu0 0.0
    %1711 = vmatpush1.msra.mxu0 0.0
    %1712 = vmatprep.subr.mxu0 0.0
    %1713 = vmatpush1.msra.mxu0 0.0
    %1714 = vmatprep.subr.mxu0 0.0
    %1715 = vmatpush1.msra.mxu0 0.0
    %1716 = vmatprep.subr.mxu0 0.0
    %1717 = vmatpush1.msra.mxu0 0.0
    %1718 = vmatprep.subr.mxu0 0.0
    %1719 = vmatpush1.msra.mxu0 0.0
    %1720 = vmatprep.subr.mxu0 0.0
    %1721 = vmatpush1.msra.mxu0 0.0
    %1722 = vmatprep.mubr.f32.mxu0 0.0
    %1723 = vmatmul.mubr.f32.gmra.mrb[0].mxu0 %v1653
    %v1724 = vpop.f32.mrb[0].mxu0
    %v1725 = vadd.f32 %v1650, %v1724
    %v1726 = vpop.f32.mrb[0].mxu0
    %1727 = vmatprep.mubr.f32.mxu0 0.0
    %1728 = vmatmul.mubr.f32.gmra.mrb[0].mxu0 %v1656
    %v1729 = vpop.f32.mrb[0].mxu0
    %v1730 = vadd.f32 %v1650, %v1729
    %v1731 = vpop.f32.mrb[0].mxu0
    %1732 = vdwg.mxu0
    %v1733 = vmul.f32 %v1725, %v1725
    %v1734 = vmul.f32 %v1730, %v1730
    %s1735 = scalar_lea.vmem %s6, 64
    %v1736 = vld [vmem:[%s1735] sm:$0xff]
    %v1737 = vld [vmem:[%s1735 + $0x8] sm:$0xff]
    %v1738 = vld [vmem:[%s1735 + $0x10] sm:$0xff]
    %v1739 = vld [vmem:[%s1735 + $0x18] sm:$0xff]
    %s1740 = scalar_lea.vmem %s7, 64
    %v1741 = vld [vmem:[%s1740] sm:$0xff]
    %v1742 = vld [vmem:[%s1740 + $0x8] sm:$0xff]
    %v1743 = vld [vmem:[%s1740 + $0x10] sm:$0xff]
    %v1744 = vld [vmem:[%s1740 + $0x18] sm:$0xff]
    %v1746 = vsel %vm66, %v1725, 0
    %v1749 = vsel %vm66, %v1730, 0
    %1751 = vmatprep.subr.mxu0 0.0
    %1752 = vmatpush1.msra.mxu0 %v1741
    %1753 = vmatprep.subr.mxu0 0.0
    %1754 = vmatpush1.msra.mxu0 %v1742
    %1755 = vmatprep.subr.mxu0 0.0
    %1756 = vmatpush1.msra.mxu0 %v1743
    %1757 = vmatprep.subr.mxu0 0.0
    %1758 = vmatpush1.msra.mxu0 %v1744
    %1759 = vmatprep.subr.mxu0 0.0
    %1760 = vmatpush1.msra.mxu0 0.0
    %1761 = vmatprep.subr.mxu0 0.0
    %1762 = vmatpush1.msra.mxu0 0.0
    %1763 = vmatprep.subr.mxu0 0.0
    %1764 = vmatpush1.msra.mxu0 0.0
    %1765 = vmatprep.subr.mxu0 0.0
    %1766 = vmatpush1.msra.mxu0 0.0
    %1767 = vmatprep.subr.mxu0 0.0
    %1768 = vmatpush1.msra.mxu0 0.0
    %1769 = vmatprep.subr.mxu0 0.0
    %1770 = vmatpush1.msra.mxu0 0.0
    %1771 = vmatprep.subr.mxu0 0.0
    %1772 = vmatpush1.msra.mxu0 0.0
    %1773 = vmatprep.subr.mxu0 0.0
    %1774 = vmatpush1.msra.mxu0 0.0
    %1775 = vmatprep.subr.mxu0 0.0
    %1776 = vmatpush1.msra.mxu0 0.0
    %1777 = vmatprep.subr.mxu0 0.0
    %1778 = vmatpush1.msra.mxu0 0.0
    %1779 = vmatprep.subr.mxu0 0.0
    %1780 = vmatpush1.msra.mxu0 0.0
    %1781 = vmatprep.subr.mxu0 0.0
    %1782 = vmatpush1.msra.mxu0 0.0
    %1783 = vmatprep.subr.mxu0 0.0
    %1784 = vmatpush1.msra.mxu0 0.0
    %1785 = vmatprep.subr.mxu0 0.0
    %1786 = vmatpush1.msra.mxu0 0.0
    %1787 = vmatprep.subr.mxu0 0.0
    %1788 = vmatpush1.msra.mxu0 0.0
    %1789 = vmatprep.subr.mxu0 0.0
    %1790 = vmatpush1.msra.mxu0 0.0
    %1791 = vmatprep.subr.mxu0 0.0
    %1792 = vmatpush1.msra.mxu0 0.0
    %1793 = vmatprep.subr.mxu0 0.0
    %1794 = vmatpush1.msra.mxu0 0.0
    %1795 = vmatprep.subr.mxu0 0.0
    %1796 = vmatpush1.msra.mxu0 0.0
    %1797 = vmatprep.subr.mxu0 0.0
    %1798 = vmatpush1.msra.mxu0 0.0
    %1799 = vmatprep.subr.mxu0 0.0
    %1800 = vmatpush1.msra.mxu0 0.0
    %1801 = vmatprep.subr.mxu0 0.0
    %1802 = vmatpush1.msra.mxu0 0.0
    %1803 = vmatprep.subr.mxu0 0.0
    %1804 = vmatpush1.msra.mxu0 0.0
    %1805 = vmatprep.subr.mxu0 0.0
    %1806 = vmatpush1.msra.mxu0 0.0
    %1807 = vmatprep.subr.mxu0 0.0
    %1808 = vmatpush1.msra.mxu0 0.0
    %1809 = vmatprep.subr.mxu0 0.0
    %1810 = vmatpush1.msra.mxu0 0.0
    %1811 = vmatprep.subr.mxu0 0.0
    %1812 = vmatpush1.msra.mxu0 0.0
    %1813 = vmatprep.subr.mxu0 0.0
    %1814 = vmatpush1.msra.mxu0 0.0
    %1815 = vmatprep.mubr.f32.mxu0 0.0
    %1816 = vmatmul.mubr.f32.gmra.mrb[0].mxu0 %v1746
    %v1817 = vpop.f32.mrb[0].mxu0
    %v1818 = vadd.f32 0.0, %v1817
    %v1819 = vpop.f32.mrb[0].mxu0
    %1820 = vmatprep.mubr.f32.mxu0 0.0
    %1821 = vmatmul.mubr.f32.gmra.mrb[0].mxu0 %v1749
    %v1822 = vpop.f32.mrb[0].mxu0
    %v1823 = vadd.f32 0.0, %v1822
    %v1824 = vpop.f32.mrb[0].mxu0
    %1825 = vdwg.mxu0
    %v1827 = vsel %vm66, %v1733, 0
    %v1830 = vsel %vm66, %v1734, 0
    %1832 = vmatprep.subr.mxu0 0.0
    %1833 = vmatpush1.msra.mxu0 %v1736
    %1834 = vmatprep.subr.mxu0 0.0
    %1835 = vmatpush1.msra.mxu0 %v1737
    %1836 = vmatprep.subr.mxu0 0.0
    %1837 = vmatpush1.msra.mxu0 %v1738
    %1838 = vmatprep.subr.mxu0 0.0
    %1839 = vmatpush1.msra.mxu0 %v1739
    %1840 = vmatprep.subr.mxu0 0.0
    %1841 = vmatpush1.msra.mxu0 0.0
    %1842 = vmatprep.subr.mxu0 0.0
    %1843 = vmatpush1.msra.mxu0 0.0
    %1844 = vmatprep.subr.mxu0 0.0
    %1845 = vmatpush1.msra.mxu0 0.0
    %1846 = vmatprep.subr.mxu0 0.0
    %1847 = vmatpush1.msra.mxu0 0.0
    %1848 = vmatprep.subr.mxu0 0.0
    %1849 = vmatpush1.msra.mxu0 0.0
    %1850 = vmatprep.subr.mxu0 0.0
    %1851 = vmatpush1.msra.mxu0 0.0
    %1852 = vmatprep.subr.mxu0 0.0
    %1853 = vmatpush1.msra.mxu0 0.0
    %1854 = vmatprep.subr.mxu0 0.0
    %1855 = vmatpush1.msra.mxu0 0.0
    %1856 = vmatprep.subr.mxu0 0.0
    %1857 = vmatpush1.msra.mxu0 0.0
    %1858 = vmatprep.subr.mxu0 0.0
    %1859 = vmatpush1.msra.mxu0 0.0
    %1860 = vmatprep.subr.mxu0 0.0
    %1861 = vmatpush1.msra.mxu0 0.0
    %1862 = vmatprep.subr.mxu0 0.0
    %1863 = vmatpush1.msra.mxu0 0.0
    %1864 = vmatprep.subr.mxu0 0.0
    %1865 = vmatpush1.msra.mxu0 0.0
    %1866 = vmatprep.subr.mxu0 0.0
    %1867 = vmatpush1.msra.mxu0 0.0
    %1868 = vmatprep.subr.mxu0 0.0
    %1869 = vmatpush1.msra.mxu0 0.0
    %1870 = vmatprep.subr.mxu0 0.0
    %1871 = vmatpush1.msra.mxu0 0.0
    %1872 = vmatprep.subr.mxu0 0.0
    %1873 = vmatpush1.msra.mxu0 0.0
    %1874 = vmatprep.subr.mxu0 0.0
    %1875 = vmatpush1.msra.mxu0 0.0
    %1876 = vmatprep.subr.mxu0 0.0
    %1877 = vmatpush1.msra.mxu0 0.0
    %1878 = vmatprep.subr.mxu0 0.0
    %1879 = vmatpush1.msra.mxu0 0.0
    %1880 = vmatprep.subr.mxu0 0.0
    %1881 = vmatpush1.msra.mxu0 0.0
    %1882 = vmatprep.subr.mxu0 0.0
    %1883 = vmatpush1.msra.mxu0 0.0
    %1884 = vmatprep.subr.mxu0 0.0
    %1885 = vmatpush1.msra.mxu0 0.0
    %1886 = vmatprep.subr.mxu0 0.0
    %1887 = vmatpush1.msra.mxu0 0.0
    %1888 = vmatprep.subr.mxu0 0.0
    %1889 = vmatpush1.msra.mxu0 0.0
    %1890 = vmatprep.subr.mxu0 0.0
    %1891 = vmatpush1.msra.mxu0 0.0
    %1892 = vmatprep.subr.mxu0 0.0
    %1893 = vmatpush1.msra.mxu0 0.0
    %1894 = vmatprep.subr.mxu0 0.0
    %1895 = vmatpush1.msra.mxu0 0.0
    %1896 = vmatprep.mubr.f32.mxu0 0.0
    %1897 = vmatmul.mubr.f32.gmra.mrb[0].mxu0 %v1827
    %v1898 = vpop.f32.mrb[0].mxu0
    %v1899 = vadd.f32 %v1818, %v1898
    %v1900 = vpop.f32.mrb[0].mxu0
    %1901 = vmatprep.mubr.f32.mxu0 0.0
    %1902 = vmatmul.mubr.f32.gmra.mrb[0].mxu0 %v1830
    %v1903 = vpop.f32.mrb[0].mxu0
    %v1904 = vadd.f32 %v1823, %v1903
    %v1905 = vpop.f32.mrb[0].mxu0
    %1906 = vdwg.mxu0
    %s1907 = scalar_lea.vmem %s8, 2
    %v1908 = vld [vmem:[%s1907] sm:$0x1]
    %v1910 = vlaneseq
    %v1911 = vshrl.u32 %v1910, 7
    %v1912 = vsub.s32 0, %v1911
    %v1913 = vrot.slane %v1908, %v1912
    %v1915 = vadd.f32 %v1899, %v1913
    %v1916 = vadd.f32 %v1904, %v1913
    %v1917 = vmul.f32 %v1915, 1.442695
    %v1918 = vpow.pop %v1917
    %v1919 = vmul.f32 %v1916, 1.442695
    %v1920 = vpow.pop %v1919
    %v1921 = vsel %vm333, %v1918, 0.0
    %1922 = vadd.xlane.f32.xlu0 %v1921
    %v1923 = vpop.xlane.xlu0 %1922
    %v1924 = vsel %vm333, %v1920, 0.0
    %1925 = vadd.xlane.f32.xlu0 %v1924
    %v1926 = vpop.xlane.xlu0 %1925
    %v1927 = vrcp.pop %v1923
    %v1928 = vrcp.pop %v1926
    %v1929 = vmul.f32 %v1918, %v1927
    %v1930 = vmul.f32 %v1920, %v1928
    %s1931 = scalar_lea.vmem %s4, 16
    %v1932 = vld [vmem:[%s1931] sm:$0xff]
    %v1934 = vsel %vm333, %v1929, 0
    %v1937 = vsel %vm333, %v1930, 0
    %1939 = vmatprep.subr.mxu0 0.0
    %1940 = vmatpush1.msra.mxu0 %v1932
    %1941 = vmatprep.subr.mxu0 0.0
    %1942 = vmatpush1.msra.mxu0 0.0
    %1943 = vmatprep.subr.mxu0 0.0
    %1944 = vmatpush1.msra.mxu0 0.0
    %1945 = vmatprep.subr.mxu0 0.0
    %1946 = vmatpush1.msra.mxu0 0.0
    %1947 = vmatprep.subr.mxu0 0.0
    %1948 = vmatpush1.msra.mxu0 0.0
    %1949 = vmatprep.subr.mxu0 0.0
    %1950 = vmatpush1.msra.mxu0 0.0
    %1951 = vmatprep.subr.mxu0 0.0
    %1952 = vmatpush1.msra.mxu0 0.0
    %1953 = vmatprep.subr.mxu0 0.0
    %1954 = vmatpush1.msra.mxu0 0.0
    %1955 = vmatprep.subr.mxu0 0.0
    %1956 = vmatpush1.msra.mxu0 0.0
    %1957 = vmatprep.subr.mxu0 0.0
    %1958 = vmatpush1.msra.mxu0 0.0
    %1959 = vmatprep.subr.mxu0 0.0
    %1960 = vmatpush1.msra.mxu0 0.0
    %1961 = vmatprep.subr.mxu0 0.0
    %1962 = vmatpush1.msra.mxu0 0.0
    %1963 = vmatprep.subr.mxu0 0.0
    %1964 = vmatpush1.msra.mxu0 0.0
    %1965 = vmatprep.subr.mxu0 0.0
    %1966 = vmatpush1.msra.mxu0 0.0
    %1967 = vmatprep.subr.mxu0 0.0
    %1968 = vmatpush1.msra.mxu0 0.0
    %1969 = vmatprep.subr.mxu0 0.0
    %1970 = vmatpush1.msra.mxu0 0.0
    %1971 = vmatprep.subr.mxu0 0.0
    %1972 = vmatpush1.msra.mxu0 0.0
    %1973 = vmatprep.subr.mxu0 0.0
    %1974 = vmatpush1.msra.mxu0 0.0
    %1975 = vmatprep.subr.mxu0 0.0
    %1976 = vmatpush1.msra.mxu0 0.0
    %1977 = vmatprep.subr.mxu0 0.0
    %1978 = vmatpush1.msra.mxu0 0.0
    %1979 = vmatprep.subr.mxu0 0.0
    %1980 = vmatpush1.msra.mxu0 0.0
    %1981 = vmatprep.subr.mxu0 0.0
    %1982 = vmatpush1.msra.mxu0 0.0
    %1983 = vmatprep.subr.mxu0 0.0
    %1984 = vmatpush1.msra.mxu0 0.0
    %1985 = vmatprep.subr.mxu0 0.0
    %1986 = vmatpush1.msra.mxu0 0.0
    %1987 = vmatprep.subr.mxu0 0.0
    %1988 = vmatpush1.msra.mxu0 0.0
    %1989 = vmatprep.subr.mxu0 0.0
    %1990 = vmatpush1.msra.mxu0 0.0
    %1991 = vmatprep.subr.mxu0 0.0
    %1992 = vmatpush1.msra.mxu0 0.0
    %1993 = vmatprep.subr.mxu0 0.0
    %1994 = vmatpush1.msra.mxu0 0.0
    %1995 = vmatprep.subr.mxu0 0.0
    %1996 = vmatpush1.msra.mxu0 0.0
    %1997 = vmatprep.subr.mxu0 0.0
    %1998 = vmatpush1.msra.mxu0 0.0
    %1999 = vmatprep.subr.mxu0 0.0
    %2000 = vmatpush1.msra.mxu0 0.0
    %2001 = vmatprep.subr.mxu0 0.0
    %2002 = vmatpush1.msra.mxu0 0.0
    %2003 = vmatprep.mubr.f32.mxu0 0.0
    %2004 = vmatmul.mubr.f32.gmra.mrb[0].mxu0 %v1934
    %v2005 = vpop.f32.mrb[0].mxu0
    %v2006 = vadd.f32 0.0, %v2005
    %v2007 = vpop.f32.mrb[0].mxu0
    %2008 = vmatprep.mubr.f32.mxu0 0.0
    %2009 = vmatmul.mubr.f32.gmra.mrb[0].mxu0 %v1937
    %v2010 = vpop.f32.mrb[0].mxu0
    %v2011 = vadd.f32 0.0, %v2010
    %v2012 = vpop.f32.mrb[0].mxu0
    %2013 = vdwg.mxu0
    %s2014 = scalar_lea.vmem %s5, 16
    %v2015 = vld [vmem:[%s2014] sm:$0xff]
    %2016 = vmatprep.subr.mxu0 0.0
    %2017 = vmatpush1.msra.mxu0 %v2015
    %2018 = vmatprep.subr.mxu0 0.0
    %2019 = vmatpush1.msra.mxu0 0.0
    %2020 = vmatprep.subr.mxu0 0.0
    %2021 = vmatpush1.msra.mxu0 0.0
    %2022 = vmatprep.subr.mxu0 0.0
    %2023 = vmatpush1.msra.mxu0 0.0
    %2024 = vmatprep.subr.mxu0 0.0
    %2025 = vmatpush1.msra.mxu0 0.0
    %2026 = vmatprep.subr.mxu0 0.0
    %2027 = vmatpush1.msra.mxu0 0.0
    %2028 = vmatprep.subr.mxu0 0.0
    %2029 = vmatpush1.msra.mxu0 0.0
    %2030 = vmatprep.subr.mxu0 0.0
    %2031 = vmatpush1.msra.mxu0 0.0
    %2032 = vmatprep.subr.mxu0 0.0
    %2033 = vmatpush1.msra.mxu0 0.0
    %2034 = vmatprep.subr.mxu0 0.0
    %2035 = vmatpush1.msra.mxu0 0.0
    %2036 = vmatprep.subr.mxu0 0.0
    %2037 = vmatpush1.msra.mxu0 0.0
    %2038 = vmatprep.subr.mxu0 0.0
    %2039 = vmatpush1.msra.mxu0 0.0
    %2040 = vmatprep.subr.mxu0 0.0
    %2041 = vmatpush1.msra.mxu0 0.0
    %2042 = vmatprep.subr.mxu0 0.0
    %2043 = vmatpush1.msra.mxu0 0.0
    %2044 = vmatprep.subr.mxu0 0.0
    %2045 = vmatpush1.msra.mxu0 0.0
    %2046 = vmatprep.subr.mxu0 0.0
    %2047 = vmatpush1.msra.mxu0 0.0
    %2048 = vmatprep.subr.mxu0 0.0
    %2049 = vmatpush1.msra.mxu0 0.0
    %2050 = vmatprep.subr.mxu0 0.0
    %2051 = vmatpush1.msra.mxu0 0.0
    %2052 = vmatprep.subr.mxu0 0.0
    %2053 = vmatpush1.msra.mxu0 0.0
    %2054 = vmatprep.subr.mxu0 0.0
    %2055 = vmatpush1.msra.mxu0 0.0
    %2056 = vmatprep.subr.mxu0 0.0
    %2057 = vmatpush1.msra.mxu0 0.0
    %2058 = vmatprep.subr.mxu0 0.0
    %2059 = vmatpush1.msra.mxu0 0.0
    %2060 = vmatprep.subr.mxu0 0.0
    %2061 = vmatpush1.msra.mxu0 0.0
    %2062 = vmatprep.subr.mxu0 0.0
    %2063 = vmatpush1.msra.mxu0 0.0
    %2064 = vmatprep.subr.mxu0 0.0
    %2065 = vmatpush1.msra.mxu0 0.0
    %2066 = vmatprep.subr.mxu0 0.0
    %2067 = vmatpush1.msra.mxu0 0.0
    %2068 = vmatprep.subr.mxu0 0.0
    %2069 = vmatpush1.msra.mxu0 0.0
    %2070 = vmatprep.subr.mxu0 0.0
    %2071 = vmatpush1.msra.mxu0 0.0
    %2072 = vmatprep.subr.mxu0 0.0
    %2073 = vmatpush1.msra.mxu0 0.0
    %2074 = vmatprep.subr.mxu0 0.0
    %2075 = vmatpush1.msra.mxu0 0.0
    %2076 = vmatprep.subr.mxu0 0.0
    %2077 = vmatpush1.msra.mxu0 0.0
    %2078 = vmatprep.subr.mxu0 0.0
    %2079 = vmatpush1.msra.mxu0 0.0
    %2080 = vmatprep.mubr.f32.mxu0 0.0
    %2081 = vmatmul.mubr.f32.gmra.mrb[0].mxu0 %v1934
    %v2082 = vpop.f32.mrb[0].mxu0
    %v2083 = vadd.f32 0.0, %v2082
    %v2084 = vpop.f32.mrb[0].mxu0
    %2085 = vmatprep.mubr.f32.mxu0 0.0
    %2086 = vmatmul.mubr.f32.gmra.mrb[0].mxu0 %v1937
    %v2087 = vpop.f32.mrb[0].mxu0
    %v2088 = vadd.f32 0.0, %v2087
    %v2089 = vpop.f32.mrb[0].mxu0
    %2090 = vdwg.mxu0
    %v2092 = vsel %vm333, %v2006, 0
    %2094 = vmatprep.subr.mxu0 0.0
    %2095 = vmatpush1.msra.mxu0 %v1637
    %2096 = vmatprep.subr.mxu0 0.0
    %2097 = vmatpush1.msra.mxu0 0.0
    %2098 = vmatprep.subr.mxu0 0.0
    %2099 = vmatpush1.msra.mxu0 0.0
    %2100 = vmatprep.subr.mxu0 0.0
    %2101 = vmatpush1.msra.mxu0 0.0
    %2102 = vmatprep.subr.mxu0 0.0
    %2103 = vmatpush1.msra.mxu0 0.0
    %2104 = vmatprep.subr.mxu0 0.0
    %2105 = vmatpush1.msra.mxu0 0.0
    %2106 = vmatprep.subr.mxu0 0.0
    %2107 = vmatpush1.msra.mxu0 0.0
    %2108 = vmatprep.subr.mxu0 0.0
    %2109 = vmatpush1.msra.mxu0 0.0
    %2110 = vmatprep.subr.mxu0 0.0
    %2111 = vmatpush1.msra.mxu0 0.0
    %2112 = vmatprep.subr.mxu0 0.0
    %2113 = vmatpush1.msra.mxu0 0.0
    %2114 = vmatprep.subr.mxu0 0.0
    %2115 = vmatpush1.msra.mxu0 0.0
    %2116 = vmatprep.subr.mxu0 0.0
    %2117 = vmatpush1.msra.mxu0 0.0
    %2118 = vmatprep.subr.mxu0 0.0
    %2119 = vmatpush1.msra.mxu0 0.0
    %2120 = vmatprep.subr.mxu0 0.0
    %2121 = vmatpush1.msra.mxu0 0.0
    %2122 = vmatprep.subr.mxu0 0.0
    %2123 = vmatpush1.msra.mxu0 0.0
    %2124 = vmatprep.subr.mxu0 0.0
    %2125 = vmatpush1.msra.mxu0 0.0
    %2126 = vmatprep.subr.mxu0 0.0
    %2127 = vmatpush1.msra.mxu0 0.0
    %2128 = vmatprep.subr.mxu0 0.0
    %2129 = vmatpush1.msra.mxu0 0.0
    %2130 = vmatprep.subr.mxu0 0.0
    %2131 = vmatpush1.msra.mxu0 0.0
    %2132 = vmatprep.subr.mxu0 0.0
    %2133 = vmatpush1.msra.mxu0 0.0
    %2134 = vmatprep.subr.mxu0 0.0
    %2135 = vmatpush1.msra.mxu0 0.0
    %2136 = vmatprep.subr.mxu0 0.0
    %2137 = vmatpush1.msra.mxu0 0.0
    %2138 = vmatprep.subr.mxu0 0.0
    %2139 = vmatpush1.msra.mxu0 0.0
    %2140 = vmatprep.subr.mxu0 0.0
    %2141 = vmatpush1.msra.mxu0 0.0
    %2142 = vmatprep.subr.mxu0 0.0
    %2143 = vmatpush1.msra.mxu0 0.0
    %2144 = vmatprep.subr.mxu0 0.0
    %2145 = vmatpush1.msra.mxu0 0.0
    %2146 = vmatprep.subr.mxu0 0.0
    %2147 = vmatpush1.msra.mxu0 0.0
    %2148 = vmatprep.subr.mxu0 0.0
    %2149 = vmatpush1.msra.mxu0 0.0
    %2150 = vmatprep.subr.mxu0 0.0
    %2151 = vmatpush1.msra.mxu0 0.0
    %2152 = vmatprep.subr.mxu0 0.0
    %2153 = vmatpush1.msra.mxu0 0.0
    %2154 = vmatprep.subr.mxu0 0.0
    %2155 = vmatpush1.msra.mxu0 0.0
    %2156 = vmatprep.subr.mxu0 0.0
    %2157 = vmatpush1.msra.mxu0 0.0
    %2158 = vmatprep.mubr.f32.mxu0 0.0
    %2159 = vmatmul.mubr.f32.gmra.mrb[0].mxu0 %v2092
    %v2160 = vpop.f32.mrb[0].mxu0
    %v2161 = vadd.f32 0.0, %v2160
    %v2162 = vpop.f32.mrb[0].mxu0
    %2163 = vdwg.mxu0
    %v2165 = vsel %vm333, %v2011, 0
    %2167 = vmatprep.subr.mxu0 0.0
    %2168 = vmatpush1.msra.mxu0 %v1638
    %2169 = vmatprep.subr.mxu0 0.0
    %2170 = vmatpush1.msra.mxu0 0.0
    %2171 = vmatprep.subr.mxu0 0.0
    %2172 = vmatpush1.msra.mxu0 0.0
    %2173 = vmatprep.subr.mxu0 0.0
    %2174 = vmatpush1.msra.mxu0 0.0
    %2175 = vmatprep.subr.mxu0 0.0
    %2176 = vmatpush1.msra.mxu0 0.0
    %2177 = vmatprep.subr.mxu0 0.0
    %2178 = vmatpush1.msra.mxu0 0.0
    %2179 = vmatprep.subr.mxu0 0.0
    %2180 = vmatpush1.msra.mxu0 0.0
    %2181 = vmatprep.subr.mxu0 0.0
    %2182 = vmatpush1.msra.mxu0 0.0
    %2183 = vmatprep.subr.mxu0 0.0
    %2184 = vmatpush1.msra.mxu0 0.0
    %2185 = vmatprep.subr.mxu0 0.0
    %2186 = vmatpush1.msra.mxu0 0.0
    %2187 = vmatprep.subr.mxu0 0.0
    %2188 = vmatpush1.msra.mxu0 0.0
    %2189 = vmatprep.subr.mxu0 0.0
    %2190 = vmatpush1.msra.mxu0 0.0
    %2191 = vmatprep.subr.mxu0 0.0
    %2192 = vmatpush1.msra.mxu0 0.0
    %2193 = vmatprep.subr.mxu0 0.0
    %2194 = vmatpush1.msra.mxu0 0.0
    %2195 = vmatprep.subr.mxu0 0.0
    %2196 = vmatpush1.msra.mxu0 0.0
    %2197 = vmatprep.subr.mxu0 0.0
    %2198 = vmatpush1.msra.mxu0 0.0
    %2199 = vmatprep.subr.mxu0 0.0
    %2200 = vmatpush1.msra.mxu0 0.0
    %2201 = vmatprep.subr.mxu0 0.0
    %2202 = vmatpush1.msra.mxu0 0.0
    %2203 = vmatprep.subr.mxu0 0.0
    %2204 = vmatpush1.msra.mxu0 0.0
    %2205 = vmatprep.subr.mxu0 0.0
    %2206 = vmatpush1.msra.mxu0 0.0
    %2207 = vmatprep.subr.mxu0 0.0
    %2208 = vmatpush1.msra.mxu0 0.0
    %2209 = vmatprep.subr.mxu0 0.0
    %2210 = vmatpush1.msra.mxu0 0.0
    %2211 = vmatprep.subr.mxu0 0.0
    %2212 = vmatpush1.msra.mxu0 0.0
    %2213 = vmatprep.subr.mxu0 0.0
    %2214 = vmatpush1.msra.mxu0 0.0
    %2215 = vmatprep.subr.mxu0 0.0
    %2216 = vmatpush1.msra.mxu0 0.0
    %2217 = vmatprep.subr.mxu0 0.0
    %2218 = vmatpush1.msra.mxu0 0.0
    %2219 = vmatprep.subr.mxu0 0.0
    %2220 = vmatpush1.msra.mxu0 0.0
    %2221 = vmatprep.subr.mxu0 0.0
    %2222 = vmatpush1.msra.mxu0 0.0
    %2223 = vmatprep.subr.mxu0 0.0
    %2224 = vmatpush1.msra.mxu0 0.0
    %2225 = vmatprep.subr.mxu0 0.0
    %2226 = vmatpush1.msra.mxu0 0.0
    %2227 = vmatprep.subr.mxu0 0.0
    %2228 = vmatpush1.msra.mxu0 0.0
    %2229 = vmatprep.subr.mxu0 0.0
    %2230 = vmatpush1.msra.mxu0 0.0
    %2231 = vmatprep.mubr.f32.mxu0 0.0
    %2232 = vmatmul.mubr.f32.gmra.mrb[0].mxu0 %v2165
    %v2233 = vpop.f32.mrb[0].mxu0
    %v2234 = vadd.f32 0.0, %v2233
    %v2235 = vpop.f32.mrb[0].mxu0
    %2236 = vdwg.mxu0
    %2238 = vset.pattern.permute.xlu0 0
    %2239 = vperm.xlu0 %2238, %v2083
    %v2240 = vpop.permute.xlu0 %2239
    %2243 = vset.pattern.permute.xlu0 0
    %2244 = vperm.xlu0 %2243, %v2088
    %v2245 = vpop.permute.xlu0 %2244
    %v2247 = vadd.f32 %v2161, %v2240
    %v2248 = vadd.f32 %v2234, %v2245
    %v2249 = vadd.f32 %v1637, %v2247
    %v2250 = vadd.f32 %v1638, %v2248
    %s2251 = scalar_lea.vmem %s9, 24
    %v2252 = vld [vmem:[%s2251] sm:$0xff]
    %s2253 = scalar_lea.vmem %s10, 24
    %v2254 = vld [vmem:[%s2253] sm:$0xff]
    %v2255 = vsel %vm66, %v2249, 0.0
    %2256 = vadd.xlane.f32.xlu0 %v2255
    %v2257 = vpop.xlane.xlu0 %2256
    %v2258 = vsel %vm66, %v2250, 0.0
    %2259 = vadd.xlane.f32.xlu0 %v2258
    %v2260 = vpop.xlane.xlu0 %2259
    %v2261 = vrot.slane %v2257, 4
    %v2262 = vadd.f32 %v2257, %v2261
    %v2263 = vrot.slane %v2262, 2
    %v2264 = vadd.f32 %v2262, %v2263
    %v2265 = vrot.slane %v2264, 1
    %v2266 = vadd.f32 %v2264, %v2265
    %v2267 = vrot.slane %v2260, 4
    %v2268 = vadd.f32 %v2260, %v2267
    %v2269 = vrot.slane %v2268, 2
    %v2270 = vadd.f32 %v2268, %v2269
    %v2271 = vrot.slane %v2270, 1
    %v2272 = vadd.f32 %v2270, %v2271
    %v2273 = vmul.f32 %v2266, 0.00390625
    %v2274 = vmul.f32 %v2272, 0.00390625
    %v2275 = vsub.f32 %v2249, %v2273
    %v2276 = vsub.f32 %v2250, %v2274
    %v2277 = vmul.f32 %v2275, %v2275
    %v2278 = vmul.f32 %v2276, %v2276
    %v2279 = vsel %vm66, %v2277, 0.0
    %2280 = vadd.xlane.f32.xlu0 %v2279
    %v2281 = vpop.xlane.xlu0 %2280
    %v2282 = vsel %vm66, %v2278, 0.0
    %2283 = vadd.xlane.f32.xlu0 %v2282
    %v2284 = vpop.xlane.xlu0 %2283
    %v2285 = vrot.slane %v2281, 4
    %v2286 = vadd.f32 %v2281, %v2285
    %v2287 = vrot.slane %v2286, 2
    %v2288 = vadd.f32 %v2286, %v2287
    %v2289 = vrot.slane %v2288, 1
    %v2290 = vadd.f32 %v2288, %v2289
    %v2291 = vrot.slane %v2284, 4
    %v2292 = vadd.f32 %v2284, %v2291
    %v2293 = vrot.slane %v2292, 2
    %v2294 = vadd.f32 %v2292, %v2293
    %v2295 = vrot.slane %v2294, 1
    %v2296 = vadd.f32 %v2294, %v2295
    %v2297 = vmul.f32 %v2290, 0.00390625
    %v2298 = vmul.f32 %v2296, 0.00390625
    %v2299 = vadd.f32 %v2297, 1e-05
    %v2300 = vadd.f32 %v2298, 1e-05
    %v2301 = vrsqrt.pop %v2299
    %v2302 = vrsqrt.pop %v2300
    %v2303 = vmul.f32 %v2275, %v2301
    %v2304 = vmul.f32 %v2276, %v2302
    %v2305 = vmul.f32 %v2303, %v2252
    %v2306 = vmul.f32 %v2304, %v2252
    %v2307 = vadd.f32 %v2305, %v2254
    %v2308 = vadd.f32 %v2306, %v2254
    %s2309 = scalar_lea.vmem %s2, 96
    %v2310 = vld [vmem:[%s2309] sm:$0xff]
    %v2311 = vld [vmem:[%s2309 + $0x8] sm:$0xff]
    %v2312 = vld [vmem:[%s2309 + $0x10] sm:$0xff]
    %v2313 = vld [vmem:[%s2309 + $0x18] sm:$0xff]
    %s2314 = scalar_lea.vmem %s3, 3
    %v2315 = vld [vmem:[%s2314] sm:$0x1]
    %v2317 = vlaneseq
    %v2318 = vshrl.u32 %v2317, 7
    %v2319 = vsub.s32 0, %v2318
    %v2320 = vrot.slane %v2315, %v2319
    %v2323 = vsel %vm66, %v2307, 0
    %v2326 = vsel %vm66, %v2308, 0
    %2328 = vmatprep.subr.mxu0 0.0
    %2329 = vmatpush1.msra.mxu0 %v2310
    %2330 = vmatprep.subr.mxu0 0.0
    %2331 = vmatpush1.msra.mxu0 %v2311
    %2332 = vmatprep.subr.mxu0 0.0
    %2333 = vmatpush1.msra.mxu0 %v2312
    %2334 = vmatprep.subr.mxu0 0.0
    %2335 = vmatpush1.msra.mxu0 %v2313
    %2336 = vmatprep.subr.mxu0 0.0
    %2337 = vmatpush1.msra.mxu0 0.0
    %2338 = vmatprep.subr.mxu0 0.0
    %2339 = vmatpush1.msra.mxu0 0.0
    %2340 = vmatprep.subr.mxu0 0.0
    %2341 = vmatpush1.msra.mxu0 0.0
    %2342 = vmatprep.subr.mxu0 0.0
    %2343 = vmatpush1.msra.mxu0 0.0
    %2344 = vmatprep.subr.mxu0 0.0
    %2345 = vmatpush1.msra.mxu0 0.0
    %2346 = vmatprep.subr.mxu0 0.0
    %2347 = vmatpush1.msra.mxu0 0.0
    %2348 = vmatprep.subr.mxu0 0.0
    %2349 = vmatpush1.msra.mxu0 0.0
    %2350 = vmatprep.subr.mxu0 0.0
    %2351 = vmatpush1.msra.mxu0 0.0
    %2352 = vmatprep.subr.mxu0 0.0
    %2353 = vmatpush1.msra.mxu0 0.0
    %2354 = vmatprep.subr.mxu0 0.0
    %2355 = vmatpush1.msra.mxu0 0.0
    %2356 = vmatprep.subr.mxu0 0.0
    %2357 = vmatpush1.msra.mxu0 0.0
    %2358 = vmatprep.subr.mxu0 0.0
    %2359 = vmatpush1.msra.mxu0 0.0
    %2360 = vmatprep.subr.mxu0 0.0
    %2361 = vmatpush1.msra.mxu0 0.0
    %2362 = vmatprep.subr.mxu0 0.0
    %2363 = vmatpush1.msra.mxu0 0.0
    %2364 = vmatprep.subr.mxu0 0.0
    %2365 = vmatpush1.msra.mxu0 0.0
    %2366 = vmatprep.subr.mxu0 0.0
    %2367 = vmatpush1.msra.mxu0 0.0
    %2368 = vmatprep.subr.mxu0 0.0
    %2369 = vmatpush1.msra.mxu0 0.0
    %2370 = vmatprep.subr.mxu0 0.0
    %2371 = vmatpush1.msra.mxu0 0.0
    %2372 = vmatprep.subr.mxu0 0.0
    %2373 = vmatpush1.msra.mxu0 0.0
    %2374 = vmatprep.subr.mxu0 0.0
    %2375 = vmatpush1.msra.mxu0 0.0
    %2376 = vmatprep.subr.mxu0 0.0
    %2377 = vmatpush1.msra.mxu0 0.0
    %2378 = vmatprep.subr.mxu0 0.0
    %2379 = vmatpush1.msra.mxu0 0.0
    %2380 = vmatprep.subr.mxu0 0.0
    %2381 = vmatpush1.msra.mxu0 0.0
    %2382 = vmatprep.subr.mxu0 0.0
    %2383 = vmatpush1.msra.mxu0 0.0
    %2384 = vmatprep.subr.mxu0 0.0
    %2385 = vmatpush1.msra.mxu0 0.0
    %2386 = vmatprep.subr.mxu0 0.0
    %2387 = vmatpush1.msra.mxu0 0.0
    %2388 = vmatprep.subr.mxu0 0.0
    %2389 = vmatpush1.msra.mxu0 0.0
    %2390 = vmatprep.subr.mxu0 0.0
    %2391 = vmatpush1.msra.mxu0 0.0
    %2392 = vmatprep.mubr.f32.mxu0 0.0
    %2393 = vmatmul.mubr.f32.gmra.mrb[0].mxu0 %v2323
    %v2394 = vpop.f32.mrb[0].mxu0
    %v2395 = vadd.f32 %v2320, %v2394
    %v2396 = vpop.f32.mrb[0].mxu0
    %2397 = vmatprep.mubr.f32.mxu0 0.0
    %2398 = vmatmul.mubr.f32.gmra.mrb[0].mxu0 %v2326
    %v2399 = vpop.f32.mrb[0].mxu0
    %v2400 = vadd.f32 %v2320, %v2399
    %v2401 = vpop.f32.mrb[0].mxu0
    %2402 = vdwg.mxu0
    %v2403 = vmul.f32 %v2395, %v2395
    %v2404 = vmul.f32 %v2400, %v2400
    %s2405 = scalar_lea.vmem %s6, 96
    %v2406 = vld [vmem:[%s2405] sm:$0xff]
    %v2407 = vld [vmem:[%s2405 + $0x8] sm:$0xff]
    %v2408 = vld [vmem:[%s2405 + $0x10] sm:$0xff]
    %v2409 = vld [vmem:[%s2405 + $0x18] sm:$0xff]
    %s2410 = scalar_lea.vmem %s7, 96
    %v2411 = vld [vmem:[%s2410] sm:$0xff]
    %v2412 = vld [vmem:[%s2410 + $0x8] sm:$0xff]
    %v2413 = vld [vmem:[%s2410 + $0x10] sm:$0xff]
    %v2414 = vld [vmem:[%s2410 + $0x18] sm:$0xff]
    %v2416 = vsel %vm66, %v2395, 0
    %v2419 = vsel %vm66, %v2400, 0
    %2421 = vmatprep.subr.mxu0 0.0
    %2422 = vmatpush1.msra.mxu0 %v2411
    %2423 = vmatprep.subr.mxu0 0.0
    %2424 = vmatpush1.msra.mxu0 %v2412
    %2425 = vmatprep.subr.mxu0 0.0
    %2426 = vmatpush1.msra.mxu0 %v2413
    %2427 = vmatprep.subr.mxu0 0.0
    %2428 = vmatpush1.msra.mxu0 %v2414
    %2429 = vmatprep.subr.mxu0 0.0
    %2430 = vmatpush1.msra.mxu0 0.0
    %2431 = vmatprep.subr.mxu0 0.0
    %2432 = vmatpush1.msra.mxu0 0.0
    %2433 = vmatprep.subr.mxu0 0.0
    %2434 = vmatpush1.msra.mxu0 0.0
    %2435 = vmatprep.subr.mxu0 0.0
    %2436 = vmatpush1.msra.mxu0 0.0
    %2437 = vmatprep.subr.mxu0 0.0
    %2438 = vmatpush1.msra.mxu0 0.0
    %2439 = vmatprep.subr.mxu0 0.0
    %2440 = vmatpush1.msra.mxu0 0.0
    %2441 = vmatprep.subr.mxu0 0.0
    %2442 = vmatpush1.msra.mxu0 0.0
    %2443 = vmatprep.subr.mxu0 0.0
    %2444 = vmatpush1.msra.mxu0 0.0
    %2445 = vmatprep.subr.mxu0 0.0
    %2446 = vmatpush1.msra.mxu0 0.0
    %2447 = vmatprep.subr.mxu0 0.0
    %2448 = vmatpush1.msra.mxu0 0.0
    %2449 = vmatprep.subr.mxu0 0.0
    %2450 = vmatpush1.msra.mxu0 0.0
    %2451 = vmatprep.subr.mxu0 0.0
    %2452 = vmatpush1.msra.mxu0 0.0
    %2453 = vmatprep.subr.mxu0 0.0
    %2454 = vmatpush1.msra.mxu0 0.0
    %2455 = vmatprep.subr.mxu0 0.0
    %2456 = vmatpush1.msra.mxu0 0.0
    %2457 = vmatprep.subr.mxu0 0.0
    %2458 = vmatpush1.msra.mxu0 0.0
    %2459 = vmatprep.subr.mxu0 0.0
    %2460 = vmatpush1.msra.mxu0 0.0
    %2461 = vmatprep.subr.mxu0 0.0
    %2462 = vmatpush1.msra.mxu0 0.0
    %2463 = vmatprep.subr.mxu0 0.0
    %2464 = vmatpush1.msra.mxu0 0.0
    %2465 = vmatprep.subr.mxu0 0.0
    %2466 = vmatpush1.msra.mxu0 0.0
    %2467 = vmatprep.subr.mxu0 0.0
    %2468 = vmatpush1.msra.mxu0 0.0
    %2469 = vmatprep.subr.mxu0 0.0
    %2470 = vmatpush1.msra.mxu0 0.0
    %2471 = vmatprep.subr.mxu0 0.0
    %2472 = vmatpush1.msra.mxu0 0.0
    %2473 = vmatprep.subr.mxu0 0.0
    %2474 = vmatpush1.msra.mxu0 0.0
    %2475 = vmatprep.subr.mxu0 0.0
    %2476 = vmatpush1.msra.mxu0 0.0
    %2477 = vmatprep.subr.mxu0 0.0
    %2478 = vmatpush1.msra.mxu0 0.0
    %2479 = vmatprep.subr.mxu0 0.0
    %2480 = vmatpush1.msra.mxu0 0.0
    %2481 = vmatprep.subr.mxu0 0.0
    %2482 = vmatpush1.msra.mxu0 0.0
    %2483 = vmatprep.subr.mxu0 0.0
    %2484 = vmatpush1.msra.mxu0 0.0
    %2485 = vmatprep.mubr.f32.mxu0 0.0
    %2486 = vmatmul.mubr.f32.gmra.mrb[0].mxu0 %v2416
    %v2487 = vpop.f32.mrb[0].mxu0
    %v2488 = vadd.f32 0.0, %v2487
    %v2489 = vpop.f32.mrb[0].mxu0
    %2490 = vmatprep.mubr.f32.mxu0 0.0
    %2491 = vmatmul.mubr.f32.gmra.mrb[0].mxu0 %v2419
    %v2492 = vpop.f32.mrb[0].mxu0
    %v2493 = vadd.f32 0.0, %v2492
    %v2494 = vpop.f32.mrb[0].mxu0
    %2495 = vdwg.mxu0
    %v2497 = vsel %vm66, %v2403, 0
    %v2500 = vsel %vm66, %v2404, 0
    %2502 = vmatprep.subr.mxu0 0.0
    %2503 = vmatpush1.msra.mxu0 %v2406
    %2504 = vmatprep.subr.mxu0 0.0
    %2505 = vmatpush1.msra.mxu0 %v2407
    %2506 = vmatprep.subr.mxu0 0.0
    %2507 = vmatpush1.msra.mxu0 %v2408
    %2508 = vmatprep.subr.mxu0 0.0
    %2509 = vmatpush1.msra.mxu0 %v2409
    %2510 = vmatprep.subr.mxu0 0.0
    %2511 = vmatpush1.msra.mxu0 0.0
    %2512 = vmatprep.subr.mxu0 0.0
    %2513 = vmatpush1.msra.mxu0 0.0
    %2514 = vmatprep.subr.mxu0 0.0
    %2515 = vmatpush1.msra.mxu0 0.0
    %2516 = vmatprep.subr.mxu0 0.0
    %2517 = vmatpush1.msra.mxu0 0.0
    %2518 = vmatprep.subr.mxu0 0.0
    %2519 = vmatpush1.msra.mxu0 0.0
    %2520 = vmatprep.subr.mxu0 0.0
    %2521 = vmatpush1.msra.mxu0 0.0
    %2522 = vmatprep.subr.mxu0 0.0
    %2523 = vmatpush1.msra.mxu0 0.0
    %2524 = vmatprep.subr.mxu0 0.0
    %2525 = vmatpush1.msra.mxu0 0.0
    %2526 = vmatprep.subr.mxu0 0.0
    %2527 = vmatpush1.msra.mxu0 0.0
    %2528 = vmatprep.subr.mxu0 0.0
    %2529 = vmatpush1.msra.mxu0 0.0
    %2530 = vmatprep.subr.mxu0 0.0
    %2531 = vmatpush1.msra.mxu0 0.0
    %2532 = vmatprep.subr.mxu0 0.0
    %2533 = vmatpush1.msra.mxu0 0.0
    %2534 = vmatprep.subr.mxu0 0.0
    %2535 = vmatpush1.msra.mxu0 0.0
    %2536 = vmatprep.subr.mxu0 0.0
    %2537 = vmatpush1.msra.mxu0 0.0
    %2538 = vmatprep.subr.mxu0 0.0
    %2539 = vmatpush1.msra.mxu0 0.0
    %2540 = vmatprep.subr.mxu0 0.0
    %2541 = vmatpush1.msra.mxu0 0.0
    %2542 = vmatprep.subr.mxu0 0.0
    %2543 = vmatpush1.msra.mxu0 0.0
    %2544 = vmatprep.subr.mxu0 0.0
    %2545 = vmatpush1.msra.mxu0 0.0
    %2546 = vmatprep.subr.mxu0 0.0
    %2547 = vmatpush1.msra.mxu0 0.0
    %2548 = vmatprep.subr.mxu0 0.0
    %2549 = vmatpush1.msra.mxu0 0.0
    %2550 = vmatprep.subr.mxu0 0.0
    %2551 = vmatpush1.msra.mxu0 0.0
    %2552 = vmatprep.subr.mxu0 0.0
    %2553 = vmatpush1.msra.mxu0 0.0
    %2554 = vmatprep.subr.mxu0 0.0
    %2555 = vmatpush1.msra.mxu0 0.0
    %2556 = vmatprep.subr.mxu0 0.0
    %2557 = vmatpush1.msra.mxu0 0.0
    %2558 = vmatprep.subr.mxu0 0.0
    %2559 = vmatpush1.msra.mxu0 0.0
    %2560 = vmatprep.subr.mxu0 0.0
    %2561 = vmatpush1.msra.mxu0 0.0
    %2562 = vmatprep.subr.mxu0 0.0
    %2563 = vmatpush1.msra.mxu0 0.0
    %2564 = vmatprep.subr.mxu0 0.0
    %2565 = vmatpush1.msra.mxu0 0.0
    %2566 = vmatprep.mubr.f32.mxu0 0.0
    %2567 = vmatmul.mubr.f32.gmra.mrb[0].mxu0 %v2497
    %v2568 = vpop.f32.mrb[0].mxu0
    %v2569 = vadd.f32 %v2488, %v2568
    %v2570 = vpop.f32.mrb[0].mxu0
    %2571 = vmatprep.mubr.f32.mxu0 0.0
    %2572 = vmatmul.mubr.f32.gmra.mrb[0].mxu0 %v2500
    %v2573 = vpop.f32.mrb[0].mxu0
    %v2574 = vadd.f32 %v2493, %v2573
    %v2575 = vpop.f32.mrb[0].mxu0
    %2576 = vdwg.mxu0
    %s2577 = scalar_lea.vmem %s8, 3
    %v2578 = vld [vmem:[%s2577] sm:$0x1]
    %v2580 = vlaneseq
    %v2581 = vshrl.u32 %v2580, 7
    %v2582 = vsub.s32 0, %v2581
    %v2583 = vrot.slane %v2578, %v2582
    %v2585 = vadd.f32 %v2569, %v2583
    %v2586 = vadd.f32 %v2574, %v2583
    %v2587 = vmul.f32 %v2585, 1.442695
    %v2588 = vpow.pop %v2587
    %v2589 = vmul.f32 %v2586, 1.442695
    %v2590 = vpow.pop %v2589
    %v2591 = vsel %vm333, %v2588, 0.0
    %2592 = vadd.xlane.f32.xlu0 %v2591
    %v2593 = vpop.xlane.xlu0 %2592
    %v2594 = vsel %vm333, %v2590, 0.0
    %2595 = vadd.xlane.f32.xlu0 %v2594
    %v2596 = vpop.xlane.xlu0 %2595
    %v2597 = vrcp.pop %v2593
    %v2598 = vrcp.pop %v2596
    %v2599 = vmul.f32 %v2588, %v2597
    %v2600 = vmul.f32 %v2590, %v2598
    %s2601 = scalar_lea.vmem %s4, 24
    %v2602 = vld [vmem:[%s2601] sm:$0xff]
    %v2604 = vsel %vm333, %v2599, 0
    %v2607 = vsel %vm333, %v2600, 0
    %2609 = vmatprep.subr.mxu0 0.0
    %2610 = vmatpush1.msra.mxu0 %v2602
    %2611 = vmatprep.subr.mxu0 0.0
    %2612 = vmatpush1.msra.mxu0 0.0
    %2613 = vmatprep.subr.mxu0 0.0
    %2614 = vmatpush1.msra.mxu0 0.0
    %2615 = vmatprep.subr.mxu0 0.0
    %2616 = vmatpush1.msra.mxu0 0.0
    %2617 = vmatprep.subr.mxu0 0.0
    %2618 = vmatpush1.msra.mxu0 0.0
    %2619 = vmatprep.subr.mxu0 0.0
    %2620 = vmatpush1.msra.mxu0 0.0
    %2621 = vmatprep.subr.mxu0 0.0
    %2622 = vmatpush1.msra.mxu0 0.0
    %2623 = vmatprep.subr.mxu0 0.0
    %2624 = vmatpush1.msra.mxu0 0.0
    %2625 = vmatprep.subr.mxu0 0.0
    %2626 = vmatpush1.msra.mxu0 0.0
    %2627 = vmatprep.subr.mxu0 0.0
    %2628 = vmatpush1.msra.mxu0 0.0
    %2629 = vmatprep.subr.mxu0 0.0
    %2630 = vmatpush1.msra.mxu0 0.0
    %2631 = vmatprep.subr.mxu0 0.0
    %2632 = vmatpush1.msra.mxu0 0.0
    %2633 = vmatprep.subr.mxu0 0.0
    %2634 = vmatpush1.msra.mxu0 0.0
    %2635 = vmatprep.subr.mxu0 0.0
    %2636 = vmatpush1.msra.mxu0 0.0
    %2637 = vmatprep.subr.mxu0 0.0
    %2638 = vmatpush1.msra.mxu0 0.0
    %2639 = vmatprep.subr.mxu0 0.0
    %2640 = vmatpush1.msra.mxu0 0.0
    %2641 = vmatprep.subr.mxu0 0.0
    %2642 = vmatpush1.msra.mxu0 0.0
    %2643 = vmatprep.subr.mxu0 0.0
    %2644 = vmatpush1.msra.mxu0 0.0
    %2645 = vmatprep.subr.mxu0 0.0
    %2646 = vmatpush1.msra.mxu0 0.0
    %2647 = vmatprep.subr.mxu0 0.0
    %2648 = vmatpush1.msra.mxu0 0.0
    %2649 = vmatprep.subr.mxu0 0.0
    %2650 = vmatpush1.msra.mxu0 0.0
    %2651 = vmatprep.subr.mxu0 0.0
    %2652 = vmatpush1.msra.mxu0 0.0
    %2653 = vmatprep.subr.mxu0 0.0
    %2654 = vmatpush1.msra.mxu0 0.0
    %2655 = vmatprep.subr.mxu0 0.0
    %2656 = vmatpush1.msra.mxu0 0.0
    %2657 = vmatprep.subr.mxu0 0.0
    %2658 = vmatpush1.msra.mxu0 0.0
    %2659 = vmatprep.subr.mxu0 0.0
    %2660 = vmatpush1.msra.mxu0 0.0
    %2661 = vmatprep.subr.mxu0 0.0
    %2662 = vmatpush1.msra.mxu0 0.0
    %2663 = vmatprep.subr.mxu0 0.0
    %2664 = vmatpush1.msra.mxu0 0.0
    %2665 = vmatprep.subr.mxu0 0.0
    %2666 = vmatpush1.msra.mxu0 0.0
    %2667 = vmatprep.subr.mxu0 0.0
    %2668 = vmatpush1.msra.mxu0 0.0
    %2669 = vmatprep.subr.mxu0 0.0
    %2670 = vmatpush1.msra.mxu0 0.0
    %2671 = vmatprep.subr.mxu0 0.0
    %2672 = vmatpush1.msra.mxu0 0.0
    %2673 = vmatprep.mubr.f32.mxu0 0.0
    %2674 = vmatmul.mubr.f32.gmra.mrb[0].mxu0 %v2604
    %v2675 = vpop.f32.mrb[0].mxu0
    %v2676 = vadd.f32 0.0, %v2675
    %v2677 = vpop.f32.mrb[0].mxu0
    %2678 = vmatprep.mubr.f32.mxu0 0.0
    %2679 = vmatmul.mubr.f32.gmra.mrb[0].mxu0 %v2607
    %v2680 = vpop.f32.mrb[0].mxu0
    %v2681 = vadd.f32 0.0, %v2680
    %v2682 = vpop.f32.mrb[0].mxu0
    %2683 = vdwg.mxu0
    %s2684 = scalar_lea.vmem %s5, 24
    %v2685 = vld [vmem:[%s2684] sm:$0xff]
    %2686 = vmatprep.subr.mxu0 0.0
    %2687 = vmatpush1.msra.mxu0 %v2685
    %2688 = vmatprep.subr.mxu0 0.0
    %2689 = vmatpush1.msra.mxu0 0.0
    %2690 = vmatprep.subr.mxu0 0.0
    %2691 = vmatpush1.msra.mxu0 0.0
    %2692 = vmatprep.subr.mxu0 0.0
    %2693 = vmatpush1.msra.mxu0 0.0
    %2694 = vmatprep.subr.mxu0 0.0
    %2695 = vmatpush1.msra.mxu0 0.0
    %2696 = vmatprep.subr.mxu0 0.0
    %2697 = vmatpush1.msra.mxu0 0.0
    %2698 = vmatprep.subr.mxu0 0.0
    %2699 = vmatpush1.msra.mxu0 0.0
    %2700 = vmatprep.subr.mxu0 0.0
    %2701 = vmatpush1.msra.mxu0 0.0
    %2702 = vmatprep.subr.mxu0 0.0
    %2703 = vmatpush1.msra.mxu0 0.0
    %2704 = vmatprep.subr.mxu0 0.0
    %2705 = vmatpush1.msra.mxu0 0.0
    %2706 = vmatprep.subr.mxu0 0.0
    %2707 = vmatpush1.msra.mxu0 0.0
    %2708 = vmatprep.subr.mxu0 0.0
    %2709 = vmatpush1.msra.mxu0 0.0
    %2710 = vmatprep.subr.mxu0 0.0
    %2711 = vmatpush1.msra.mxu0 0.0
    %2712 = vmatprep.subr.mxu0 0.0
    %2713 = vmatpush1.msra.mxu0 0.0
    %2714 = vmatprep.subr.mxu0 0.0
    %2715 = vmatpush1.msra.mxu0 0.0
    %2716 = vmatprep.subr.mxu0 0.0
    %2717 = vmatpush1.msra.mxu0 0.0
    %2718 = vmatprep.subr.mxu0 0.0
    %2719 = vmatpush1.msra.mxu0 0.0
    %2720 = vmatprep.subr.mxu0 0.0
    %2721 = vmatpush1.msra.mxu0 0.0
    %2722 = vmatprep.subr.mxu0 0.0
    %2723 = vmatpush1.msra.mxu0 0.0
    %2724 = vmatprep.subr.mxu0 0.0
    %2725 = vmatpush1.msra.mxu0 0.0
    %2726 = vmatprep.subr.mxu0 0.0
    %2727 = vmatpush1.msra.mxu0 0.0
    %2728 = vmatprep.subr.mxu0 0.0
    %2729 = vmatpush1.msra.mxu0 0.0
    %2730 = vmatprep.subr.mxu0 0.0
    %2731 = vmatpush1.msra.mxu0 0.0
    %2732 = vmatprep.subr.mxu0 0.0
    %2733 = vmatpush1.msra.mxu0 0.0
    %2734 = vmatprep.subr.mxu0 0.0
    %2735 = vmatpush1.msra.mxu0 0.0
    %2736 = vmatprep.subr.mxu0 0.0
    %2737 = vmatpush1.msra.mxu0 0.0
    %2738 = vmatprep.subr.mxu0 0.0
    %2739 = vmatpush1.msra.mxu0 0.0
    %2740 = vmatprep.subr.mxu0 0.0
    %2741 = vmatpush1.msra.mxu0 0.0
    %2742 = vmatprep.subr.mxu0 0.0
    %2743 = vmatpush1.msra.mxu0 0.0
    %2744 = vmatprep.subr.mxu0 0.0
    %2745 = vmatpush1.msra.mxu0 0.0
    %2746 = vmatprep.subr.mxu0 0.0
    %2747 = vmatpush1.msra.mxu0 0.0
    %2748 = vmatprep.subr.mxu0 0.0
    %2749 = vmatpush1.msra.mxu0 0.0
    %2750 = vmatprep.mubr.f32.mxu0 0.0
    %2751 = vmatmul.mubr.f32.gmra.mrb[0].mxu0 %v2604
    %v2752 = vpop.f32.mrb[0].mxu0
    %v2753 = vadd.f32 0.0, %v2752
    %v2754 = vpop.f32.mrb[0].mxu0
    %2755 = vmatprep.mubr.f32.mxu0 0.0
    %2756 = vmatmul.mubr.f32.gmra.mrb[0].mxu0 %v2607
    %v2757 = vpop.f32.mrb[0].mxu0
    %v2758 = vadd.f32 0.0, %v2757
    %v2759 = vpop.f32.mrb[0].mxu0
    %2760 = vdwg.mxu0
    %v2762 = vsel %vm333, %v2676, 0
    %2764 = vmatprep.subr.mxu0 0.0
    %2765 = vmatpush1.msra.mxu0 %v53
    %2766 = vmatprep.subr.mxu0 0.0
    %2767 = vmatpush1.msra.mxu0 0.0
    %2768 = vmatprep.subr.mxu0 0.0
    %2769 = vmatpush1.msra.mxu0 0.0
    %2770 = vmatprep.subr.mxu0 0.0
    %2771 = vmatpush1.msra.mxu0 0.0
    %2772 = vmatprep.subr.mxu0 0.0
    %2773 = vmatpush1.msra.mxu0 0.0
    %2774 = vmatprep.subr.mxu0 0.0
    %2775 = vmatpush1.msra.mxu0 0.0
    %2776 = vmatprep.subr.mxu0 0.0
    %2777 = vmatpush1.msra.mxu0 0.0
    %2778 = vmatprep.subr.mxu0 0.0
    %2779 = vmatpush1.msra.mxu0 0.0
    %2780 = vmatprep.subr.mxu0 0.0
    %2781 = vmatpush1.msra.mxu0 0.0
    %2782 = vmatprep.subr.mxu0 0.0
    %2783 = vmatpush1.msra.mxu0 0.0
    %2784 = vmatprep.subr.mxu0 0.0
    %2785 = vmatpush1.msra.mxu0 0.0
    %2786 = vmatprep.subr.mxu0 0.0
    %2787 = vmatpush1.msra.mxu0 0.0
    %2788 = vmatprep.subr.mxu0 0.0
    %2789 = vmatpush1.msra.mxu0 0.0
    %2790 = vmatprep.subr.mxu0 0.0
    %2791 = vmatpush1.msra.mxu0 0.0
    %2792 = vmatprep.subr.mxu0 0.0
    %2793 = vmatpush1.msra.mxu0 0.0
    %2794 = vmatprep.subr.mxu0 0.0
    %2795 = vmatpush1.msra.mxu0 0.0
    %2796 = vmatprep.subr.mxu0 0.0
    %2797 = vmatpush1.msra.mxu0 0.0
    %2798 = vmatprep.subr.mxu0 0.0
    %2799 = vmatpush1.msra.mxu0 0.0
    %2800 = vmatprep.subr.mxu0 0.0
    %2801 = vmatpush1.msra.mxu0 0.0
    %2802 = vmatprep.subr.mxu0 0.0
    %2803 = vmatpush1.msra.mxu0 0.0
    %2804 = vmatprep.subr.mxu0 0.0
    %2805 = vmatpush1.msra.mxu0 0.0
    %2806 = vmatprep.subr.mxu0 0.0
    %2807 = vmatpush1.msra.mxu0 0.0
    %2808 = vmatprep.subr.mxu0 0.0
    %2809 = vmatpush1.msra.mxu0 0.0
    %2810 = vmatprep.subr.mxu0 0.0
    %2811 = vmatpush1.msra.mxu0 0.0
    %2812 = vmatprep.subr.mxu0 0.0
    %2813 = vmatpush1.msra.mxu0 0.0
    %2814 = vmatprep.subr.mxu0 0.0
    %2815 = vmatpush1.msra.mxu0 0.0
    %2816 = vmatprep.subr.mxu0 0.0
    %2817 = vmatpush1.msra.mxu0 0.0
    %2818 = vmatprep.subr.mxu0 0.0
    %2819 = vmatpush1.msra.mxu0 0.0
    %2820 = vmatprep.subr.mxu0 0.0
    %2821 = vmatpush1.msra.mxu0 0.0
    %2822 = vmatprep.subr.mxu0 0.0
    %2823 = vmatpush1.msra.mxu0 0.0
    %2824 = vmatprep.subr.mxu0 0.0
    %2825 = vmatpush1.msra.mxu0 0.0
    %2826 = vmatprep.subr.mxu0 0.0
    %2827 = vmatpush1.msra.mxu0 0.0
    %2828 = vmatprep.mubr.f32.mxu0 0.0
    %2829 = vmatmul.mubr.f32.gmra.mrb[0].mxu0 %v2762
    %v2830 = vpop.f32.mrb[0].mxu0
    %v2831 = vadd.f32 0.0, %v2830
    %v2832 = vpop.f32.mrb[0].mxu0
    %2833 = vdwg.mxu0
    %v2835 = vsel %vm333, %v2681, 0
    %2837 = vmatprep.subr.mxu0 0.0
    %2838 = vmatpush1.msra.mxu0 %v54
    %2839 = vmatprep.subr.mxu0 0.0
    %2840 = vmatpush1.msra.mxu0 0.0
    %2841 = vmatprep.subr.mxu0 0.0
    %2842 = vmatpush1.msra.mxu0 0.0
    %2843 = vmatprep.subr.mxu0 0.0
    %2844 = vmatpush1.msra.mxu0 0.0
    %2845 = vmatprep.subr.mxu0 0.0
    %2846 = vmatpush1.msra.mxu0 0.0
    %2847 = vmatprep.subr.mxu0 0.0
    %2848 = vmatpush1.msra.mxu0 0.0
    %2849 = vmatprep.subr.mxu0 0.0
    %2850 = vmatpush1.msra.mxu0 0.0
    %2851 = vmatprep.subr.mxu0 0.0
    %2852 = vmatpush1.msra.mxu0 0.0
    %2853 = vmatprep.subr.mxu0 0.0
    %2854 = vmatpush1.msra.mxu0 0.0
    %2855 = vmatprep.subr.mxu0 0.0
    %2856 = vmatpush1.msra.mxu0 0.0
    %2857 = vmatprep.subr.mxu0 0.0
    %2858 = vmatpush1.msra.mxu0 0.0
    %2859 = vmatprep.subr.mxu0 0.0
    %2860 = vmatpush1.msra.mxu0 0.0
    %2861 = vmatprep.subr.mxu0 0.0
    %2862 = vmatpush1.msra.mxu0 0.0
    %2863 = vmatprep.subr.mxu0 0.0
    %2864 = vmatpush1.msra.mxu0 0.0
    %2865 = vmatprep.subr.mxu0 0.0
    %2866 = vmatpush1.msra.mxu0 0.0
    %2867 = vmatprep.subr.mxu0 0.0
    %2868 = vmatpush1.msra.mxu0 0.0
    %2869 = vmatprep.subr.mxu0 0.0
    %2870 = vmatpush1.msra.mxu0 0.0
    %2871 = vmatprep.subr.mxu0 0.0
    %2872 = vmatpush1.msra.mxu0 0.0
    %2873 = vmatprep.subr.mxu0 0.0
    %2874 = vmatpush1.msra.mxu0 0.0
    %2875 = vmatprep.subr.mxu0 0.0
    %2876 = vmatpush1.msra.mxu0 0.0
    %2877 = vmatprep.subr.mxu0 0.0
    %2878 = vmatpush1.msra.mxu0 0.0
    %2879 = vmatprep.subr.mxu0 0.0
    %2880 = vmatpush1.msra.mxu0 0.0
    %2881 = vmatprep.subr.mxu0 0.0
    %2882 = vmatpush1.msra.mxu0 0.0
    %2883 = vmatprep.subr.mxu0 0.0
    %2884 = vmatpush1.msra.mxu0 0.0
    %2885 = vmatprep.subr.mxu0 0.0
    %2886 = vmatpush1.msra.mxu0 0.0
    %2887 = vmatprep.subr.mxu0 0.0
    %2888 = vmatpush1.msra.mxu0 0.0
    %2889 = vmatprep.subr.mxu0 0.0
    %2890 = vmatpush1.msra.mxu0 0.0
    %2891 = vmatprep.subr.mxu0 0.0
    %2892 = vmatpush1.msra.mxu0 0.0
    %2893 = vmatprep.subr.mxu0 0.0
    %2894 = vmatpush1.msra.mxu0 0.0
    %2895 = vmatprep.subr.mxu0 0.0
    %2896 = vmatpush1.msra.mxu0 0.0
    %2897 = vmatprep.subr.mxu0 0.0
    %2898 = vmatpush1.msra.mxu0 0.0
    %2899 = vmatprep.subr.mxu0 0.0
    %2900 = vmatpush1.msra.mxu0 0.0
    %2901 = vmatprep.mubr.f32.mxu0 0.0
    %2902 = vmatmul.mubr.f32.gmra.mrb[0].mxu0 %v2835
    %v2903 = vpop.f32.mrb[0].mxu0
    %v2904 = vadd.f32 0.0, %v2903
    %v2905 = vpop.f32.mrb[0].mxu0
    %2906 = vdwg.mxu0
    %2908 = vset.pattern.permute.xlu0 0
    %2909 = vperm.xlu0 %2908, %v2753
    %v2910 = vpop.permute.xlu0 %2909
    %2913 = vset.pattern.permute.xlu0 0
    %2914 = vperm.xlu0 %2913, %v2758
    %v2915 = vpop.permute.xlu0 %2914
    %v2917 = vadd.f32 %v2831, %v2910
    %v2918 = vadd.f32 %v2904, %v2915
    %v2919 = vadd.f32 %v2307, %v2917
    %v2920 = vadd.f32 %v2308, %v2918
    %s2921 = scalar_lea.vmem %s9, 32
    %v2922 = vld [vmem:[%s2921] sm:$0xff]
    %s2923 = scalar_lea.vmem %s10, 32
    %v2924 = vld [vmem:[%s2923] sm:$0xff]
    %v2925 = vsel %vm66, %v2919, 0.0
    %2926 = vadd.xlane.f32.xlu0 %v2925
    %v2927 = vpop.xlane.xlu0 %2926
    %v2928 = vsel %vm66, %v2920, 0.0
    %2929 = vadd.xlane.f32.xlu0 %v2928
    %v2930 = vpop.xlane.xlu0 %2929
    %v2931 = vrot.slane %v2927, 4
    %v2932 = vadd.f32 %v2927, %v2931
    %v2933 = vrot.slane %v2932, 2
    %v2934 = vadd.f32 %v2932, %v2933
    %v2935 = vrot.slane %v2934, 1
    %v2936 = vadd.f32 %v2934, %v2935
    %v2937 = vrot.slane %v2930, 4
    %v2938 = vadd.f32 %v2930, %v2937
    %v2939 = vrot.slane %v2938, 2
    %v2940 = vadd.f32 %v2938, %v2939
    %v2941 = vrot.slane %v2940, 1
    %v2942 = vadd.f32 %v2940, %v2941
    %v2943 = vmul.f32 %v2936, 0.00390625
    %v2944 = vmul.f32 %v2942, 0.00390625
    %v2945 = vsub.f32 %v2919, %v2943
    %v2946 = vsub.f32 %v2920, %v2944
    %v2947 = vmul.f32 %v2945, %v2945
    %v2948 = vmul.f32 %v2946, %v2946
    %v2949 = vsel %vm66, %v2947, 0.0
    %2950 = vadd.xlane.f32.xlu0 %v2949
    %v2951 = vpop.xlane.xlu0 %2950
    %v2952 = vsel %vm66, %v2948, 0.0
    %2953 = vadd.xlane.f32.xlu0 %v2952
    %v2954 = vpop.xlane.xlu0 %2953
    %v2955 = vrot.slane %v2951, 4
    %v2956 = vadd.f32 %v2951, %v2955
    %v2957 = vrot.slane %v2956, 2
    %v2958 = vadd.f32 %v2956, %v2957
    %v2959 = vrot.slane %v2958, 1
    %v2960 = vadd.f32 %v2958, %v2959
    %v2961 = vrot.slane %v2954, 4
    %v2962 = vadd.f32 %v2954, %v2961
    %v2963 = vrot.slane %v2962, 2
    %v2964 = vadd.f32 %v2962, %v2963
    %v2965 = vrot.slane %v2964, 1
    %v2966 = vadd.f32 %v2964, %v2965
    %v2967 = vmul.f32 %v2960, 0.00390625
    %v2968 = vmul.f32 %v2966, 0.00390625
    %v2969 = vadd.f32 %v2967, 1e-05
    %v2970 = vadd.f32 %v2968, 1e-05
    %v2971 = vrsqrt.pop %v2969
    %v2972 = vrsqrt.pop %v2970
    %v2973 = vmul.f32 %v2945, %v2971
    %v2974 = vmul.f32 %v2946, %v2972
    %v2975 = vmul.f32 %v2973, %v2922
    %v2976 = vmul.f32 %v2974, %v2922
    %v2977 = vadd.f32 %v2975, %v2924
    %v2978 = vadd.f32 %v2976, %v2924
    %s2979 = scalar_lea.vmem %s11, 32
    %v2980 = vld [vmem:[%s2979] sm:$0xff]
    %v2981 = vld [vmem:[%s2979 + $0x8] sm:$0xff]
    %v2982 = vld [vmem:[%s2979 + $0x10] sm:$0xff]
    %v2983 = vld [vmem:[%s2979 + $0x18] sm:$0xff]
    %s2984 = scalar_lea.vmem %s12, 1
    %v2985 = vld [vmem:[%s2984] sm:$0x1]
    %v2987 = vlaneseq
    %v2988 = vshrl.u32 %v2987, 7
    %v2989 = vsub.s32 0, %v2988
    %v2990 = vrot.slane %v2985, %v2989
    %v2993 = vsel %vm66, %v2977, 0
    %v2996 = vsel %vm66, %v2978, 0
    %2998 = vmatprep.subr.mxu0 0.0
    %2999 = vmatpush1.msra.mxu0 %v2980
    %3000 = vmatprep.subr.mxu0 0.0
    %3001 = vmatpush1.msra.mxu0 %v2981
    %3002 = vmatprep.subr.mxu0 0.0
    %3003 = vmatpush1.msra.mxu0 %v2982
    %3004 = vmatprep.subr.mxu0 0.0
    %3005 = vmatpush1.msra.mxu0 %v2983
    %3006 = vmatprep.subr.mxu0 0.0
    %3007 = vmatpush1.msra.mxu0 0.0
    %3008 = vmatprep.subr.mxu0 0.0
    %3009 = vmatpush1.msra.mxu0 0.0
    %3010 = vmatprep.subr.mxu0 0.0
    %3011 = vmatpush1.msra.mxu0 0.0
    %3012 = vmatprep.subr.mxu0 0.0
    %3013 = vmatpush1.msra.mxu0 0.0
    %3014 = vmatprep.subr.mxu0 0.0
    %3015 = vmatpush1.msra.mxu0 0.0
    %3016 = vmatprep.subr.mxu0 0.0
    %3017 = vmatpush1.msra.mxu0 0.0
    %3018 = vmatprep.subr.mxu0 0.0
    %3019 = vmatpush1.msra.mxu0 0.0
    %3020 = vmatprep.subr.mxu0 0.0
    %3021 = vmatpush1.msra.mxu0 0.0
    %3022 = vmatprep.subr.mxu0 0.0
    %3023 = vmatpush1.msra.mxu0 0.0
    %3024 = vmatprep.subr.mxu0 0.0
    %3025 = vmatpush1.msra.mxu0 0.0
    %3026 = vmatprep.subr.mxu0 0.0
    %3027 = vmatpush1.msra.mxu0 0.0
    %3028 = vmatprep.subr.mxu0 0.0
    %3029 = vmatpush1.msra.mxu0 0.0
    %3030 = vmatprep.subr.mxu0 0.0
    %3031 = vmatpush1.msra.mxu0 0.0
    %3032 = vmatprep.subr.mxu0 0.0
    %3033 = vmatpush1.msra.mxu0 0.0
    %3034 = vmatprep.subr.mxu0 0.0
    %3035 = vmatpush1.msra.mxu0 0.0
    %3036 = vmatprep.subr.mxu0 0.0
    %3037 = vmatpush1.msra.mxu0 0.0
    %3038 = vmatprep.subr.mxu0 0.0
    %3039 = vmatpush1.msra.mxu0 0.0
    %3040 = vmatprep.subr.mxu0 0.0
    %3041 = vmatpush1.msra.mxu0 0.0
    %3042 = vmatprep.subr.mxu0 0.0
    %3043 = vmatpush1.msra.mxu0 0.0
    %3044 = vmatprep.subr.mxu0 0.0
    %3045 = vmatpush1.msra.mxu0 0.0
    %3046 = vmatprep.subr.mxu0 0.0
    %3047 = vmatpush1.msra.mxu0 0.0
    %3048 = vmatprep.subr.mxu0 0.0
    %3049 = vmatpush1.msra.mxu0 0.0
    %3050 = vmatprep.subr.mxu0 0.0
    %3051 = vmatpush1.msra.mxu0 0.0
    %3052 = vmatprep.subr.mxu0 0.0
    %3053 = vmatpush1.msra.mxu0 0.0
    %3054 = vmatprep.subr.mxu0 0.0
    %3055 = vmatpush1.msra.mxu0 0.0
    %3056 = vmatprep.subr.mxu0 0.0
    %3057 = vmatpush1.msra.mxu0 0.0
    %3058 = vmatprep.subr.mxu0 0.0
    %3059 = vmatpush1.msra.mxu0 0.0
    %3060 = vmatprep.subr.mxu0 0.0
    %3061 = vmatpush1.msra.mxu0 0.0
    %3062 = vmatprep.mubr.f32.mxu0 0.0
    %3063 = vmatmul.mubr.f32.gmra.mrb[0].mxu0 %v2993
    %v3064 = vpop.f32.mrb[0].mxu0
    %v3065 = vadd.f32 %v2990, %v3064
    %v3066 = vpop.f32.mrb[0].mxu0
    %3067 = vmatprep.mubr.f32.mxu0 0.0
    %3068 = vmatmul.mubr.f32.gmra.mrb[0].mxu0 %v2996
    %v3069 = vpop.f32.mrb[0].mxu0
    %v3070 = vadd.f32 %v2990, %v3069
    %v3071 = vpop.f32.mrb[0].mxu0
    %3072 = vdwg.mxu0
    %v3073 = vmax.f32 %v3065, 0.0
    %v3074 = vmax.f32 %v3070, 0.0
    %s3075 = scalar_lea.vmem %s13, 64
    %v3076 = vld [vmem:[%s3075] sm:$0xff]
    %v3077 = vld [vmem:[%s3075 + $0x8] sm:$0xff]
    %v3078 = vld [vmem:[%s3075 + $0x10] sm:$0xff]
    %v3079 = vld [vmem:[%s3075 + $0x18] sm:$0xff]
    %v3080 = vld [vmem:[%s3075 + $0x20] sm:$0xff]
    %v3081 = vld [vmem:[%s3075 + $0x28] sm:$0xff]
    %v3082 = vld [vmem:[%s3075 + $0x30] sm:$0xff]
    %v3083 = vld [vmem:[%s3075 + $0x38] sm:$0xff]
    %s3084 = scalar_lea.vmem %s14, 1
    %v3085 = vld [vmem:[%s3084] sm:$0x1]
    %v3087 = vlaneseq
    %v3088 = vshrl.u32 %v3087, 7
    %v3089 = vsub.s32 0, %v3088
    %v3090 = vrot.slane %v3085, %v3089
    %v3093 = vsel %vm1497, %v3073, 0
    %v3096 = vsel %vm1497, %v3074, 0
    %3098 = vmatprep.subr.mxu0 0.0
    %3099 = vmatpush1.msra.mxu0 %v3076
    %3100 = vmatprep.subr.mxu0 0.0
    %3101 = vmatpush1.msra.mxu0 %v3077
    %3102 = vmatprep.subr.mxu0 0.0
    %3103 = vmatpush1.msra.mxu0 %v3078
    %3104 = vmatprep.subr.mxu0 0.0
    %3105 = vmatpush1.msra.mxu0 %v3079
    %3106 = vmatprep.subr.mxu0 0.0
    %3107 = vmatpush1.msra.mxu0 %v3080
    %3108 = vmatprep.subr.mxu0 0.0
    %3109 = vmatpush1.msra.mxu0 %v3081
    %3110 = vmatprep.subr.mxu0 0.0
    %3111 = vmatpush1.msra.mxu0 %v3082
    %3112 = vmatprep.subr.mxu0 0.0
    %3113 = vmatpush1.msra.mxu0 %v3083
    %3114 = vmatprep.subr.mxu0 0.0
    %3115 = vmatpush1.msra.mxu0 0.0
    %3116 = vmatprep.subr.mxu0 0.0
    %3117 = vmatpush1.msra.mxu0 0.0
    %3118 = vmatprep.subr.mxu0 0.0
    %3119 = vmatpush1.msra.mxu0 0.0
    %3120 = vmatprep.subr.mxu0 0.0
    %3121 = vmatpush1.msra.mxu0 0.0
    %3122 = vmatprep.subr.mxu0 0.0
    %3123 = vmatpush1.msra.mxu0 0.0
    %3124 = vmatprep.subr.mxu0 0.0
    %3125 = vmatpush1.msra.mxu0 0.0
    %3126 = vmatprep.subr.mxu0 0.0
    %3127 = vmatpush1.msra.mxu0 0.0
    %3128 = vmatprep.subr.mxu0 0.0
    %3129 = vmatpush1.msra.mxu0 0.0
    %3130 = vmatprep.subr.mxu0 0.0
    %3131 = vmatpush1.msra.mxu0 0.0
    %3132 = vmatprep.subr.mxu0 0.0
    %3133 = vmatpush1.msra.mxu0 0.0
    %3134 = vmatprep.subr.mxu0 0.0
    %3135 = vmatpush1.msra.mxu0 0.0
    %3136 = vmatprep.subr.mxu0 0.0
    %3137 = vmatpush1.msra.mxu0 0.0
    %3138 = vmatprep.subr.mxu0 0.0
    %3139 = vmatpush1.msra.mxu0 0.0
    %3140 = vmatprep.subr.mxu0 0.0
    %3141 = vmatpush1.msra.mxu0 0.0
    %3142 = vmatprep.subr.mxu0 0.0
    %3143 = vmatpush1.msra.mxu0 0.0
    %3144 = vmatprep.subr.mxu0 0.0
    %3145 = vmatpush1.msra.mxu0 0.0
    %3146 = vmatprep.subr.mxu0 0.0
    %3147 = vmatpush1.msra.mxu0 0.0
    %3148 = vmatprep.subr.mxu0 0.0
    %3149 = vmatpush1.msra.mxu0 0.0
    %3150 = vmatprep.subr.mxu0 0.0
    %3151 = vmatpush1.msra.mxu0 0.0
    %3152 = vmatprep.subr.mxu0 0.0
    %3153 = vmatpush1.msra.mxu0 0.0
    %3154 = vmatprep.subr.mxu0 0.0
    %3155 = vmatpush1.msra.mxu0 0.0
    %3156 = vmatprep.subr.mxu0 0.0
    %3157 = vmatpush1.msra.mxu0 0.0
    %3158 = vmatprep.subr.mxu0 0.0
    %3159 = vmatpush1.msra.mxu0 0.0
    %3160 = vmatprep.subr.mxu0 0.0
    %3161 = vmatpush1.msra.mxu0 0.0
    %3162 = vmatprep.mubr.f32.mxu0 0.0
    %3163 = vmatmul.mubr.f32.gmra.mrb[0].mxu0 %v3093
    %v3164 = vpop.f32.mrb[0].mxu0
    %v3165 = vadd.f32 %v3090, %v3164
    %v3166 = vpop.f32.mrb[0].mxu0
    %3167 = vmatprep.mubr.f32.mxu0 0.0
    %3168 = vmatmul.mubr.f32.gmra.mrb[0].mxu0 %v3096
    %v3169 = vpop.f32.mrb[0].mxu0
    %v3170 = vadd.f32 %v3090, %v3169
    %v3171 = vpop.f32.mrb[0].mxu0
    %3172 = vdwg.mxu0
    %v3173 = vadd.f32 %v2977, %v3165
    %v3174 = vadd.f32 %v2978, %v3170
    %s3175 = scalar_lea.vmem %s9, 40
    %v3176 = vld [vmem:[%s3175] sm:$0xff]
    %s3177 = scalar_lea.vmem %s10, 40
    %v3178 = vld [vmem:[%s3177] sm:$0xff]
    %v3179 = vsel %vm66, %v3173, 0.0
    %3180 = vadd.xlane.f32.xlu0 %v3179
    %v3181 = vpop.xlane.xlu0 %3180
    %v3182 = vsel %vm66, %v3174, 0.0
    %3183 = vadd.xlane.f32.xlu0 %v3182
    %v3184 = vpop.xlane.xlu0 %3183
    %v3185 = vrot.slane %v3181, 4
    %v3186 = vadd.f32 %v3181, %v3185
    %v3187 = vrot.slane %v3186, 2
    %v3188 = vadd.f32 %v3186, %v3187
    %v3189 = vrot.slane %v3188, 1
    %v3190 = vadd.f32 %v3188, %v3189
    %v3191 = vrot.slane %v3184, 4
    %v3192 = vadd.f32 %v3184, %v3191
    %v3193 = vrot.slane %v3192, 2
    %v3194 = vadd.f32 %v3192, %v3193
    %v3195 = vrot.slane %v3194, 1
    %v3196 = vadd.f32 %v3194, %v3195
    %v3197 = vmul.f32 %v3190, 0.00390625
    %v3198 = vmul.f32 %v3196, 0.00390625
    %v3199 = vsub.f32 %v3173, %v3197
    %v3200 = vsub.f32 %v3174, %v3198
    %v3201 = vmul.f32 %v3199, %v3199
    %v3202 = vmul.f32 %v3200, %v3200
    %v3203 = vsel %vm66, %v3201, 0.0
    %3204 = vadd.xlane.f32.xlu0 %v3203
    %v3205 = vpop.xlane.xlu0 %3204
    %v3206 = vsel %vm66, %v3202, 0.0
    %3207 = vadd.xlane.f32.xlu0 %v3206
    %v3208 = vpop.xlane.xlu0 %3207
    %v3209 = vrot.slane %v3205, 4
    %v3210 = vadd.f32 %v3205, %v3209
    %v3211 = vrot.slane %v3210, 2
    %v3212 = vadd.f32 %v3210, %v3211
    %v3213 = vrot.slane %v3212, 1
    %v3214 = vadd.f32 %v3212, %v3213
    %v3215 = vrot.slane %v3208, 4
    %v3216 = vadd.f32 %v3208, %v3215
    %v3217 = vrot.slane %v3216, 2
    %v3218 = vadd.f32 %v3216, %v3217
    %v3219 = vrot.slane %v3218, 1
    %v3220 = vadd.f32 %v3218, %v3219
    %v3221 = vmul.f32 %v3214, 0.00390625
    %v3222 = vmul.f32 %v3220, 0.00390625
    %v3223 = vadd.f32 %v3221, 1e-05
    %v3224 = vadd.f32 %v3222, 1e-05
    %v3225 = vrsqrt.pop %v3223
    %v3226 = vrsqrt.pop %v3224
    %v3227 = vmul.f32 %v3199, %v3225
    %v3228 = vmul.f32 %v3200, %v3226
    %v3229 = vmul.f32 %v3227, %v3176
    %v3230 = vmul.f32 %v3228, %v3176
    %v3231 = vadd.f32 %v3229, %v3178
    %v3232 = vadd.f32 %v3230, %v3178
    %3233 = vst.msk [vmem:[#allocation2] sm:$0xff] %vm66, %v3231
    %3234 = vst.msk [vmem:[#allocation2 + $0x8] sm:$0xff] %vm66, %v3232
    // Predicated region
    $region62: #{fuzzy_attention_decoder.1} parent=1 // pred_check
      _
    $region63: #{fuzzy_attention_decoder.1} parent=1 // pred_check_branch
      %3236 = sbr.rel (0) target = $region65
    $region64: #{fuzzy_attention_decoder.1} parent=1 // pred_region
      %s3238 = ssub.s32 256, 256
      %3239 = vsyncadd [#allocation3], %s3238
      %s3240 = sshll.u32 [#allocation2], 4
      %s3241 = int_to_ptr.vmem [resolvable:$true] %s3240
      %3246 = dma.vmem_to_hbm [thread:$0]  %s3241, 256, %s15, [#allocation3], 128, 128, 8
    $region65: #{fuzzy_attention_decoder.1} parent=1 // pred_fallthru
      _
    // Predicated region
    $region66: #{fuzzy_attention_decoder.1} parent=1 // pred_check
      _
    $region67: #{fuzzy_attention_decoder.1} parent=1 // pred_check_branch
      %3248 = sbr.rel (0) target = $region69
    $region68: #{fuzzy_attention_decoder.1} parent=1 // pred_region
      %3249 = dma.done [#allocation3], 256
    $region69: #{fuzzy_attention_decoder.1} parent=1 // pred_fallthru
      _
    %3250 = vsyncpa [#allocation3], 1

</llo_original>
